<compile_context>
chip_gen: v6e
topology: v6e:2x2x1
jax: 0.10.0
libtpu: 0.0.40
codegen_flags: <defaults>
</compile_context>

<pallas_src>
import functools

import jax
import jax.numpy as jnp
from jax.experimental import pallas as pl
from jax.experimental.pallas import tpu as pltpu


def autopad(k, p=None):
    if p is None:
        p = k // 2 if isinstance(k, int) else [x // 2 for x in k]
    return p


def _round_up(x, m):
    return ((x + m - 1) // m) * m


def _pick_tn(c2p, tn):
    """Largest 128-multiple <= tn that divides the padded channel dim (>=128 always works)."""
    tn = max(128, (min(tn, c2p) // 128) * 128)
    while c2p % tn:
        tn -= 128
    return tn


# -----------------------------------------------------------------------------
# Fused direct conv (stride 1): padded NHWC image -> conv + BN shift + LeakyReLU
# -----------------------------------------------------------------------------
def _conv_fused_kernel(x_ref, w_ref, shift_ref, o_ref, *, k, oh, wp, tn, act):
    # x_ref:     (1, Lp, C1)     bf16 padded image, spatial dims flattened (Lp >= Hp*Wp)
    # w_ref:     (k*k, C1, tn)   bf16 BN-folded conv weight tile
    # shift_ref: (1, C2p)        f32 BN shift, fully resident in VMEM
    # o_ref:     (1, oh*wp, tn)  bf16 output rows in "wide" coords (ow in [0, wp));
    #                            the wrapper slices ow < OW and co < C2 afterwards.
    j = pl.program_id(1)
    rows = oh * wp

    acc = jnp.zeros((rows, tn), jnp.float32)
    for ki in range(k):                  # k*k tap matmuls, fully unrolled (k static & small)
        for kj in range(k):
            start = ki * wp + kj         # static offset -> contiguous 2-D slice, no reshape
            tap = x_ref[0, start:start + rows, :]                  # (rows, C1) bf16
            acc += jnp.dot(tap, w_ref[ki * k + kj],
                           preferred_element_type=jnp.float32)

    sh = shift_ref[:, pl.ds(pl.multiple_of(j * tn, tn), tn)]       # (1, tn) f32
    y = acc + sh
    if act:
        y = jnp.where(y > 0, y, 0.1 * y)                           # LeakyReLU(0.1)
    o_ref[0] = y.astype(o_ref.dtype)


def _conv_fused(xp_flat, w_taps, shift, act, *, oh, wp, k, tn):
    """xp_flat (N, Lp, C1) bf16, w_taps (k*k, C1, C2p) bf16, shift (1, C2p) f32."""
    n, lp, c1 = xp_flat.shape
    c2p = w_taps.shape[-1]
    tn = _pick_tn(c2p, tn)
    nj = c2p // tn
    # TODO(synk): for very large feature maps add an output-row grid axis with a manual
    #             overlapping row-strip DMA (make_async_copy) and set vmem_limit_bytes
    #             explicitly for v7x's 64 MiB budget; whole-image blocks are fine here.
    out = pl.pallas_call(
        functools.partial(_conv_fused_kernel, k=k, oh=oh, wp=wp, tn=tn, act=act),
        out_shape=jax.ShapeDtypeStruct((n, oh * wp, c2p), jnp.bfloat16),
        grid_spec=pltpu.PrefetchScalarGridSpec(
            num_scalar_prefetch=0,
            grid=(n, nj),
            in_specs=[
                # Whole padded image per batch element: block index depends only on the
                # batch axis, so it is fetched once and reused across all C2 tiles.
                pl.BlockSpec((1, lp, c1), lambda b, j: (b, 0, 0)),
                pl.BlockSpec((k * k, c1, tn), lambda b, j: (0, 0, j)),
                pl.BlockSpec((1, c2p), lambda b, j: (0, 0)),       # fully resident shift
            ],
            out_specs=pl.BlockSpec((1, oh * wp, tn), lambda b, j: (b, 0, j)),
        ),
        compiler_params=pltpu.CompilerParams(
            dimension_semantics=("parallel", "parallel")),
    )(xp_flat, w_taps, shift)
    return out                                                     # (N, OH*Wp, C2p) bf16


# -----------------------------------------------------------------------------
# Stride > 1 fallback: im2col matmul (K-tiled, f32 acc) + BN shift + LeakyReLU
# -----------------------------------------------------------------------------
def _matmul_bn_act_kernel(p_ref, w_ref, shift_ref, o_ref, acc_ref, *, act):
    kk = pl.program_id(2)

    @pl.when(kk == 0)
    def _():
        acc_ref[...] = jnp.zeros_like(acc_ref)

    acc_ref[...] += jnp.dot(p_ref[...], w_ref[...],
                            preferred_element_type=jnp.float32)

    @pl.when(kk == pl.num_programs(2) - 1)
    def _():
        y = acc_ref[...] + shift_ref[...]
        if act:
            y = jnp.where(y > 0, y, 0.1 * y)
        o_ref[...] = y.astype(o_ref.dtype)


def _matmul_bn_act(patches, w2d, shift, act, *, tm=512, tn=256, tk=512):
    m, ckk = patches.shape
    c2p = w2d.shape[1]
    tn = _pick_tn(c2p, tn)

    # K: always zero-pad to a 128-multiple (unmasked loads / full-depth vmatmul); tile only
    # when large so small convs keep a single full-extent K block.
    ckkp = _round_up(ckk, 128)
    if ckkp <= 2 * tk:
        tk = ckkp
    else:
        ckkp = _round_up(ckk, tk)
    if ckkp != ckk:
        patches = jnp.pad(patches, ((0, 0), (0, ckkp - ckk)))
        w2d = jnp.pad(w2d, ((0, ckkp - ckk), (0, 0)))

    # M: no wrapper-side pad — pl.cdiv grid, Pallas masks the ragged last tile.
    if m < tm:
        tm = _round_up(m, 16)
    nm = pl.cdiv(m, tm)
    nn, nk = c2p // tn, ckkp // tk
    if nm * nn == 1 and m >= 32:         # keep both v7x TensorCores busy on tiny layers
        tm = _round_up(pl.cdiv(m, 2), 16)
        nm = pl.cdiv(m, tm)

    out = pl.pallas_call(
        functools.partial(_matmul_bn_act_kernel, act=act),
        out_shape=jax.ShapeDtypeStruct((m, c2p), jnp.bfloat16),
        grid_spec=pltpu.PrefetchScalarGridSpec(
            num_scalar_prefetch=0,
            grid=(nm, nn, nk),
            in_specs=[
                pl.BlockSpec((tm, tk), lambda i, j, kk: (i, kk)),
                pl.BlockSpec((tk, tn), lambda i, j, kk: (kk, j)),
                pl.BlockSpec((1, tn), lambda i, j, kk: (0, j)),
            ],
            out_specs=pl.BlockSpec((tm, tn), lambda i, j, kk: (i, j)),
            scratch_shapes=[pltpu.VMEM((tm, tn), jnp.float32)],
        ),
        compiler_params=pltpu.CompilerParams(
            dimension_semantics=("parallel", "parallel", "arbitrary")),
    )(patches, w2d, shift)
    return out                                                     # (M, C2p) bf16


# -----------------------------------------------------------------------------
# Module-level wrappers
# -----------------------------------------------------------------------------
def fold_conv_bn_params(params, *, k, eps=1e-5):
    """Fold eval-mode BatchNorm into the conv weight, once per weight set (off hot path)."""
    w = params["weight"]                                           # (C2, C1, k, k)
    gamma, beta = params["bn_weight"], params["bn_bias"]
    rmean, rvar = params["bn_mean"], params["bn_var"]
    c2, c1 = w.shape[0], w.shape[1]

    inv_std = gamma / jnp.sqrt(rvar + eps)
    w_folded = w * inv_std[:, None, None, None]                    # (C2, C1, k, k)
    shift = (beta - rmean * inv_std).astype(jnp.float32)           # (C2,)

    c2p = _round_up(c2, 128)                                       # lane-dense channels
    w_taps = w_folded.transpose(2, 3, 1, 0).reshape(k * k, c1, c2)  # (ki,kj) tap-major
    w_taps = jnp.pad(w_taps, ((0, 0), (0, 0), (0, c2p - c2))).astype(jnp.bfloat16)
    shift = jnp.pad(shift, ((0, c2p - c2),)).reshape(1, c2p)
    return dict(w_taps=w_taps, shift=shift, c1=c1, c2=c2, k=k)


def conv_forward(x, folded, *, s=1, p=None, act=True, tn=256):
    """Conv(c1,c2,k,s).forward: x (N,C1,H,W) f32 NCHW -> (N,C2,OH,OW) f32 NCHW."""
    # TODO(synk): grouped conv (g > 1) not implemented; g == 1 matches the module default.
    k, c1, c2 = folded["k"], folded["c1"], folded["c2"]
    pad = autopad(k, p)
    n, _, h, w = x.shape
    oh = (h + 2 * pad - k) // s + 1
    ow = (w + 2 * pad - k) // s + 1
    wp = w + 2 * pad

    # Glue: NCHW f32 -> padded NHWC bf16 (~1x input bytes; the NCHW<->NHWC hops are
    # PyTorch-parity only and vanish in an NHWC network).
    extra = 1 if k > 1 else 0            # one spare zero row for the last tap's flat window
    xp = jnp.pad(x.astype(jnp.bfloat16).transpose(0, 2, 3, 1),
                 ((0, 0), (pad, pad + extra), (pad, pad), (0, 0)))

    if s == 1:
        xp_flat = xp.reshape(n, -1, c1)
        out = _conv_fused(xp_flat, folded["w_taps"], folded["shift"], act,
                          oh=oh, wp=wp, k=k, tn=tn)                # (N, OH*Wp, C2p)
        out = out.reshape(n, oh, wp, -1)[:, :, :ow, :]             # drop wrap columns
    else:
        # Strided conv fallback: im2col in XLA feeding the matmul kernel.
        taps = []
        for ki in range(k):
            for kj in range(k):
                taps.append(xp[:, ki:ki + (oh - 1) * s + 1:s,
                                  kj:kj + (ow - 1) * s + 1:s, :])  # (N, OH, OW, C1)
        patches = jnp.stack(taps, 0).transpose(1, 2, 3, 0, 4)      # (N, OH, OW, k*k, C1)
        patches = patches.reshape(n * oh * ow, k * k * c1)
        w2d = folded["w_taps"].reshape(k * k * c1, -1)
        out = _matmul_bn_act(patches, w2d, folded["shift"], act, tn=tn)
        out = out.reshape(n, oh, ow, -1)

    out = out[:, :, :, :c2]                                        # drop channel padding
    return out.transpose(0, 3, 1, 2).astype(jnp.float32)           # NCHW f32 (parity)


def init_conv_params(key, c1, c2, k):
    """Deterministic synthetic parameters matching nn.Conv2d(bias=False)+BatchNorm2d."""
    k1, k2, k3, k4, k5 = jax.random.split(key, 5)
    fan_in = c1 * k * k
    bound = 1.0 / (fan_in ** 0.5)
    weight = jax.random.uniform(k1, (c2, c1, k, k), jnp.float32, -bound, bound)
    bn_weight = jax.random.uniform(k2, (c2,), jnp.float32, 0.5, 1.5)
    bn_bias = jax.random.uniform(k3, (c2,), jnp.float32, -0.5, 0.5)
    bn_mean = jax.random.normal(k4, (c2,), jnp.float32) * 0.1
    bn_var = jax.random.uniform(k5, (c2,), jnp.float32, 0.5, 1.5)
    return dict(weight=weight, bn_weight=bn_weight, bn_bias=bn_bias,
                bn_mean=bn_mean, bn_var=bn_var)


if __name__ == "__main__":
    key = jax.random.PRNGKey(0)
    kx, kp = jax.random.split(key)

    # Small shapes: N=2, C1=4, H=W=16, C2=8, k=3, s=1 (autopad -> p=1)
    N, C1, H, W = 2, 4, 16, 16
    C2, k, s = 8, 3, 1

    x = jax.random.normal(kx, (N, C1, H, W), jnp.float32)
    params = init_conv_params(kp, C1, C2, k)

    folded = fold_conv_bn_params(params, k=k)          # hoisted out of the per-call path
    y = conv_forward(x, folded, s=s, act=True)
    jax.block_until_ready(y)

    assert y.shape == (N, C2, H, W), y.shape
    assert bool(jnp.all(jnp.isfinite(y)))

    # Pure-JAX f32 reference (bf16 MXU operands -> loose tolerance).
    pad = autopad(k)
    inv = params["bn_weight"] / jnp.sqrt(params["bn_var"] + 1e-5)
    wf = params["weight"] * inv[:, None, None, None]
    ref = jax.lax.conv_general_dilated(x, wf, (s, s), ((pad, pad), (pad, pad)),
                                       dimension_numbers=("NCHW", "OIHW", "NCHW"))
    ref = ref + (params["bn_bias"] - params["bn_mean"] * inv)[None, :, None, None]
    ref = jnp.where(ref > 0, ref, 0.1 * ref)
    assert float(jnp.max(jnp.abs(y - ref))) < 0.2

    print("KERNEL_OK")
</pallas_src>

<mosaic_0001>
module attributes {stable_mosaic.version = 11 : i64} {
  func.func @_conv_fused_kernel(%arg0: i32, %arg1: i32, %arg2: memref<1x342x4xbf16, #tpu.memory_space<vmem>>, %arg3: memref<9x4x128xbf16, #tpu.memory_space<vmem>>, %arg4: memref<1x128xf32, #tpu.memory_space<vmem>>, %arg5: memref<1x288x128xbf16, #tpu.memory_space<vmem>>) attributes {dimension_semantics = [#tpu.dimension_semantics<parallel>, #tpu.dimension_semantics<parallel>], iteration_bounds = array<i64: 2, 1>, scalar_prefetch = 0 : i64, scratch_operands = 0 : i64, tpu.core_type = #tpu.core_type<tc>, window_params = [{transform_indices = @transform_0, window_bounds = array<i64: 1, 342, 4>}, {transform_indices = @transform_1, window_bounds = array<i64: 9, 4, 128>}, {pipeline_mode = #tpu.pipeline_mode<synchronous>, transform_indices = @transform_2, window_bounds = array<i64: 1, 128>}, {transform_indices = @transform_3, window_bounds = array<i64: 1, 288, 128>}]} {
    %cst = arith.constant 0.000000e+00 : f32
    %0 = vector.broadcast %cst : f32 to vector<288x128xf32>
    %c0 = arith.constant 0 : index
    %c0_0 = arith.constant 0 : index
    %c0_1 = arith.constant 0 : index
    %1 = vector.load %arg2[%c0, %c0_0, %c0_1] : memref<1x342x4xbf16, #tpu.memory_space<vmem>>, vector<1x288x4xbf16>
    %2 = vector.shape_cast %1 : vector<1x288x4xbf16> to vector<288x4xbf16>
    %c0_2 = arith.constant 0 : index
    %c0_3 = arith.constant 0 : index
    %c0_4 = arith.constant 0 : index
    %3 = vector.load %arg3[%c0_2, %c0_3, %c0_4] : memref<9x4x128xbf16, #tpu.memory_space<vmem>>, vector<1x4x128xbf16>
    %4 = vector.shape_cast %3 : vector<1x4x128xbf16> to vector<4x128xbf16>
    %cst_5 = arith.constant dense<0.000000e+00> : vector<288x128xf32>
    %5 = tpu.matmul %2, %4, %cst_5 {dimension_numbers = #tpu.dot_dimension_numbers<[1], [0], [0], [1], [0, 0, 1, 1], [], []>} : vector<288x4xbf16>, vector<4x128xbf16>, vector<288x128xf32> -> vector<288x128xf32>
    %6 = arith.addf %0, %5 : vector<288x128xf32>
    %c0_6 = arith.constant 0 : index
    %c1 = arith.constant 1 : index
    %c0_7 = arith.constant 0 : index
    %7 = vector.load %arg2[%c0_6, %c1, %c0_7] : memref<1x342x4xbf16, #tpu.memory_space<vmem>>, vector<1x288x4xbf16>
    %8 = vector.shape_cast %7 : vector<1x288x4xbf16> to vector<288x4xbf16>
    %c1_8 = arith.constant 1 : index
    %c0_9 = arith.constant 0 : index
    %c0_10 = arith.constant 0 : index
    %9 = vector.load %arg3[%c1_8, %c0_9, %c0_10] : memref<9x4x128xbf16, #tpu.memory_space<vmem>>, vector<1x4x128xbf16>
    %10 = vector.shape_cast %9 : vector<1x4x128xbf16> to vector<4x128xbf16>
    %cst_11 = arith.constant dense<0.000000e+00> : vector<288x128xf32>
    %11 = tpu.matmul %8, %10, %cst_11 {dimension_numbers = #tpu.dot_dimension_numbers<[1], [0], [0], [1], [0, 0, 1, 1], [], []>} : vector<288x4xbf16>, vector<4x128xbf16>, vector<288x128xf32> -> vector<288x128xf32>
    %12 = arith.addf %6, %11 : vector<288x128xf32>
    %c0_12 = arith.constant 0 : index
    %c2 = arith.constant 2 : index
    %c0_13 = arith.constant 0 : index
    %13 = vector.load %arg2[%c0_12, %c2, %c0_13] : memref<1x342x4xbf16, #tpu.memory_space<vmem>>, vector<1x288x4xbf16>
    %14 = vector.shape_cast %13 : vector<1x288x4xbf16> to vector<288x4xbf16>
    %c2_14 = arith.constant 2 : index
    %c0_15 = arith.constant 0 : index
    %c0_16 = arith.constant 0 : index
    %15 = vector.load %arg3[%c2_14, %c0_15, %c0_16] : memref<9x4x128xbf16, #tpu.memory_space<vmem>>, vector<1x4x128xbf16>
    %16 = vector.shape_cast %15 : vector<1x4x128xbf16> to vector<4x128xbf16>
    %cst_17 = arith.constant dense<0.000000e+00> : vector<288x128xf32>
    %17 = tpu.matmul %14, %16, %cst_17 {dimension_numbers = #tpu.dot_dimension_numbers<[1], [0], [0], [1], [0, 0, 1, 1], [], []>} : vector<288x4xbf16>, vector<4x128xbf16>, vector<288x128xf32> -> vector<288x128xf32>
    %18 = arith.addf %12, %17 : vector<288x128xf32>
    %c0_18 = arith.constant 0 : index
    %c18 = arith.constant 18 : index
    %c0_19 = arith.constant 0 : index
    %19 = vector.load %arg2[%c0_18, %c18, %c0_19] : memref<1x342x4xbf16, #tpu.memory_space<vmem>>, vector<1x288x4xbf16>
    %20 = vector.shape_cast %19 : vector<1x288x4xbf16> to vector<288x4xbf16>
    %c3 = arith.constant 3 : index
    %c0_20 = arith.constant 0 : index
    %c0_21 = arith.constant 0 : index
    %21 = vector.load %arg3[%c3, %c0_20, %c0_21] : memref<9x4x128xbf16, #tpu.memory_space<vmem>>, vector<1x4x128xbf16>
    %22 = vector.shape_cast %21 : vector<1x4x128xbf16> to vector<4x128xbf16>
    %cst_22 = arith.constant dense<0.000000e+00> : vector<288x128xf32>
    %23 = tpu.matmul %20, %22, %cst_22 {dimension_numbers = #tpu.dot_dimension_numbers<[1], [0], [0], [1], [0, 0, 1, 1], [], []>} : vector<288x4xbf16>, vector<4x128xbf16>, vector<288x128xf32> -> vector<288x128xf32>
    %24 = arith.addf %18, %23 : vector<288x128xf32>
    %c0_23 = arith.constant 0 : index
    %c19 = arith.constant 19 : index
    %c0_24 = arith.constant 0 : index
    %25 = vector.load %arg2[%c0_23, %c19, %c0_24] : memref<1x342x4xbf16, #tpu.memory_space<vmem>>, vector<1x288x4xbf16>
    %26 = vector.shape_cast %25 : vector<1x288x4xbf16> to vector<288x4xbf16>
    %c4 = arith.constant 4 : index
    %c0_25 = arith.constant 0 : index
    %c0_26 = arith.constant 0 : index
    %27 = vector.load %arg3[%c4, %c0_25, %c0_26] : memref<9x4x128xbf16, #tpu.memory_space<vmem>>, vector<1x4x128xbf16>
    %28 = vector.shape_cast %27 : vector<1x4x128xbf16> to vector<4x128xbf16>
    %cst_27 = arith.constant dense<0.000000e+00> : vector<288x128xf32>
    %29 = tpu.matmul %26, %28, %cst_27 {dimension_numbers = #tpu.dot_dimension_numbers<[1], [0], [0], [1], [0, 0, 1, 1], [], []>} : vector<288x4xbf16>, vector<4x128xbf16>, vector<288x128xf32> -> vector<288x128xf32>
    %30 = arith.addf %24, %29 : vector<288x128xf32>
    %c0_28 = arith.constant 0 : index
    %c20 = arith.constant 20 : index
    %c0_29 = arith.constant 0 : index
    %31 = vector.load %arg2[%c0_28, %c20, %c0_29] : memref<1x342x4xbf16, #tpu.memory_space<vmem>>, vector<1x288x4xbf16>
    %32 = vector.shape_cast %31 : vector<1x288x4xbf16> to vector<288x4xbf16>
    %c5 = arith.constant 5 : index
    %c0_30 = arith.constant 0 : index
    %c0_31 = arith.constant 0 : index
    %33 = vector.load %arg3[%c5, %c0_30, %c0_31] : memref<9x4x128xbf16, #tpu.memory_space<vmem>>, vector<1x4x128xbf16>
    %34 = vector.shape_cast %33 : vector<1x4x128xbf16> to vector<4x128xbf16>
    %cst_32 = arith.constant dense<0.000000e+00> : vector<288x128xf32>
    %35 = tpu.matmul %32, %34, %cst_32 {dimension_numbers = #tpu.dot_dimension_numbers<[1], [0], [0], [1], [0, 0, 1, 1], [], []>} : vector<288x4xbf16>, vector<4x128xbf16>, vector<288x128xf32> -> vector<288x128xf32>
    %36 = arith.addf %30, %35 : vector<288x128xf32>
    %c0_33 = arith.constant 0 : index
    %c36 = arith.constant 36 : index
    %c0_34 = arith.constant 0 : index
    %37 = vector.load %arg2[%c0_33, %c36, %c0_34] : memref<1x342x4xbf16, #tpu.memory_space<vmem>>, vector<1x288x4xbf16>
    %38 = vector.shape_cast %37 : vector<1x288x4xbf16> to vector<288x4xbf16>
    %c6 = arith.constant 6 : index
    %c0_35 = arith.constant 0 : index
    %c0_36 = arith.constant 0 : index
    %39 = vector.load %arg3[%c6, %c0_35, %c0_36] : memref<9x4x128xbf16, #tpu.memory_space<vmem>>, vector<1x4x128xbf16>
    %40 = vector.shape_cast %39 : vector<1x4x128xbf16> to vector<4x128xbf16>
    %cst_37 = arith.constant dense<0.000000e+00> : vector<288x128xf32>
    %41 = tpu.matmul %38, %40, %cst_37 {dimension_numbers = #tpu.dot_dimension_numbers<[1], [0], [0], [1], [0, 0, 1, 1], [], []>} : vector<288x4xbf16>, vector<4x128xbf16>, vector<288x128xf32> -> vector<288x128xf32>
    %42 = arith.addf %36, %41 : vector<288x128xf32>
    %c0_38 = arith.constant 0 : index
    %c37 = arith.constant 37 : index
    %c0_39 = arith.constant 0 : index
    %43 = vector.load %arg2[%c0_38, %c37, %c0_39] : memref<1x342x4xbf16, #tpu.memory_space<vmem>>, vector<1x288x4xbf16>
    %44 = vector.shape_cast %43 : vector<1x288x4xbf16> to vector<288x4xbf16>
    %c7 = arith.constant 7 : index
    %c0_40 = arith.constant 0 : index
    %c0_41 = arith.constant 0 : index
    %45 = vector.load %arg3[%c7, %c0_40, %c0_41] : memref<9x4x128xbf16, #tpu.memory_space<vmem>>, vector<1x4x128xbf16>
    %46 = vector.shape_cast %45 : vector<1x4x128xbf16> to vector<4x128xbf16>
    %cst_42 = arith.constant dense<0.000000e+00> : vector<288x128xf32>
    %47 = tpu.matmul %44, %46, %cst_42 {dimension_numbers = #tpu.dot_dimension_numbers<[1], [0], [0], [1], [0, 0, 1, 1], [], []>} : vector<288x4xbf16>, vector<4x128xbf16>, vector<288x128xf32> -> vector<288x128xf32>
    %48 = arith.addf %42, %47 : vector<288x128xf32>
    %c0_43 = arith.constant 0 : index
    %c38 = arith.constant 38 : index
    %c0_44 = arith.constant 0 : index
    %49 = vector.load %arg2[%c0_43, %c38, %c0_44] : memref<1x342x4xbf16, #tpu.memory_space<vmem>>, vector<1x288x4xbf16>
    %50 = vector.shape_cast %49 : vector<1x288x4xbf16> to vector<288x4xbf16>
    %c8 = arith.constant 8 : index
    %c0_45 = arith.constant 0 : index
    %c0_46 = arith.constant 0 : index
    %51 = vector.load %arg3[%c8, %c0_45, %c0_46] : memref<9x4x128xbf16, #tpu.memory_space<vmem>>, vector<1x4x128xbf16>
    %52 = vector.shape_cast %51 : vector<1x4x128xbf16> to vector<4x128xbf16>
    %cst_47 = arith.constant dense<0.000000e+00> : vector<288x128xf32>
    %53 = tpu.matmul %50, %52, %cst_47 {dimension_numbers = #tpu.dot_dimension_numbers<[1], [0], [0], [1], [0, 0, 1, 1], [], []>} : vector<288x4xbf16>, vector<4x128xbf16>, vector<288x128xf32> -> vector<288x128xf32>
    %54 = arith.addf %48, %53 : vector<288x128xf32>
    %c128_i32 = arith.constant 128 : i32
    %55 = arith.muli %arg1, %c128_i32 : i32
    %56 = tpu.assume_multiple %55, 128 : i32
    %c0_48 = arith.constant 0 : index
    %57 = arith.index_cast %56 : i32 to index
    %58 = vector.load %arg4[%c0_48, %57] : memref<1x128xf32, #tpu.memory_space<vmem>>, vector<1x128xf32>
    %59 = vector.broadcast %58 : vector<1x128xf32> to vector<288x128xf32>
    %60 = arith.addf %54, %59 : vector<288x128xf32>
    %cst_49 = arith.constant 0.000000e+00 : f32
    %61 = vector.broadcast %cst_49 : f32 to vector<288x128xf32>
    %62 = arith.cmpf ogt, %60, %61 : vector<288x128xf32>
    %cst_50 = arith.constant 1.000000e-01 : f32
    %63 = vector.broadcast %cst_50 : f32 to vector<288x128xf32>
    %64 = arith.mulf %63, %60 : vector<288x128xf32>
    %65 = arith.select %62, %60, %64 : vector<288x128xi1>, vector<288x128xf32>
    %66 = arith.truncf %65 : vector<288x128xf32> to vector<288x128xbf16>
    %c0_51 = arith.constant 0 : index
    %c0_52 = arith.constant 0 : index
    %c0_53 = arith.constant 0 : index
    %67 = vector.load %arg5[%c0_51, %c0_52, %c0_53] : memref<1x288x128xbf16, #tpu.memory_space<vmem>>, vector<1x288x128xbf16>
    %68 = vector.shape_cast %67 : vector<1x288x128xbf16> to vector<288x128xbf16>
    %69 = vector.shape_cast %66 : vector<288x128xbf16> to vector<1x288x128xbf16>
    tpu.vector_store %arg5[%c0_51, %c0_52, %c0_53], %69 {strides = array<i32>} : memref<1x288x128xbf16, #tpu.memory_space<vmem>>, vector<1x288x128xbf16>,
    return
  }
  func.func @transform_0(%arg0: i32, %arg1: i32) -> (i32, i32, i32) {
    %c0_i32 = arith.constant 0 : i32
    %c0_i32_0 = arith.constant 0 : i32
    %c0_i32_1 = arith.constant 0 : i32
    return %arg0, %c0_i32, %c0_i32_0 : i32, i32, i32
  }
  func.func @transform_1(%arg0: i32, %arg1: i32) -> (i32, i32, i32) {
    %c0_i32 = arith.constant 0 : i32
    %c0_i32_0 = arith.constant 0 : i32
    %c0_i32_1 = arith.constant 0 : i32
    return %c0_i32, %c0_i32_0, %arg1 : i32, i32, i32
  }
  func.func @transform_2(%arg0: i32, %arg1: i32) -> (i32, i32) {
    %c0_i32 = arith.constant 0 : i32
    %c0_i32_0 = arith.constant 0 : i32
    %c0_i32_1 = arith.constant 0 : i32
    return %c0_i32, %c0_i32_0 : i32, i32
  }
  func.func @transform_3(%arg0: i32, %arg1: i32) -> (i32, i32, i32) {
    %c0_i32 = arith.constant 0 : i32
    %c0_i32_0 = arith.constant 0 : i32
    return %arg0, %c0_i32, %arg1 : i32, i32, i32
  }
}

</mosaic_0001>

<llo_original>
// kernel: tpu_custom_call.1
$region0: #{tpu_custom_call.1}
  #allocation0 [shape = 'u32[]', space=smem, size = 0x4, offset = 0x4, fixed_abs, tag = 'smem constant byte address 0x4 - core index']
  #allocation1 [shape = 'u32[144,128]{1,0:T(1,128)}', space=vmem, size = 0x12000, scoped, tag = 'internal scratch']
  %s0 = inlined_call_operand.vmem [shape: bf16[2,342,4], index: 0, kind: input, shape index: {}]
  %s1 = inlined_call_operand.vmem [shape: bf16[9,4,128], index: 1, kind: input, shape index: {}]
  %s2 = inlined_call_operand.vmem [shape: f32[1,128], index: 2, kind: input, shape index: {}]
  %s3 = inlined_call_operand.hbm [shape: bf16[2,288,128], index: 3, kind: output, shape index: {}]
  %s4 = sld [smem:[#allocation0]]
  $region45: #{tpu_custom_call.1} parent=0
    _
  %s6 = ssub.s32 1, %s4
  %s7 = scalar_select 0, %s6, %s4
  $region1: #{tpu_custom_call.1} parent=0
    #allocation2 [shape = 'u8[147456]{0}', space=vmem, size = 0x24000, scoped, tag = 'output window, operand 0']
    #allocation3 [shape = 's32[2]{0}', space=sflag, size = 0x8, scoped, tag = 'scoped memory for tpu_custom_call.1']
    %8 = vsyncpa [#allocation3], 0
    %s9 = scalar_lea.sflag [#allocation3], 1
    %10 = vsyncpa %s9, 0
    loop: start=0, step=1, limit=4
    $region2: #{tpu_custom_call.1} parent=1 // loop_pre_header
      _
    $region3: #{tpu_custom_call.1} parent=1 // loop_header
      %s12 = sphi 0, %s16
      %p13 = scmp.ge.s32.totalorder %s12, 4
      %s19 = sphi 0, %s31
      %s20 = sphi 0, %s27
      %s21 = sphi 0, %s19
      %s22 = sphi 0, %s20
      %s23 = sphi 0, %s21
      %s24 = sphi 0, %s22
      %s34 = sphi 0, %s36
      %s37 = sphi 0, %s34
      %s38 = sphi 0, %s37
      %s54 = sphi 0, %s38
      %s60 = sphi 0, %s62
      %s63 = sphi 0, %s60
      %s64 = sphi 0, %s63
      %s80 = sphi 0, %s64
      %s84 = sphi 0, %s84
      %s86 = sphi 0, %s84
      %s87 = sphi 0, %s86
      %s101 = sphi 0, %s87
      %s109 = sphi 0, %s111
      %s112 = sphi 0, %s109
      %s113 = sphi 0, %s112
      %s129 = sphi 0, %s113
    $region4: #{tpu_custom_call.1} parent=1 // loop_header_branch
      %15 = sbr.rel (%p13) target = $region8
    $region5: #{tpu_custom_call.1} parent=1 // loop_body
      %s17 = ssub.s32 %s12, 1
      %s18 = ssub.s32 %s12, 2
      %s25 = sadd.s32 1, %s20
      %p26 = scmp.ge.s32.totalorder %s25, 1
      %s27 = scalar_select %p26, 0, %s25
      %s28 = sadd.s32 1, %s19
      %s29 = scalar_select %p26, %s28, %s19
      %p30 = scmp.ge.s32.totalorder %s29, 2
      %s31 = scalar_select %p30, 0, %s29
      %s32 = ssub.s32 %s19, %s31
      %p33 = scmp.eq.s32.totalorder %s32, 0
      %s35 = sadd.s32 %s34, 1
      %s36 = scalar_select %p33, %s34, %s35
      %p39 = pneg %p33
      %p40 = scmp.eq.s32.totalorder %s12, 1
      %p41 = por %p39, %p40
      %p42 = scmp.ne.s32.totalorder %s34, %s37
      %p43 = scmp.eq.s32.totalorder %s12, 0
      %p44 = por %p42, %p43
      %p45 = scmp.ne.s32.totalorder %s34, %s37
      %p46 = scmp.eq.s32.totalorder %s17, 1
      %p47 = por %p45, %p46
      %p48 = scmp.ne.s32.totalorder %s37, %s38
      %p49 = scmp.eq.s32.totalorder %s17, 0
      %p50 = por %p48, %p49
      %p51 = scmp.ne.s32.totalorder %s37, %s38
      %p52 = scmp.eq.s32.totalorder %s18, 1
      %p53 = por %p51, %p52
      %p55 = scmp.ne.s32.totalorder %s38, %s54
      %p56 = scmp.eq.s32.totalorder %s18, 0
      %p57 = por %p55, %p56
      %s58 = ssub.s32 %s20, %s27
      %p59 = scmp.eq.s32.totalorder %s58, 0
      %s61 = sadd.s32 %s60, 1
      %s62 = scalar_select %p59, %s60, %s61
      %p65 = pneg %p59
      %p66 = scmp.eq.s32.totalorder %s12, 1
      %p67 = por %p65, %p66
      %p68 = scmp.ne.s32.totalorder %s60, %s63
      %p69 = scmp.eq.s32.totalorder %s12, 0
      %p70 = por %p68, %p69
      %p71 = scmp.ne.s32.totalorder %s60, %s63
      %p72 = scmp.eq.s32.totalorder %s17, 1
      %p73 = por %p71, %p72
      %p74 = scmp.ne.s32.totalorder %s63, %s64
      %p75 = scmp.eq.s32.totalorder %s17, 0
      %p76 = por %p74, %p75
      %p77 = scmp.ne.s32.totalorder %s63, %s64
      %p78 = scmp.eq.s32.totalorder %s18, 1
      %p79 = por %p77, %p78
      %p81 = scmp.ne.s32.totalorder %s64, %s80
      %p82 = scmp.eq.s32.totalorder %s18, 0
      %p83 = por %p81, %p82
      %s85 = sadd.s32 %s84, 1
      %p88 = scmp.eq.s32.totalorder %s12, 1
      %p89 = scmp.ne.s32.totalorder %s84, %s86
      %p90 = scmp.eq.s32.totalorder %s12, 0
      %p91 = por %p89, %p90
      %p92 = scmp.ne.s32.totalorder %s84, %s86
      %p93 = scmp.eq.s32.totalorder %s17, 1
      %p94 = por %p92, %p93
      %p95 = scmp.ne.s32.totalorder %s86, %s87
      %p96 = scmp.eq.s32.totalorder %s17, 0
      %p97 = por %p95, %p96
      %p98 = scmp.ne.s32.totalorder %s86, %s87
      %p99 = scmp.eq.s32.totalorder %s18, 1
      %p100 = por %p98, %p99
      %p102 = scmp.ne.s32.totalorder %s87, %s101
      %p103 = scmp.eq.s32.totalorder %s18, 0
      %p104 = por %p102, %p103
      %s105 = ssub.s32 %s19, %s31
      %s106 = ssub.s32 %s20, %s27
      %s107 = sor.u32 %s105, %s106
      %p108 = scmp.eq.s32.totalorder %s107, 0
      %s110 = sadd.s32 %s109, 1
      %s111 = scalar_select %p108, %s109, %s110
      %p114 = pneg %p108
      %p115 = scmp.eq.s32.totalorder %s12, 1
      %p116 = por %p114, %p115
      %p117 = scmp.ne.s32.totalorder %s109, %s112
      %p118 = scmp.eq.s32.totalorder %s12, 0
      %p119 = por %p117, %p118
      %p120 = scmp.ne.s32.totalorder %s109, %s112
      %p121 = scmp.eq.s32.totalorder %s17, 1
      %p122 = por %p120, %p121
      %p123 = scmp.ne.s32.totalorder %s112, %s113
      %p124 = scmp.eq.s32.totalorder %s17, 0
      %p125 = por %p123, %p124
      %p126 = scmp.ne.s32.totalorder %s112, %s113
      %p127 = scmp.eq.s32.totalorder %s18, 1
      %p128 = por %p126, %p127
      %p130 = scmp.ne.s32.totalorder %s113, %s129
      %p131 = scmp.eq.s32.totalorder %s18, 0
      %p132 = por %p130, %p131
      %p133 = scmp.le.s32.totalorder 1, %s12
      %p134 = scmp.lt.s32.totalorder %s12, 3
      %p135 = pnand %p133, %p134
      %p136 = pneg %p135
      // Predicated region
      $region9: #{tpu_custom_call.1} parent=5 // pred_check
        _
      $region10: #{tpu_custom_call.1} parent=5 // pred_check_branch
        %138 = sbr.rel (%p135) target = $region12
      $region11: #{tpu_custom_call.1} parent=5 // pred_region
        %s139 = ssub.s32 %s12, 1
        // Predicated region
        $region13: #{tpu_custom_call.1} parent=11 // pred_check
          %p140 = pneg %p76
        $region14: #{tpu_custom_call.1} parent=11 // pred_check_branch
          %142 = sbr.rel (%p140) target = $region16
        $region15: #{tpu_custom_call.1} parent=11 // pred_region
          %p143 = scmp.lt.s32.totalorder %s22, 0
          %s144 = scalar_select %p143, %s22, 0
          %s145 = smul.addr %s144, 2
          %s146 = scalar_lea.vmem %s1, %s145
        $region16: #{tpu_custom_call.1} parent=11 // pred_fallthru
          _
        // Predicated region
        $region17: #{tpu_custom_call.1} parent=11 // pred_check
          %p147 = pneg %p97
        $region18: #{tpu_custom_call.1} parent=11 // pred_check_branch
          %149 = sbr.rel (%p147) target = $region20
        $region19: #{tpu_custom_call.1} parent=11 // pred_region
          _
        $region20: #{tpu_custom_call.1} parent=11 // pred_fallthru
          _
      $region12: #{tpu_custom_call.1} parent=5 // pred_fallthru
        _
      %p150 = scmp.lt.s32.totalorder %s12, 2
      // Predicated region
      $region21: #{tpu_custom_call.1} parent=5 // pred_check
        %p151 = pneg %p150
      $region22: #{tpu_custom_call.1} parent=5 // pred_check_branch
        %153 = sbr.rel (%p151) target = $region24
      $region23: #{tpu_custom_call.1} parent=5 // pred_region
        // Predicated region
        $region25: #{tpu_custom_call.1} parent=23 // pred_check
          %p154 = pneg %p44
        $region26: #{tpu_custom_call.1} parent=23 // pred_check_branch
          %156 = sbr.rel (%p154) target = $region28
        $region27: #{tpu_custom_call.1} parent=23 // pred_region
          %p157 = scmp.lt.s32.totalorder %s19, 1
          %s158 = scalar_select %p157, %s19, 1
          %s159 = smul.addr %s158, 43
          %s160 = smul.addr %s159, 4
          %s161 = scalar_lea.vmem %s0, %s160
        $region28: #{tpu_custom_call.1} parent=23 // pred_fallthru
          _
      $region24: #{tpu_custom_call.1} parent=5 // pred_fallthru
        _
      %p162 = scmp.le.s32.totalorder 1, %s12
      %p163 = scmp.lt.s32.totalorder %s12, 3
      %p164 = pnand %p162, %p163
      %p165 = pneg %p164
      // Predicated region
      $region29: #{tpu_custom_call.1} parent=5 // pred_check
        _
      $region30: #{tpu_custom_call.1} parent=5 // pred_check_branch
        %167 = sbr.rel (%p164) target = $region32
      $region31: #{tpu_custom_call.1} parent=5 // pred_region
        %s168 = ssub.s32 %s12, 1
        %p169 = scmp.lt.s32.totalorder %s21, 1
        %s170 = scalar_select %p169, %s21, 1
        %s171 = smul.addr %s170, 43
        %s172 = smul.addr %s171, 4
        %s173 = scalar_lea.vmem %s0, %s172
        %p174 = pneg %p50
        %p175 = pneg %p47
        %p176 = scmp.lt.s32.totalorder %s22, 0
        %s177 = scalar_select %p176, %s22, 0
        %s178 = smul.addr %s177, 2
        %s179 = scalar_lea.vmem %s1, %s178
        %p180 = pneg %p76
        %p181 = pneg %p73
        %p182 = pneg %p97
        %p183 = pneg %p94
        %p184 = pneg %p125
        %p185 = pneg %p122
        %s186 = sand.u32 %s112, 1
        %s187 = scalar_lea.sflag [#allocation3], %s186
        %s188 = sand.u32 %s112, 1
        %s189 = smul.addr %s188, 144
        %s190 = scalar_lea.vmem [#allocation2], %s189
        %p191 = scmp.lt.s32.totalorder %s21, 1
        %s192 = scalar_select %p191, %s21, 1
        %s193 = smul.addr %s192, 43
        %s194 = smul.addr %s193, 4
        %s195 = scalar_lea.vmem %s0, %s194
        %p196 = scmp.lt.s32.totalorder %s22, 0
        %s197 = scalar_select %p196, %s22, 0
        %s198 = smul.addr %s197, 2
        %s199 = scalar_lea.vmem %s1, %s198
        %v201 = vld [vmem:[%s195] sm:$0xf]
        %v202 = vld [vmem:[%s195 + $0x4] sm:$0xf]
        %v203 = vld [vmem:[%s195 + $0x8] sm:$0xf]
        %v204 = vld [vmem:[%s195 + $0xc] sm:$0xf]
        %v205 = vld [vmem:[%s195 + $0x10] sm:$0xf]
        %v206 = vld [vmem:[%s195 + $0x14] sm:$0xf]
        %v207 = vld [vmem:[%s195 + $0x18] sm:$0xf]
        %v208 = vld [vmem:[%s195 + $0x1c] sm:$0xf]
        %v209 = vld [vmem:[%s195 + $0x20] sm:$0xf]
        %v210 = vld [vmem:[%s195 + $0x24] sm:$0xf]
        %v211 = vld [vmem:[%s195 + $0x28] sm:$0xf]
        %v212 = vld [vmem:[%s195 + $0x2c] sm:$0xf]
        %v213 = vld [vmem:[%s195 + $0x30] sm:$0xf]
        %v214 = vld [vmem:[%s195 + $0x34] sm:$0xf]
        %v215 = vld [vmem:[%s195 + $0x38] sm:$0xf]
        %v216 = vld [vmem:[%s195 + $0x3c] sm:$0xf]
        %v217 = vld [vmem:[%s195 + $0x40] sm:$0xf]
        %v218 = vld [vmem:[%s195 + $0x44] sm:$0xf]
        %v219 = vld [vmem:[%s195 + $0x48] sm:$0xf]
        %v220 = vld [vmem:[%s195 + $0x4c] sm:$0xf]
        %v221 = vld [vmem:[%s195 + $0x50] sm:$0xf]
        %v222 = vld [vmem:[%s195 + $0x54] sm:$0xf]
        %v223 = vld [vmem:[%s195 + $0x58] sm:$0xf]
        %v224 = vld [vmem:[%s195 + $0x5c] sm:$0xf]
        %v225 = vld [vmem:[%s195 + $0x60] sm:$0xf]
        %v226 = vld [vmem:[%s195 + $0x64] sm:$0xf]
        %v227 = vld [vmem:[%s195 + $0x68] sm:$0xf]
        %v228 = vld [vmem:[%s195 + $0x6c] sm:$0xf]
        %v229 = vld [vmem:[%s195 + $0x70] sm:$0xf]
        %v230 = vld [vmem:[%s195 + $0x74] sm:$0xf]
        %v231 = vld [vmem:[%s195 + $0x78] sm:$0xf]
        %v232 = vld [vmem:[%s195 + $0x7c] sm:$0xf]
        %v233 = vld [vmem:[%s195 + $0x80] sm:$0xf]
        %v234 = vld [vmem:[%s195 + $0x84] sm:$0xf]
        %v235 = vld [vmem:[%s195 + $0x88] sm:$0xf]
        %v236 = vld [vmem:[%s195 + $0x8c] sm:$0xf]
        %v237 = vld [vmem:[%s199] sm:$0x3]
        %v238 = vld [vmem:[%s195 + $0x90] sm:$0x1]
        %s239 = scalar_lea.vmem %s199, 2
        %v240 = vld [vmem:[%s239] sm:$0x3]
        %v278 = vunpack.c.l.b16 %v201
        %v279 = vunpack.c.l.b16 %v202
        %v280 = vunpack.c.l.b16 %v203
        %v281 = vunpack.c.l.b16 %v204
        %v282 = vunpack.c.l.b16 %v205
        %v283 = vunpack.c.l.b16 %v206
        %v284 = vunpack.c.l.b16 %v207
        %v285 = vunpack.c.l.b16 %v208
        %v286 = vunpack.c.l.b16 %v209
        %v287 = vunpack.c.l.b16 %v210
        %v288 = vunpack.c.l.b16 %v211
        %v289 = vunpack.c.l.b16 %v212
        %v290 = vunpack.c.l.b16 %v213
        %v291 = vunpack.c.l.b16 %v214
        %v292 = vunpack.c.l.b16 %v215
        %v293 = vunpack.c.l.b16 %v216
        %v294 = vunpack.c.l.b16 %v217
        %v295 = vunpack.c.l.b16 %v218
        %v296 = vunpack.c.l.b16 %v219
        %v297 = vunpack.c.l.b16 %v220
        %v298 = vunpack.c.l.b16 %v221
        %v299 = vunpack.c.l.b16 %v222
        %v300 = vunpack.c.l.b16 %v223
        %v301 = vunpack.c.l.b16 %v224
        %v302 = vunpack.c.l.b16 %v225
        %v303 = vunpack.c.l.b16 %v226
        %v304 = vunpack.c.l.b16 %v227
        %v305 = vunpack.c.l.b16 %v228
        %v306 = vunpack.c.l.b16 %v229
        %v307 = vunpack.c.l.b16 %v230
        %v308 = vunpack.c.l.b16 %v231
        %v309 = vunpack.c.l.b16 %v232
        %v310 = vunpack.c.l.b16 %v233
        %v311 = vunpack.c.l.b16 %v234
        %v312 = vunpack.c.l.b16 %v235
        %v313 = vunpack.c.l.b16 %v236
        %v314 = vunpack.c.l.b16 %v238
        %v315 = vpack.c.b16 %v279, %v278
        %v316 = vpack.c.b16 %v281, %v280
        %v317 = vpack.c.b16 %v283, %v282
        %v318 = vpack.c.b16 %v285, %v284
        %v319 = vpack.c.b16 %v287, %v286
        %v320 = vpack.c.b16 %v289, %v288
        %v321 = vpack.c.b16 %v291, %v290
        %v322 = vpack.c.b16 %v293, %v292
        %v323 = vpack.c.b16 %v295, %v294
        %v324 = vpack.c.b16 %v297, %v296
        %v325 = vpack.c.b16 %v299, %v298
        %v326 = vpack.c.b16 %v301, %v300
        %v327 = vpack.c.b16 %v303, %v302
        %v328 = vpack.c.b16 %v305, %v304
        %v329 = vpack.c.b16 %v307, %v306
        %v330 = vpack.c.b16 %v309, %v308
        %v331 = vpack.c.b16 %v311, %v310
        %v332 = vpack.c.b16 %v313, %v312
        %v333 = vpack.c.b16 %v314, %v314
        %vm334 = vsmask.f32 7424
        %v336 = vshrl.u32 %v315, 16
        %v338 = vshll.u32 %v315, 16
        %v340 = vrot.slane %v338, 1
        %v341 = vor.u32 %v336, %v340
        %v343 = vshll.u32 %v316, 16
        %v345 = vrot.slane %v343, 1
        %v346 = vsel %vm334, %v341, %v345
        %v347 = vshrl.u32 %v316, 16
        %v349 = vor.u32 %v347, %v345
        %v351 = vshll.u32 %v317, 16
        %v353 = vrot.slane %v351, 1
        %v354 = vsel %vm334, %v349, %v353
        %v355 = vshrl.u32 %v317, 16
        %v357 = vor.u32 %v355, %v353
        %v359 = vshll.u32 %v318, 16
        %v361 = vrot.slane %v359, 1
        %v362 = vsel %vm334, %v357, %v361
        %v363 = vshrl.u32 %v318, 16
        %v365 = vor.u32 %v363, %v361
        %v367 = vshll.u32 %v319, 16
        %v369 = vrot.slane %v367, 1
        %v370 = vsel %vm334, %v365, %v369
        %v371 = vshrl.u32 %v319, 16
        %v373 = vor.u32 %v371, %v369
        %v375 = vshll.u32 %v320, 16
        %v377 = vrot.slane %v375, 1
        %v378 = vsel %vm334, %v373, %v377
        %v379 = vshrl.u32 %v320, 16
        %v381 = vor.u32 %v379, %v377
        %v383 = vshll.u32 %v321, 16
        %v385 = vrot.slane %v383, 1
        %v386 = vsel %vm334, %v381, %v385
        %v387 = vshrl.u32 %v321, 16
        %v389 = vor.u32 %v387, %v385
        %v391 = vshll.u32 %v322, 16
        %v393 = vrot.slane %v391, 1
        %v394 = vsel %vm334, %v389, %v393
        %v395 = vshrl.u32 %v322, 16
        %v397 = vor.u32 %v395, %v393
        %v399 = vshll.u32 %v323, 16
        %v401 = vrot.slane %v399, 1
        %v402 = vsel %vm334, %v397, %v401
        %v403 = vshrl.u32 %v323, 16
        %v405 = vor.u32 %v403, %v401
        %v407 = vshll.u32 %v324, 16
        %v409 = vrot.slane %v407, 1
        %v410 = vsel %vm334, %v405, %v409
        %v411 = vshrl.u32 %v324, 16
        %v413 = vor.u32 %v411, %v409
        %v415 = vshll.u32 %v325, 16
        %v417 = vrot.slane %v415, 1
        %v418 = vsel %vm334, %v413, %v417
        %v419 = vshrl.u32 %v325, 16
        %v421 = vor.u32 %v419, %v417
        %v423 = vshll.u32 %v326, 16
        %v425 = vrot.slane %v423, 1
        %v426 = vsel %vm334, %v421, %v425
        %v427 = vshrl.u32 %v326, 16
        %v429 = vor.u32 %v427, %v425
        %v431 = vshll.u32 %v327, 16
        %v433 = vrot.slane %v431, 1
        %v434 = vsel %vm334, %v429, %v433
        %v435 = vshrl.u32 %v327, 16
        %v437 = vor.u32 %v435, %v433
        %v439 = vshll.u32 %v328, 16
        %v441 = vrot.slane %v439, 1
        %v442 = vsel %vm334, %v437, %v441
        %v443 = vshrl.u32 %v328, 16
        %v445 = vor.u32 %v443, %v441
        %v447 = vshll.u32 %v329, 16
        %v449 = vrot.slane %v447, 1
        %v450 = vsel %vm334, %v445, %v449
        %v451 = vshrl.u32 %v329, 16
        %v453 = vor.u32 %v451, %v449
        %v455 = vshll.u32 %v330, 16
        %v457 = vrot.slane %v455, 1
        %v458 = vsel %vm334, %v453, %v457
        %v459 = vshrl.u32 %v330, 16
        %v461 = vor.u32 %v459, %v457
        %v463 = vshll.u32 %v331, 16
        %v465 = vrot.slane %v463, 1
        %v466 = vsel %vm334, %v461, %v465
        %v467 = vshrl.u32 %v331, 16
        %v469 = vor.u32 %v467, %v465
        %v471 = vshll.u32 %v332, 16
        %v473 = vrot.slane %v471, 1
        %v474 = vsel %vm334, %v469, %v473
        %v475 = vshrl.u32 %v332, 16
        %v477 = vor.u32 %v475, %v473
        %v479 = vshll.u32 %v333, 16
        %v481 = vrot.slane %v479, 1
        %v482 = vsel %vm334, %v477, %v481
        %vm483 = vcmask 31744
        %v485 = vsel %vm483, %v346, 0
        %v488 = vsel %vm483, %v354, 0
        %v491 = vsel %vm483, %v362, 0
        %v494 = vsel %vm483, %v370, 0
        %v497 = vsel %vm483, %v378, 0
        %v500 = vsel %vm483, %v386, 0
        %v503 = vsel %vm483, %v394, 0
        %v506 = vsel %vm483, %v402, 0
        %v509 = vsel %vm483, %v410, 0
        %v512 = vsel %vm483, %v418, 0
        %v515 = vsel %vm483, %v426, 0
        %v518 = vsel %vm483, %v434, 0
        %v521 = vsel %vm483, %v442, 0
        %v524 = vsel %vm483, %v450, 0
        %v527 = vsel %vm483, %v458, 0
        %v530 = vsel %vm483, %v466, 0
        %v533 = vsel %vm483, %v474, 0
        %v536 = vsel %vm483, %v482, 0
        %vm538 = vcmask 1041408
        %v540 = vsel %vm538, %v240, 0
        %542 = vmatprep.subr.bf16.mxu0 0
        %543 = vmatpush1.bf16.msra.mxu0 0
        %544 = vmatprep.subr.bf16.mxu0 0
        %545 = vmatpush1.bf16.msra.mxu0 0
        %546 = vmatprep.subr.bf16.mxu0 0
        %547 = vmatpush1.bf16.msra.mxu0 0
        %548 = vmatprep.subr.bf16.mxu0 0
        %549 = vmatpush1.bf16.msra.mxu0 0
        %550 = vmatprep.subr.bf16.mxu0 0
        %551 = vmatpush1.bf16.msra.mxu0 0
        %552 = vmatprep.subr.bf16.mxu0 0
        %553 = vmatpush1.bf16.msra.mxu0 0
        %554 = vmatprep.subr.bf16.mxu0 0
        %555 = vmatpush1.bf16.msra.mxu0 0
        %556 = vmatprep.subr.bf16.mxu0 0
        %557 = vmatpush1.bf16.msra.mxu0 %v540
        %558 = vmatprep.subr.bf16.mxu0 0
        %559 = vmatpush2.bf16.msra.mxu0 0
        %560 = vmatprep.subr.bf16.mxu0 0
        %561 = vmatpush2.bf16.msra.mxu0 0
        %562 = vmatprep.subr.bf16.mxu0 0
        %563 = vmatpush2.bf16.msra.mxu0 0
        %564 = vmatprep.subr.bf16.mxu0 0
        %565 = vmatpush2.bf16.msra.mxu0 0
        %566 = vmatprep.subr.bf16.mxu0 0
        %567 = vmatpush2.bf16.msra.mxu0 0
        %568 = vmatprep.subr.bf16.mxu0 0
        %569 = vmatpush2.bf16.msra.mxu0 0
        %570 = vmatprep.subr.bf16.mxu0 0
        %571 = vmatpush2.bf16.msra.mxu0 0
        %572 = vmatprep.subr.bf16.mxu0 0
        %573 = vmatpush2.bf16.msra.mxu0 0
        %574 = vmatprep.mubr.bf16.mxu0 0
        %575 = vmatmul.mubr.bf16.gmra.mxu0 %v485
        %v576 = vpop.f32.mrf.mxu0
        %v577 = vadd.f32 0.0, %v576
        %v578 = vpop.f32.mrf.mxu0
        %v579 = vpop.f32.mrf.mxu0
        %v580 = vadd.f32 0.0, %v579
        %v581 = vpop.f32.mrf.mxu0
        %582 = vmatprep.mubr.bf16.mxu0 0
        %583 = vmatmul.mubr.bf16.gmra.mxu0 %v488
        %v584 = vpop.f32.mrf.mxu0
        %v585 = vadd.f32 0.0, %v584
        %v586 = vpop.f32.mrf.mxu0
        %v587 = vpop.f32.mrf.mxu0
        %v588 = vadd.f32 0.0, %v587
        %v589 = vpop.f32.mrf.mxu0
        %590 = vmatprep.mubr.bf16.mxu0 0
        %591 = vmatmul.mubr.bf16.gmra.mxu0 %v491
        %v592 = vpop.f32.mrf.mxu0
        %v593 = vadd.f32 0.0, %v592
        %v594 = vpop.f32.mrf.mxu0
        %v595 = vpop.f32.mrf.mxu0
        %v596 = vadd.f32 0.0, %v595
        %v597 = vpop.f32.mrf.mxu0
        %598 = vmatprep.mubr.bf16.mxu0 0
        %599 = vmatmul.mubr.bf16.gmra.mxu0 %v494
        %v600 = vpop.f32.mrf.mxu0
        %v601 = vadd.f32 0.0, %v600
        %v602 = vpop.f32.mrf.mxu0
        %v603 = vpop.f32.mrf.mxu0
        %v604 = vadd.f32 0.0, %v603
        %v605 = vpop.f32.mrf.mxu0
        %606 = vmatprep.mubr.bf16.mxu0 0
        %607 = vmatmul.mubr.bf16.gmra.mxu0 %v497
        %v608 = vpop.f32.mrf.mxu0
        %v609 = vadd.f32 0.0, %v608
        %v610 = vpop.f32.mrf.mxu0
        %v611 = vpop.f32.mrf.mxu0
        %v612 = vadd.f32 0.0, %v611
        %v613 = vpop.f32.mrf.mxu0
        %614 = vmatprep.mubr.bf16.mxu0 0
        %615 = vmatmul.mubr.bf16.gmra.mxu0 %v500
        %v616 = vpop.f32.mrf.mxu0
        %v617 = vadd.f32 0.0, %v616
        %v618 = vpop.f32.mrf.mxu0
        %v619 = vpop.f32.mrf.mxu0
        %v620 = vadd.f32 0.0, %v619
        %v621 = vpop.f32.mrf.mxu0
        %622 = vmatprep.mubr.bf16.mxu0 0
        %623 = vmatmul.mubr.bf16.gmra.mxu0 %v503
        %v624 = vpop.f32.mrf.mxu0
        %v625 = vadd.f32 0.0, %v624
        %v626 = vpop.f32.mrf.mxu0
        %v627 = vpop.f32.mrf.mxu0
        %v628 = vadd.f32 0.0, %v627
        %v629 = vpop.f32.mrf.mxu0
        %630 = vmatprep.mubr.bf16.mxu0 0
        %631 = vmatmul.mubr.bf16.gmra.mxu0 %v506
        %v632 = vpop.f32.mrf.mxu0
        %v633 = vadd.f32 0.0, %v632
        %v634 = vpop.f32.mrf.mxu0
        %v635 = vpop.f32.mrf.mxu0
        %v636 = vadd.f32 0.0, %v635
        %v637 = vpop.f32.mrf.mxu0
        %638 = vmatprep.mubr.bf16.mxu0 0
        %639 = vmatmul.mubr.bf16.gmra.mxu0 %v509
        %v640 = vpop.f32.mrf.mxu0
        %v641 = vadd.f32 0.0, %v640
        %v642 = vpop.f32.mrf.mxu0
        %v643 = vpop.f32.mrf.mxu0
        %v644 = vadd.f32 0.0, %v643
        %v645 = vpop.f32.mrf.mxu0
        %646 = vmatprep.mubr.bf16.mxu0 0
        %647 = vmatmul.mubr.bf16.gmra.mxu0 %v512
        %v648 = vpop.f32.mrf.mxu0
        %v649 = vadd.f32 0.0, %v648
        %v650 = vpop.f32.mrf.mxu0
        %v651 = vpop.f32.mrf.mxu0
        %v652 = vadd.f32 0.0, %v651
        %v653 = vpop.f32.mrf.mxu0
        %654 = vmatprep.mubr.bf16.mxu0 0
        %655 = vmatmul.mubr.bf16.gmra.mxu0 %v515
        %v656 = vpop.f32.mrf.mxu0
        %v657 = vadd.f32 0.0, %v656
        %v658 = vpop.f32.mrf.mxu0
        %v659 = vpop.f32.mrf.mxu0
        %v660 = vadd.f32 0.0, %v659
        %v661 = vpop.f32.mrf.mxu0
        %662 = vmatprep.mubr.bf16.mxu0 0
        %663 = vmatmul.mubr.bf16.gmra.mxu0 %v518
        %v664 = vpop.f32.mrf.mxu0
        %v665 = vadd.f32 0.0, %v664
        %v666 = vpop.f32.mrf.mxu0
        %v667 = vpop.f32.mrf.mxu0
        %v668 = vadd.f32 0.0, %v667
        %v669 = vpop.f32.mrf.mxu0
        %670 = vmatprep.mubr.bf16.mxu0 0
        %671 = vmatmul.mubr.bf16.gmra.mxu0 %v521
        %v672 = vpop.f32.mrf.mxu0
        %v673 = vadd.f32 0.0, %v672
        %v674 = vpop.f32.mrf.mxu0
        %v675 = vpop.f32.mrf.mxu0
        %v676 = vadd.f32 0.0, %v675
        %v677 = vpop.f32.mrf.mxu0
        %678 = vmatprep.mubr.bf16.mxu0 0
        %679 = vmatmul.mubr.bf16.gmra.mxu0 %v524
        %v680 = vpop.f32.mrf.mxu0
        %v681 = vadd.f32 0.0, %v680
        %v682 = vpop.f32.mrf.mxu0
        %v683 = vpop.f32.mrf.mxu0
        %v684 = vadd.f32 0.0, %v683
        %v685 = vpop.f32.mrf.mxu0
        %686 = vmatprep.mubr.bf16.mxu0 0
        %687 = vmatmul.mubr.bf16.gmra.mxu0 %v527
        %v688 = vpop.f32.mrf.mxu0
        %v689 = vadd.f32 0.0, %v688
        %v690 = vpop.f32.mrf.mxu0
        %v691 = vpop.f32.mrf.mxu0
        %v692 = vadd.f32 0.0, %v691
        %v693 = vpop.f32.mrf.mxu0
        %694 = vmatprep.mubr.bf16.mxu0 0
        %695 = vmatmul.mubr.bf16.gmra.mxu0 %v530
        %v696 = vpop.f32.mrf.mxu0
        %v697 = vadd.f32 0.0, %v696
        %v698 = vpop.f32.mrf.mxu0
        %v699 = vpop.f32.mrf.mxu0
        %v700 = vadd.f32 0.0, %v699
        %v701 = vpop.f32.mrf.mxu0
        %702 = vmatprep.mubr.bf16.mxu0 0
        %703 = vmatmul.mubr.bf16.gmra.mxu0 %v533
        %v704 = vpop.f32.mrf.mxu0
        %v705 = vadd.f32 0.0, %v704
        %v706 = vpop.f32.mrf.mxu0
        %v707 = vpop.f32.mrf.mxu0
        %v708 = vadd.f32 0.0, %v707
        %v709 = vpop.f32.mrf.mxu0
        %710 = vmatprep.mubr.bf16.mxu0 0
        %711 = vmatmul.mubr.bf16.gmra.mxu0 %v536
        %v712 = vpop.f32.mrf.mxu0
        %v713 = vadd.f32 0.0, %v712
        %v714 = vpop.f32.mrf.mxu0
        %v715 = vpop.f32.mrf.mxu0
        %v716 = vadd.f32 0.0, %v715
        %v717 = vpop.f32.mrf.mxu0
        %718 = vdwg.mxu0
        %v719 = vsel %vm483, %v315, 0
        %v721 = vsel %vm483, %v316, 0
        %v723 = vsel %vm483, %v317, 0
        %v725 = vsel %vm483, %v318, 0
        %v727 = vsel %vm483, %v319, 0
        %v729 = vsel %vm483, %v320, 0
        %v731 = vsel %vm483, %v321, 0
        %v733 = vsel %vm483, %v322, 0
        %v735 = vsel %vm483, %v323, 0
        %v737 = vsel %vm483, %v324, 0
        %v739 = vsel %vm483, %v325, 0
        %v741 = vsel %vm483, %v326, 0
        %v743 = vsel %vm483, %v327, 0
        %v745 = vsel %vm483, %v328, 0
        %v747 = vsel %vm483, %v329, 0
        %v749 = vsel %vm483, %v330, 0
        %v751 = vsel %vm483, %v331, 0
        %v753 = vsel %vm483, %v332, 0
        %v756 = vsel %vm538, %v237, 0
        %758 = vmatprep.subr.bf16.mxu0 0
        %759 = vmatpush1.bf16.msra.mxu0 0
        %760 = vmatprep.subr.bf16.mxu0 0
        %761 = vmatpush1.bf16.msra.mxu0 0
        %762 = vmatprep.subr.bf16.mxu0 0
        %763 = vmatpush1.bf16.msra.mxu0 0
        %764 = vmatprep.subr.bf16.mxu0 0
        %765 = vmatpush1.bf16.msra.mxu0 0
        %766 = vmatprep.subr.bf16.mxu0 0
        %767 = vmatpush1.bf16.msra.mxu0 0
        %768 = vmatprep.subr.bf16.mxu0 0
        %769 = vmatpush1.bf16.msra.mxu0 0
        %770 = vmatprep.subr.bf16.mxu0 0
        %771 = vmatpush1.bf16.msra.mxu0 0
        %772 = vmatprep.subr.bf16.mxu0 0
        %773 = vmatpush1.bf16.msra.mxu0 %v756
        %774 = vmatprep.subr.bf16.mxu0 0
        %775 = vmatpush2.bf16.msra.mxu0 0
        %776 = vmatprep.subr.bf16.mxu0 0
        %777 = vmatpush2.bf16.msra.mxu0 0
        %778 = vmatprep.subr.bf16.mxu0 0
        %779 = vmatpush2.bf16.msra.mxu0 0
        %780 = vmatprep.subr.bf16.mxu0 0
        %781 = vmatpush2.bf16.msra.mxu0 0
        %782 = vmatprep.subr.bf16.mxu0 0
        %783 = vmatpush2.bf16.msra.mxu0 0
        %784 = vmatprep.subr.bf16.mxu0 0
        %785 = vmatpush2.bf16.msra.mxu0 0
        %786 = vmatprep.subr.bf16.mxu0 0
        %787 = vmatpush2.bf16.msra.mxu0 0
        %788 = vmatprep.subr.bf16.mxu0 0
        %789 = vmatpush2.bf16.msra.mxu0 0
        %790 = vmatprep.mubr.bf16.mxu0 0
        %791 = vmatmul.mubr.bf16.gmra.mxu0 %v719
        %v792 = vpop.f32.mrf.mxu0
        %v793 = vadd.f32 %v577, %v792
        %v794 = vpop.f32.mrf.mxu0
        %v795 = vpop.f32.mrf.mxu0
        %v796 = vadd.f32 %v580, %v795
        %v797 = vpop.f32.mrf.mxu0
        %798 = vmatprep.mubr.bf16.mxu0 0
        %799 = vmatmul.mubr.bf16.gmra.mxu0 %v721
        %v800 = vpop.f32.mrf.mxu0
        %v801 = vadd.f32 %v585, %v800
        %v802 = vpop.f32.mrf.mxu0
        %v803 = vpop.f32.mrf.mxu0
        %v804 = vadd.f32 %v588, %v803
        %v805 = vpop.f32.mrf.mxu0
        %806 = vmatprep.mubr.bf16.mxu0 0
        %807 = vmatmul.mubr.bf16.gmra.mxu0 %v723
        %v808 = vpop.f32.mrf.mxu0
        %v809 = vadd.f32 %v593, %v808
        %v810 = vpop.f32.mrf.mxu0
        %v811 = vpop.f32.mrf.mxu0
        %v812 = vadd.f32 %v596, %v811
        %v813 = vpop.f32.mrf.mxu0
        %814 = vmatprep.mubr.bf16.mxu0 0
        %815 = vmatmul.mubr.bf16.gmra.mxu0 %v725
        %v816 = vpop.f32.mrf.mxu0
        %v817 = vadd.f32 %v601, %v816
        %v818 = vpop.f32.mrf.mxu0
        %v819 = vpop.f32.mrf.mxu0
        %v820 = vadd.f32 %v604, %v819
        %v821 = vpop.f32.mrf.mxu0
        %822 = vmatprep.mubr.bf16.mxu0 0
        %823 = vmatmul.mubr.bf16.gmra.mxu0 %v727
        %v824 = vpop.f32.mrf.mxu0
        %v825 = vadd.f32 %v609, %v824
        %v826 = vpop.f32.mrf.mxu0
        %v827 = vpop.f32.mrf.mxu0
        %v828 = vadd.f32 %v612, %v827
        %v829 = vpop.f32.mrf.mxu0
        %830 = vmatprep.mubr.bf16.mxu0 0
        %831 = vmatmul.mubr.bf16.gmra.mxu0 %v729
        %v832 = vpop.f32.mrf.mxu0
        %v833 = vadd.f32 %v617, %v832
        %v834 = vpop.f32.mrf.mxu0
        %v835 = vpop.f32.mrf.mxu0
        %v836 = vadd.f32 %v620, %v835
        %v837 = vpop.f32.mrf.mxu0
        %838 = vmatprep.mubr.bf16.mxu0 0
        %839 = vmatmul.mubr.bf16.gmra.mxu0 %v731
        %v840 = vpop.f32.mrf.mxu0
        %v841 = vadd.f32 %v625, %v840
        %v842 = vpop.f32.mrf.mxu0
        %v843 = vpop.f32.mrf.mxu0
        %v844 = vadd.f32 %v628, %v843
        %v845 = vpop.f32.mrf.mxu0
        %846 = vmatprep.mubr.bf16.mxu0 0
        %847 = vmatmul.mubr.bf16.gmra.mxu0 %v733
        %v848 = vpop.f32.mrf.mxu0
        %v849 = vadd.f32 %v633, %v848
        %v850 = vpop.f32.mrf.mxu0
        %v851 = vpop.f32.mrf.mxu0
        %v852 = vadd.f32 %v636, %v851
        %v853 = vpop.f32.mrf.mxu0
        %854 = vmatprep.mubr.bf16.mxu0 0
        %855 = vmatmul.mubr.bf16.gmra.mxu0 %v735
        %v856 = vpop.f32.mrf.mxu0
        %v857 = vadd.f32 %v641, %v856
        %v858 = vpop.f32.mrf.mxu0
        %v859 = vpop.f32.mrf.mxu0
        %v860 = vadd.f32 %v644, %v859
        %v861 = vpop.f32.mrf.mxu0
        %862 = vmatprep.mubr.bf16.mxu0 0
        %863 = vmatmul.mubr.bf16.gmra.mxu0 %v737
        %v864 = vpop.f32.mrf.mxu0
        %v865 = vadd.f32 %v649, %v864
        %v866 = vpop.f32.mrf.mxu0
        %v867 = vpop.f32.mrf.mxu0
        %v868 = vadd.f32 %v652, %v867
        %v869 = vpop.f32.mrf.mxu0
        %870 = vmatprep.mubr.bf16.mxu0 0
        %871 = vmatmul.mubr.bf16.gmra.mxu0 %v739
        %v872 = vpop.f32.mrf.mxu0
        %v873 = vadd.f32 %v657, %v872
        %v874 = vpop.f32.mrf.mxu0
        %v875 = vpop.f32.mrf.mxu0
        %v876 = vadd.f32 %v660, %v875
        %v877 = vpop.f32.mrf.mxu0
        %878 = vmatprep.mubr.bf16.mxu0 0
        %879 = vmatmul.mubr.bf16.gmra.mxu0 %v741
        %v880 = vpop.f32.mrf.mxu0
        %v881 = vadd.f32 %v665, %v880
        %v882 = vpop.f32.mrf.mxu0
        %v883 = vpop.f32.mrf.mxu0
        %v884 = vadd.f32 %v668, %v883
        %v885 = vpop.f32.mrf.mxu0
        %886 = vmatprep.mubr.bf16.mxu0 0
        %887 = vmatmul.mubr.bf16.gmra.mxu0 %v743
        %v888 = vpop.f32.mrf.mxu0
        %v889 = vadd.f32 %v673, %v888
        %v890 = vpop.f32.mrf.mxu0
        %v891 = vpop.f32.mrf.mxu0
        %v892 = vadd.f32 %v676, %v891
        %v893 = vpop.f32.mrf.mxu0
        %894 = vmatprep.mubr.bf16.mxu0 0
        %895 = vmatmul.mubr.bf16.gmra.mxu0 %v745
        %v896 = vpop.f32.mrf.mxu0
        %v897 = vadd.f32 %v681, %v896
        %v898 = vpop.f32.mrf.mxu0
        %v899 = vpop.f32.mrf.mxu0
        %v900 = vadd.f32 %v684, %v899
        %v901 = vpop.f32.mrf.mxu0
        %902 = vmatprep.mubr.bf16.mxu0 0
        %903 = vmatmul.mubr.bf16.gmra.mxu0 %v747
        %v904 = vpop.f32.mrf.mxu0
        %v905 = vadd.f32 %v689, %v904
        %v906 = vpop.f32.mrf.mxu0
        %v907 = vpop.f32.mrf.mxu0
        %v908 = vadd.f32 %v692, %v907
        %v909 = vpop.f32.mrf.mxu0
        %910 = vmatprep.mubr.bf16.mxu0 0
        %911 = vmatmul.mubr.bf16.gmra.mxu0 %v749
        %v912 = vpop.f32.mrf.mxu0
        %v913 = vadd.f32 %v697, %v912
        %v914 = vpop.f32.mrf.mxu0
        %v915 = vpop.f32.mrf.mxu0
        %v916 = vadd.f32 %v700, %v915
        %v917 = vpop.f32.mrf.mxu0
        %918 = vmatprep.mubr.bf16.mxu0 0
        %919 = vmatmul.mubr.bf16.gmra.mxu0 %v751
        %v920 = vpop.f32.mrf.mxu0
        %v921 = vadd.f32 %v705, %v920
        %v922 = vpop.f32.mrf.mxu0
        %v923 = vpop.f32.mrf.mxu0
        %v924 = vadd.f32 %v708, %v923
        %v925 = vpop.f32.mrf.mxu0
        %926 = vmatprep.mubr.bf16.mxu0 0
        %927 = vmatmul.mubr.bf16.gmra.mxu0 %v753
        %v928 = vpop.f32.mrf.mxu0
        %v929 = vadd.f32 %v713, %v928
        %v930 = vpop.f32.mrf.mxu0
        %v931 = vpop.f32.mrf.mxu0
        %v932 = vadd.f32 %v716, %v931
        %v933 = vpop.f32.mrf.mxu0
        %934 = vdwg.mxu0
        %v935 = vld [vmem:[%s195] sm:$0xe]
        %s936 = scalar_lea.vmem %s199, 4
        %v937 = vld [vmem:[%s936] sm:$0x3]
        %v939 = vunpack.c.l.b16 %v935
        %v940 = vpack.c.b16 %v279, %v939
        %vm941 = vcmask 1046528
        %v942 = vrot.slane %v940, 1
        %v943 = vrot.slane %v316, 1
        %v944 = vsel %vm941, %v942, %v943
        %v945 = vrot.slane %v317, 1
        %v946 = vsel %vm941, %v943, %v945
        %v947 = vrot.slane %v318, 1
        %v948 = vsel %vm941, %v945, %v947
        %v949 = vrot.slane %v319, 1
        %v950 = vsel %vm941, %v947, %v949
        %v951 = vrot.slane %v320, 1
        %v952 = vsel %vm941, %v949, %v951
        %v953 = vrot.slane %v321, 1
        %v954 = vsel %vm941, %v951, %v953
        %v955 = vrot.slane %v322, 1
        %v956 = vsel %vm941, %v953, %v955
        %v957 = vrot.slane %v323, 1
        %v958 = vsel %vm941, %v955, %v957
        %v959 = vrot.slane %v324, 1
        %v960 = vsel %vm941, %v957, %v959
        %v961 = vrot.slane %v325, 1
        %v962 = vsel %vm941, %v959, %v961
        %v963 = vrot.slane %v326, 1
        %v964 = vsel %vm941, %v961, %v963
        %v965 = vrot.slane %v327, 1
        %v966 = vsel %vm941, %v963, %v965
        %v967 = vrot.slane %v328, 1
        %v968 = vsel %vm941, %v965, %v967
        %v969 = vrot.slane %v329, 1
        %v970 = vsel %vm941, %v967, %v969
        %v971 = vrot.slane %v330, 1
        %v972 = vsel %vm941, %v969, %v971
        %v973 = vrot.slane %v331, 1
        %v974 = vsel %vm941, %v971, %v973
        %v975 = vrot.slane %v332, 1
        %v976 = vsel %vm941, %v973, %v975
        %v977 = vrot.slane %v333, 1
        %v978 = vsel %vm941, %v975, %v977
        %v980 = vsel %vm483, %v944, 0
        %v983 = vsel %vm483, %v946, 0
        %v986 = vsel %vm483, %v948, 0
        %v989 = vsel %vm483, %v950, 0
        %v992 = vsel %vm483, %v952, 0
        %v995 = vsel %vm483, %v954, 0
        %v998 = vsel %vm483, %v956, 0
        %v1001 = vsel %vm483, %v958, 0
        %v1004 = vsel %vm483, %v960, 0
        %v1007 = vsel %vm483, %v962, 0
        %v1010 = vsel %vm483, %v964, 0
        %v1013 = vsel %vm483, %v966, 0
        %v1016 = vsel %vm483, %v968, 0
        %v1019 = vsel %vm483, %v970, 0
        %v1022 = vsel %vm483, %v972, 0
        %v1025 = vsel %vm483, %v974, 0
        %v1028 = vsel %vm483, %v976, 0
        %v1031 = vsel %vm483, %v978, 0
        %v1034 = vsel %vm538, %v937, 0
        %1036 = vmatprep.subr.bf16.mxu0 0
        %1037 = vmatpush1.bf16.msra.mxu0 0
        %1038 = vmatprep.subr.bf16.mxu0 0
        %1039 = vmatpush1.bf16.msra.mxu0 0
        %1040 = vmatprep.subr.bf16.mxu0 0
        %1041 = vmatpush1.bf16.msra.mxu0 0
        %1042 = vmatprep.subr.bf16.mxu0 0
        %1043 = vmatpush1.bf16.msra.mxu0 0
        %1044 = vmatprep.subr.bf16.mxu0 0
        %1045 = vmatpush1.bf16.msra.mxu0 0
        %1046 = vmatprep.subr.bf16.mxu0 0
        %1047 = vmatpush1.bf16.msra.mxu0 0
        %1048 = vmatprep.subr.bf16.mxu0 0
        %1049 = vmatpush1.bf16.msra.mxu0 0
        %1050 = vmatprep.subr.bf16.mxu0 0
        %1051 = vmatpush1.bf16.msra.mxu0 %v1034
        %1052 = vmatprep.subr.bf16.mxu0 0
        %1053 = vmatpush2.bf16.msra.mxu0 0
        %1054 = vmatprep.subr.bf16.mxu0 0
        %1055 = vmatpush2.bf16.msra.mxu0 0
        %1056 = vmatprep.subr.bf16.mxu0 0
        %1057 = vmatpush2.bf16.msra.mxu0 0
        %1058 = vmatprep.subr.bf16.mxu0 0
        %1059 = vmatpush2.bf16.msra.mxu0 0
        %1060 = vmatprep.subr.bf16.mxu0 0
        %1061 = vmatpush2.bf16.msra.mxu0 0
        %1062 = vmatprep.subr.bf16.mxu0 0
        %1063 = vmatpush2.bf16.msra.mxu0 0
        %1064 = vmatprep.subr.bf16.mxu0 0
        %1065 = vmatpush2.bf16.msra.mxu0 0
        %1066 = vmatprep.subr.bf16.mxu0 0
        %1067 = vmatpush2.bf16.msra.mxu0 0
        %1068 = vmatprep.mubr.bf16.mxu0 0
        %1069 = vmatmul.mubr.bf16.gmra.mxu0 %v980
        %v1070 = vpop.f32.mrf.mxu0
        %v1071 = vadd.f32 0.0, %v1070
        %v1072 = vpop.f32.mrf.mxu0
        %v1073 = vpop.f32.mrf.mxu0
        %v1074 = vadd.f32 0.0, %v1073
        %v1075 = vpop.f32.mrf.mxu0
        %1076 = vmatprep.mubr.bf16.mxu0 0
        %1077 = vmatmul.mubr.bf16.gmra.mxu0 %v983
        %v1078 = vpop.f32.mrf.mxu0
        %v1079 = vadd.f32 0.0, %v1078
        %v1080 = vpop.f32.mrf.mxu0
        %v1081 = vpop.f32.mrf.mxu0
        %v1082 = vadd.f32 0.0, %v1081
        %v1083 = vpop.f32.mrf.mxu0
        %1084 = vmatprep.mubr.bf16.mxu0 0
        %1085 = vmatmul.mubr.bf16.gmra.mxu0 %v986
        %v1086 = vpop.f32.mrf.mxu0
        %v1087 = vadd.f32 0.0, %v1086
        %v1088 = vpop.f32.mrf.mxu0
        %v1089 = vpop.f32.mrf.mxu0
        %v1090 = vadd.f32 0.0, %v1089
        %v1091 = vpop.f32.mrf.mxu0
        %1092 = vmatprep.mubr.bf16.mxu0 0
        %1093 = vmatmul.mubr.bf16.gmra.mxu0 %v989
        %v1094 = vpop.f32.mrf.mxu0
        %v1095 = vadd.f32 0.0, %v1094
        %v1096 = vpop.f32.mrf.mxu0
        %v1097 = vpop.f32.mrf.mxu0
        %v1098 = vadd.f32 0.0, %v1097
        %v1099 = vpop.f32.mrf.mxu0
        %1100 = vmatprep.mubr.bf16.mxu0 0
        %1101 = vmatmul.mubr.bf16.gmra.mxu0 %v992
        %v1102 = vpop.f32.mrf.mxu0
        %v1103 = vadd.f32 0.0, %v1102
        %v1104 = vpop.f32.mrf.mxu0
        %v1105 = vpop.f32.mrf.mxu0
        %v1106 = vadd.f32 0.0, %v1105
        %v1107 = vpop.f32.mrf.mxu0
        %1108 = vmatprep.mubr.bf16.mxu0 0
        %1109 = vmatmul.mubr.bf16.gmra.mxu0 %v995
        %v1110 = vpop.f32.mrf.mxu0
        %v1111 = vadd.f32 0.0, %v1110
        %v1112 = vpop.f32.mrf.mxu0
        %v1113 = vpop.f32.mrf.mxu0
        %v1114 = vadd.f32 0.0, %v1113
        %v1115 = vpop.f32.mrf.mxu0
        %1116 = vmatprep.mubr.bf16.mxu0 0
        %1117 = vmatmul.mubr.bf16.gmra.mxu0 %v998
        %v1118 = vpop.f32.mrf.mxu0
        %v1119 = vadd.f32 0.0, %v1118
        %v1120 = vpop.f32.mrf.mxu0
        %v1121 = vpop.f32.mrf.mxu0
        %v1122 = vadd.f32 0.0, %v1121
        %v1123 = vpop.f32.mrf.mxu0
        %1124 = vmatprep.mubr.bf16.mxu0 0
        %1125 = vmatmul.mubr.bf16.gmra.mxu0 %v1001
        %v1126 = vpop.f32.mrf.mxu0
        %v1127 = vadd.f32 0.0, %v1126
        %v1128 = vpop.f32.mrf.mxu0
        %v1129 = vpop.f32.mrf.mxu0
        %v1130 = vadd.f32 0.0, %v1129
        %v1131 = vpop.f32.mrf.mxu0
        %1132 = vmatprep.mubr.bf16.mxu0 0
        %1133 = vmatmul.mubr.bf16.gmra.mxu0 %v1004
        %v1134 = vpop.f32.mrf.mxu0
        %v1135 = vadd.f32 0.0, %v1134
        %v1136 = vpop.f32.mrf.mxu0
        %v1137 = vpop.f32.mrf.mxu0
        %v1138 = vadd.f32 0.0, %v1137
        %v1139 = vpop.f32.mrf.mxu0
        %1140 = vmatprep.mubr.bf16.mxu0 0
        %1141 = vmatmul.mubr.bf16.gmra.mxu0 %v1007
        %v1142 = vpop.f32.mrf.mxu0
        %v1143 = vadd.f32 0.0, %v1142
        %v1144 = vpop.f32.mrf.mxu0
        %v1145 = vpop.f32.mrf.mxu0
        %v1146 = vadd.f32 0.0, %v1145
        %v1147 = vpop.f32.mrf.mxu0
        %1148 = vmatprep.mubr.bf16.mxu0 0
        %1149 = vmatmul.mubr.bf16.gmra.mxu0 %v1010
        %v1150 = vpop.f32.mrf.mxu0
        %v1151 = vadd.f32 0.0, %v1150
        %v1152 = vpop.f32.mrf.mxu0
        %v1153 = vpop.f32.mrf.mxu0
        %v1154 = vadd.f32 0.0, %v1153
        %v1155 = vpop.f32.mrf.mxu0
        %1156 = vmatprep.mubr.bf16.mxu0 0
        %1157 = vmatmul.mubr.bf16.gmra.mxu0 %v1013
        %v1158 = vpop.f32.mrf.mxu0
        %v1159 = vadd.f32 0.0, %v1158
        %v1160 = vpop.f32.mrf.mxu0
        %v1161 = vpop.f32.mrf.mxu0
        %v1162 = vadd.f32 0.0, %v1161
        %v1163 = vpop.f32.mrf.mxu0
        %1164 = vmatprep.mubr.bf16.mxu0 0
        %1165 = vmatmul.mubr.bf16.gmra.mxu0 %v1016
        %v1166 = vpop.f32.mrf.mxu0
        %v1167 = vadd.f32 0.0, %v1166
        %v1168 = vpop.f32.mrf.mxu0
        %v1169 = vpop.f32.mrf.mxu0
        %v1170 = vadd.f32 0.0, %v1169
        %v1171 = vpop.f32.mrf.mxu0
        %1172 = vmatprep.mubr.bf16.mxu0 0
        %1173 = vmatmul.mubr.bf16.gmra.mxu0 %v1019
        %v1174 = vpop.f32.mrf.mxu0
        %v1175 = vadd.f32 0.0, %v1174
        %v1176 = vpop.f32.mrf.mxu0
        %v1177 = vpop.f32.mrf.mxu0
        %v1178 = vadd.f32 0.0, %v1177
        %v1179 = vpop.f32.mrf.mxu0
        %1180 = vmatprep.mubr.bf16.mxu0 0
        %1181 = vmatmul.mubr.bf16.gmra.mxu0 %v1022
        %v1182 = vpop.f32.mrf.mxu0
        %v1183 = vadd.f32 0.0, %v1182
        %v1184 = vpop.f32.mrf.mxu0
        %v1185 = vpop.f32.mrf.mxu0
        %v1186 = vadd.f32 0.0, %v1185
        %v1187 = vpop.f32.mrf.mxu0
        %1188 = vmatprep.mubr.bf16.mxu0 0
        %1189 = vmatmul.mubr.bf16.gmra.mxu0 %v1025
        %v1190 = vpop.f32.mrf.mxu0
        %v1191 = vadd.f32 0.0, %v1190
        %v1192 = vpop.f32.mrf.mxu0
        %v1193 = vpop.f32.mrf.mxu0
        %v1194 = vadd.f32 0.0, %v1193
        %v1195 = vpop.f32.mrf.mxu0
        %1196 = vmatprep.mubr.bf16.mxu0 0
        %1197 = vmatmul.mubr.bf16.gmra.mxu0 %v1028
        %v1198 = vpop.f32.mrf.mxu0
        %v1199 = vadd.f32 0.0, %v1198
        %v1200 = vpop.f32.mrf.mxu0
        %v1201 = vpop.f32.mrf.mxu0
        %v1202 = vadd.f32 0.0, %v1201
        %v1203 = vpop.f32.mrf.mxu0
        %1204 = vmatprep.mubr.bf16.mxu0 0
        %1205 = vmatmul.mubr.bf16.gmra.mxu0 %v1031
        %v1206 = vpop.f32.mrf.mxu0
        %v1207 = vadd.f32 0.0, %v1206
        %v1208 = vpop.f32.mrf.mxu0
        %v1209 = vpop.f32.mrf.mxu0
        %v1210 = vadd.f32 0.0, %v1209
        %v1211 = vpop.f32.mrf.mxu0
        %1212 = vdwg.mxu0
        %v1213 = vadd.f32 %v793, %v1071
        %v1214 = vadd.f32 %v796, %v1074
        %v1215 = vadd.f32 %v801, %v1079
        %v1216 = vadd.f32 %v804, %v1082
        %v1217 = vadd.f32 %v809, %v1087
        %v1218 = vadd.f32 %v812, %v1090
        %v1219 = vadd.f32 %v817, %v1095
        %v1220 = vadd.f32 %v820, %v1098
        %v1221 = vadd.f32 %v825, %v1103
        %v1222 = vadd.f32 %v828, %v1106
        %v1223 = vadd.f32 %v833, %v1111
        %v1224 = vadd.f32 %v836, %v1114
        %v1225 = vadd.f32 %v841, %v1119
        %v1226 = vadd.f32 %v844, %v1122
        %v1227 = vadd.f32 %v849, %v1127
        %v1228 = vadd.f32 %v852, %v1130
        %v1229 = vadd.f32 %v857, %v1135
        %v1230 = vadd.f32 %v860, %v1138
        %v1231 = vadd.f32 %v865, %v1143
        %v1232 = vadd.f32 %v868, %v1146
        %v1233 = vadd.f32 %v873, %v1151
        %v1234 = vadd.f32 %v876, %v1154
        %v1235 = vadd.f32 %v881, %v1159
        %v1236 = vadd.f32 %v884, %v1162
        %v1237 = vadd.f32 %v889, %v1167
        %v1238 = vadd.f32 %v892, %v1170
        %v1239 = vadd.f32 %v897, %v1175
        %v1240 = vadd.f32 %v900, %v1178
        %v1241 = vadd.f32 %v905, %v1183
        %v1242 = vadd.f32 %v908, %v1186
        %v1243 = vadd.f32 %v913, %v1191
        %v1244 = vadd.f32 %v916, %v1194
        %v1245 = vadd.f32 %v921, %v1199
        %v1246 = vadd.f32 %v924, %v1202
        %v1247 = vadd.f32 %v929, %v1207
        %v1248 = vadd.f32 %v932, %v1210
        %v1249 = vld [vmem:[%s195 + $0x8] sm:$0xe]
        %v1250 = vld [vmem:[%s195 + $0xc] sm:$0xf]
        %v1251 = vld [vmem:[%s195 + $0x10] sm:$0xf]
        %v1252 = vld [vmem:[%s195 + $0x14] sm:$0xf]
        %v1253 = vld [vmem:[%s195 + $0x18] sm:$0xf]
        %v1254 = vld [vmem:[%s195 + $0x1c] sm:$0xf]
        %v1255 = vld [vmem:[%s195 + $0x20] sm:$0xf]
        %v1256 = vld [vmem:[%s195 + $0x24] sm:$0xf]
        %v1257 = vld [vmem:[%s195 + $0x28] sm:$0xf]
        %v1258 = vld [vmem:[%s195 + $0x2c] sm:$0xf]
        %v1259 = vld [vmem:[%s195 + $0x30] sm:$0xf]
        %v1260 = vld [vmem:[%s195 + $0x34] sm:$0xf]
        %v1261 = vld [vmem:[%s195 + $0x38] sm:$0xf]
        %v1262 = vld [vmem:[%s195 + $0x3c] sm:$0xf]
        %v1263 = vld [vmem:[%s195 + $0x40] sm:$0xf]
        %v1264 = vld [vmem:[%s195 + $0x44] sm:$0xf]
        %v1265 = vld [vmem:[%s195 + $0x48] sm:$0xf]
        %v1266 = vld [vmem:[%s195 + $0x4c] sm:$0xf]
        %v1267 = vld [vmem:[%s195 + $0x50] sm:$0xf]
        %v1268 = vld [vmem:[%s195 + $0x54] sm:$0xf]
        %v1269 = vld [vmem:[%s195 + $0x58] sm:$0xf]
        %v1270 = vld [vmem:[%s195 + $0x5c] sm:$0xf]
        %v1271 = vld [vmem:[%s195 + $0x60] sm:$0xf]
        %v1272 = vld [vmem:[%s195 + $0x64] sm:$0xf]
        %v1273 = vld [vmem:[%s195 + $0x68] sm:$0xf]
        %v1274 = vld [vmem:[%s195 + $0x6c] sm:$0xf]
        %v1275 = vld [vmem:[%s195 + $0x70] sm:$0xf]
        %v1276 = vld [vmem:[%s195 + $0x74] sm:$0xf]
        %v1277 = vld [vmem:[%s195 + $0x78] sm:$0xf]
        %v1278 = vld [vmem:[%s195 + $0x7c] sm:$0xf]
        %v1279 = vld [vmem:[%s195 + $0x80] sm:$0xf]
        %v1280 = vld [vmem:[%s195 + $0x84] sm:$0xf]
        %v1281 = vld [vmem:[%s195 + $0x88] sm:$0xf]
        %v1282 = vld [vmem:[%s195 + $0x8c] sm:$0xf]
        %v1283 = vld [vmem:[%s195 + $0x90] sm:$0xf]
        %v1284 = vld [vmem:[%s195 + $0x94] sm:$0xf]
        %v1285 = vld [vmem:[%s195 + $0x98] sm:$0x1]
        %s1286 = scalar_lea.vmem %s199, 6
        %v1287 = vld [vmem:[%s1286] sm:$0x3]
        %v1325 = vunpack.c.l.b16 %v1249
        %v1326 = vunpack.c.l.b16 %v1250
        %v1327 = vunpack.c.l.b16 %v1251
        %v1328 = vunpack.c.l.b16 %v1252
        %v1329 = vunpack.c.l.b16 %v1253
        %v1330 = vunpack.c.l.b16 %v1254
        %v1331 = vunpack.c.l.b16 %v1255
        %v1332 = vunpack.c.l.b16 %v1256
        %v1333 = vunpack.c.l.b16 %v1257
        %v1334 = vunpack.c.l.b16 %v1258
        %v1335 = vunpack.c.l.b16 %v1259
        %v1336 = vunpack.c.l.b16 %v1260
        %v1337 = vunpack.c.l.b16 %v1261
        %v1338 = vunpack.c.l.b16 %v1262
        %v1339 = vunpack.c.l.b16 %v1263
        %v1340 = vunpack.c.l.b16 %v1264
        %v1341 = vunpack.c.l.b16 %v1265
        %v1342 = vunpack.c.l.b16 %v1266
        %v1343 = vunpack.c.l.b16 %v1267
        %v1344 = vunpack.c.l.b16 %v1268
        %v1345 = vunpack.c.l.b16 %v1269
        %v1346 = vunpack.c.l.b16 %v1270
        %v1347 = vunpack.c.l.b16 %v1271
        %v1348 = vunpack.c.l.b16 %v1272
        %v1349 = vunpack.c.l.b16 %v1273
        %v1350 = vunpack.c.l.b16 %v1274
        %v1351 = vunpack.c.l.b16 %v1275
        %v1352 = vunpack.c.l.b16 %v1276
        %v1353 = vunpack.c.l.b16 %v1277
        %v1354 = vunpack.c.l.b16 %v1278
        %v1355 = vunpack.c.l.b16 %v1279
        %v1356 = vunpack.c.l.b16 %v1280
        %v1357 = vunpack.c.l.b16 %v1281
        %v1358 = vunpack.c.l.b16 %v1282
        %v1359 = vunpack.c.l.b16 %v1283
        %v1360 = vunpack.c.l.b16 %v1284
        %v1361 = vunpack.c.l.b16 %v1285
        %v1362 = vpack.c.b16 %v1326, %v1325
        %v1363 = vpack.c.b16 %v1328, %v1327
        %v1364 = vpack.c.b16 %v1330, %v1329
        %v1365 = vpack.c.b16 %v1332, %v1331
        %v1366 = vpack.c.b16 %v1334, %v1333
        %v1367 = vpack.c.b16 %v1336, %v1335
        %v1368 = vpack.c.b16 %v1338, %v1337
        %v1369 = vpack.c.b16 %v1340, %v1339
        %v1370 = vpack.c.b16 %v1342, %v1341
        %v1371 = vpack.c.b16 %v1344, %v1343
        %v1372 = vpack.c.b16 %v1346, %v1345
        %v1373 = vpack.c.b16 %v1348, %v1347
        %v1374 = vpack.c.b16 %v1350, %v1349
        %v1375 = vpack.c.b16 %v1352, %v1351
        %v1376 = vpack.c.b16 %v1354, %v1353
        %v1377 = vpack.c.b16 %v1356, %v1355
        %v1378 = vpack.c.b16 %v1358, %v1357
        %v1379 = vpack.c.b16 %v1360, %v1359
        %v1380 = vpack.c.b16 %v1361, %v1361
        %v1381 = vrot.slane %v1362, 1
        %v1382 = vrot.slane %v1363, 1
        %v1383 = vsel %vm941, %v1381, %v1382
        %v1384 = vrot.slane %v1364, 1
        %v1385 = vsel %vm941, %v1382, %v1384
        %v1386 = vrot.slane %v1365, 1
        %v1387 = vsel %vm941, %v1384, %v1386
        %v1388 = vrot.slane %v1366, 1
        %v1389 = vsel %vm941, %v1386, %v1388
        %v1390 = vrot.slane %v1367, 1
        %v1391 = vsel %vm941, %v1388, %v1390
        %v1392 = vrot.slane %v1368, 1
        %v1393 = vsel %vm941, %v1390, %v1392
        %v1394 = vrot.slane %v1369, 1
        %v1395 = vsel %vm941, %v1392, %v1394
        %v1396 = vrot.slane %v1370, 1
        %v1397 = vsel %vm941, %v1394, %v1396
        %v1398 = vrot.slane %v1371, 1
        %v1399 = vsel %vm941, %v1396, %v1398
        %v1400 = vrot.slane %v1372, 1
        %v1401 = vsel %vm941, %v1398, %v1400
        %v1402 = vrot.slane %v1373, 1
        %v1403 = vsel %vm941, %v1400, %v1402
        %v1404 = vrot.slane %v1374, 1
        %v1405 = vsel %vm941, %v1402, %v1404
        %v1406 = vrot.slane %v1375, 1
        %v1407 = vsel %vm941, %v1404, %v1406
        %v1408 = vrot.slane %v1376, 1
        %v1409 = vsel %vm941, %v1406, %v1408
        %v1410 = vrot.slane %v1377, 1
        %v1411 = vsel %vm941, %v1408, %v1410
        %v1412 = vrot.slane %v1378, 1
        %v1413 = vsel %vm941, %v1410, %v1412
        %v1414 = vrot.slane %v1379, 1
        %v1415 = vsel %vm941, %v1412, %v1414
        %v1416 = vrot.slane %v1380, 1
        %v1417 = vsel %vm941, %v1414, %v1416
        %v1419 = vsel %vm483, %v1383, 0
        %v1422 = vsel %vm483, %v1385, 0
        %v1425 = vsel %vm483, %v1387, 0
        %v1428 = vsel %vm483, %v1389, 0
        %v1431 = vsel %vm483, %v1391, 0
        %v1434 = vsel %vm483, %v1393, 0
        %v1437 = vsel %vm483, %v1395, 0
        %v1440 = vsel %vm483, %v1397, 0
        %v1443 = vsel %vm483, %v1399, 0
        %v1446 = vsel %vm483, %v1401, 0
        %v1449 = vsel %vm483, %v1403, 0
        %v1452 = vsel %vm483, %v1405, 0
        %v1455 = vsel %vm483, %v1407, 0
        %v1458 = vsel %vm483, %v1409, 0
        %v1461 = vsel %vm483, %v1411, 0
        %v1464 = vsel %vm483, %v1413, 0
        %v1467 = vsel %vm483, %v1415, 0
        %v1470 = vsel %vm483, %v1417, 0
        %v1473 = vsel %vm538, %v1287, 0
        %1475 = vmatprep.subr.bf16.mxu0 0
        %1476 = vmatpush1.bf16.msra.mxu0 0
        %1477 = vmatprep.subr.bf16.mxu0 0
        %1478 = vmatpush1.bf16.msra.mxu0 0
        %1479 = vmatprep.subr.bf16.mxu0 0
        %1480 = vmatpush1.bf16.msra.mxu0 0
        %1481 = vmatprep.subr.bf16.mxu0 0
        %1482 = vmatpush1.bf16.msra.mxu0 0
        %1483 = vmatprep.subr.bf16.mxu0 0
        %1484 = vmatpush1.bf16.msra.mxu0 0
        %1485 = vmatprep.subr.bf16.mxu0 0
        %1486 = vmatpush1.bf16.msra.mxu0 0
        %1487 = vmatprep.subr.bf16.mxu0 0
        %1488 = vmatpush1.bf16.msra.mxu0 0
        %1489 = vmatprep.subr.bf16.mxu0 0
        %1490 = vmatpush1.bf16.msra.mxu0 %v1473
        %1491 = vmatprep.subr.bf16.mxu0 0
        %1492 = vmatpush2.bf16.msra.mxu0 0
        %1493 = vmatprep.subr.bf16.mxu0 0
        %1494 = vmatpush2.bf16.msra.mxu0 0
        %1495 = vmatprep.subr.bf16.mxu0 0
        %1496 = vmatpush2.bf16.msra.mxu0 0
        %1497 = vmatprep.subr.bf16.mxu0 0
        %1498 = vmatpush2.bf16.msra.mxu0 0
        %1499 = vmatprep.subr.bf16.mxu0 0
        %1500 = vmatpush2.bf16.msra.mxu0 0
        %1501 = vmatprep.subr.bf16.mxu0 0
        %1502 = vmatpush2.bf16.msra.mxu0 0
        %1503 = vmatprep.subr.bf16.mxu0 0
        %1504 = vmatpush2.bf16.msra.mxu0 0
        %1505 = vmatprep.subr.bf16.mxu0 0
        %1506 = vmatpush2.bf16.msra.mxu0 0
        %1507 = vmatprep.mubr.bf16.mxu0 0
        %1508 = vmatmul.mubr.bf16.gmra.mxu0 %v1419
        %v1509 = vpop.f32.mrf.mxu0
        %v1510 = vadd.f32 0.0, %v1509
        %v1511 = vpop.f32.mrf.mxu0
        %v1512 = vpop.f32.mrf.mxu0
        %v1513 = vadd.f32 0.0, %v1512
        %v1514 = vpop.f32.mrf.mxu0
        %1515 = vmatprep.mubr.bf16.mxu0 0
        %1516 = vmatmul.mubr.bf16.gmra.mxu0 %v1422
        %v1517 = vpop.f32.mrf.mxu0
        %v1518 = vadd.f32 0.0, %v1517
        %v1519 = vpop.f32.mrf.mxu0
        %v1520 = vpop.f32.mrf.mxu0
        %v1521 = vadd.f32 0.0, %v1520
        %v1522 = vpop.f32.mrf.mxu0
        %1523 = vmatprep.mubr.bf16.mxu0 0
        %1524 = vmatmul.mubr.bf16.gmra.mxu0 %v1425
        %v1525 = vpop.f32.mrf.mxu0
        %v1526 = vadd.f32 0.0, %v1525
        %v1527 = vpop.f32.mrf.mxu0
        %v1528 = vpop.f32.mrf.mxu0
        %v1529 = vadd.f32 0.0, %v1528
        %v1530 = vpop.f32.mrf.mxu0
        %1531 = vmatprep.mubr.bf16.mxu0 0
        %1532 = vmatmul.mubr.bf16.gmra.mxu0 %v1428
        %v1533 = vpop.f32.mrf.mxu0
        %v1534 = vadd.f32 0.0, %v1533
        %v1535 = vpop.f32.mrf.mxu0
        %v1536 = vpop.f32.mrf.mxu0
        %v1537 = vadd.f32 0.0, %v1536
        %v1538 = vpop.f32.mrf.mxu0
        %1539 = vmatprep.mubr.bf16.mxu0 0
        %1540 = vmatmul.mubr.bf16.gmra.mxu0 %v1431
        %v1541 = vpop.f32.mrf.mxu0
        %v1542 = vadd.f32 0.0, %v1541
        %v1543 = vpop.f32.mrf.mxu0
        %v1544 = vpop.f32.mrf.mxu0
        %v1545 = vadd.f32 0.0, %v1544
        %v1546 = vpop.f32.mrf.mxu0
        %1547 = vmatprep.mubr.bf16.mxu0 0
        %1548 = vmatmul.mubr.bf16.gmra.mxu0 %v1434
        %v1549 = vpop.f32.mrf.mxu0
        %v1550 = vadd.f32 0.0, %v1549
        %v1551 = vpop.f32.mrf.mxu0
        %v1552 = vpop.f32.mrf.mxu0
        %v1553 = vadd.f32 0.0, %v1552
        %v1554 = vpop.f32.mrf.mxu0
        %1555 = vmatprep.mubr.bf16.mxu0 0
        %1556 = vmatmul.mubr.bf16.gmra.mxu0 %v1437
        %v1557 = vpop.f32.mrf.mxu0
        %v1558 = vadd.f32 0.0, %v1557
        %v1559 = vpop.f32.mrf.mxu0
        %v1560 = vpop.f32.mrf.mxu0
        %v1561 = vadd.f32 0.0, %v1560
        %v1562 = vpop.f32.mrf.mxu0
        %1563 = vmatprep.mubr.bf16.mxu0 0
        %1564 = vmatmul.mubr.bf16.gmra.mxu0 %v1440
        %v1565 = vpop.f32.mrf.mxu0
        %v1566 = vadd.f32 0.0, %v1565
        %v1567 = vpop.f32.mrf.mxu0
        %v1568 = vpop.f32.mrf.mxu0
        %v1569 = vadd.f32 0.0, %v1568
        %v1570 = vpop.f32.mrf.mxu0
        %1571 = vmatprep.mubr.bf16.mxu0 0
        %1572 = vmatmul.mubr.bf16.gmra.mxu0 %v1443
        %v1573 = vpop.f32.mrf.mxu0
        %v1574 = vadd.f32 0.0, %v1573
        %v1575 = vpop.f32.mrf.mxu0
        %v1576 = vpop.f32.mrf.mxu0
        %v1577 = vadd.f32 0.0, %v1576
        %v1578 = vpop.f32.mrf.mxu0
        %1579 = vmatprep.mubr.bf16.mxu0 0
        %1580 = vmatmul.mubr.bf16.gmra.mxu0 %v1446
        %v1581 = vpop.f32.mrf.mxu0
        %v1582 = vadd.f32 0.0, %v1581
        %v1583 = vpop.f32.mrf.mxu0
        %v1584 = vpop.f32.mrf.mxu0
        %v1585 = vadd.f32 0.0, %v1584
        %v1586 = vpop.f32.mrf.mxu0
        %1587 = vmatprep.mubr.bf16.mxu0 0
        %1588 = vmatmul.mubr.bf16.gmra.mxu0 %v1449
        %v1589 = vpop.f32.mrf.mxu0
        %v1590 = vadd.f32 0.0, %v1589
        %v1591 = vpop.f32.mrf.mxu0
        %v1592 = vpop.f32.mrf.mxu0
        %v1593 = vadd.f32 0.0, %v1592
        %v1594 = vpop.f32.mrf.mxu0
        %1595 = vmatprep.mubr.bf16.mxu0 0
        %1596 = vmatmul.mubr.bf16.gmra.mxu0 %v1452
        %v1597 = vpop.f32.mrf.mxu0
        %v1598 = vadd.f32 0.0, %v1597
        %v1599 = vpop.f32.mrf.mxu0
        %v1600 = vpop.f32.mrf.mxu0
        %v1601 = vadd.f32 0.0, %v1600
        %v1602 = vpop.f32.mrf.mxu0
        %1603 = vmatprep.mubr.bf16.mxu0 0
        %1604 = vmatmul.mubr.bf16.gmra.mxu0 %v1455
        %v1605 = vpop.f32.mrf.mxu0
        %v1606 = vadd.f32 0.0, %v1605
        %v1607 = vpop.f32.mrf.mxu0
        %v1608 = vpop.f32.mrf.mxu0
        %v1609 = vadd.f32 0.0, %v1608
        %v1610 = vpop.f32.mrf.mxu0
        %1611 = vmatprep.mubr.bf16.mxu0 0
        %1612 = vmatmul.mubr.bf16.gmra.mxu0 %v1458
        %v1613 = vpop.f32.mrf.mxu0
        %v1614 = vadd.f32 0.0, %v1613
        %v1615 = vpop.f32.mrf.mxu0
        %v1616 = vpop.f32.mrf.mxu0
        %v1617 = vadd.f32 0.0, %v1616
        %v1618 = vpop.f32.mrf.mxu0
        %1619 = vmatprep.mubr.bf16.mxu0 0
        %1620 = vmatmul.mubr.bf16.gmra.mxu0 %v1461
        %v1621 = vpop.f32.mrf.mxu0
        %v1622 = vadd.f32 0.0, %v1621
        %v1623 = vpop.f32.mrf.mxu0
        %v1624 = vpop.f32.mrf.mxu0
        %v1625 = vadd.f32 0.0, %v1624
        %v1626 = vpop.f32.mrf.mxu0
        %1627 = vmatprep.mubr.bf16.mxu0 0
        %1628 = vmatmul.mubr.bf16.gmra.mxu0 %v1464
        %v1629 = vpop.f32.mrf.mxu0
        %v1630 = vadd.f32 0.0, %v1629
        %v1631 = vpop.f32.mrf.mxu0
        %v1632 = vpop.f32.mrf.mxu0
        %v1633 = vadd.f32 0.0, %v1632
        %v1634 = vpop.f32.mrf.mxu0
        %1635 = vmatprep.mubr.bf16.mxu0 0
        %1636 = vmatmul.mubr.bf16.gmra.mxu0 %v1467
        %v1637 = vpop.f32.mrf.mxu0
        %v1638 = vadd.f32 0.0, %v1637
        %v1639 = vpop.f32.mrf.mxu0
        %v1640 = vpop.f32.mrf.mxu0
        %v1641 = vadd.f32 0.0, %v1640
        %v1642 = vpop.f32.mrf.mxu0
        %1643 = vmatprep.mubr.bf16.mxu0 0
        %1644 = vmatmul.mubr.bf16.gmra.mxu0 %v1470
        %v1645 = vpop.f32.mrf.mxu0
        %v1646 = vadd.f32 0.0, %v1645
        %v1647 = vpop.f32.mrf.mxu0
        %v1648 = vpop.f32.mrf.mxu0
        %v1649 = vadd.f32 0.0, %v1648
        %v1650 = vpop.f32.mrf.mxu0
        %1651 = vdwg.mxu0
        %v1652 = vadd.f32 %v1213, %v1510
        %v1653 = vadd.f32 %v1214, %v1513
        %v1654 = vadd.f32 %v1215, %v1518
        %v1655 = vadd.f32 %v1216, %v1521
        %v1656 = vadd.f32 %v1217, %v1526
        %v1657 = vadd.f32 %v1218, %v1529
        %v1658 = vadd.f32 %v1219, %v1534
        %v1659 = vadd.f32 %v1220, %v1537
        %v1660 = vadd.f32 %v1221, %v1542
        %v1661 = vadd.f32 %v1222, %v1545
        %v1662 = vadd.f32 %v1223, %v1550
        %v1663 = vadd.f32 %v1224, %v1553
        %v1664 = vadd.f32 %v1225, %v1558
        %v1665 = vadd.f32 %v1226, %v1561
        %v1666 = vadd.f32 %v1227, %v1566
        %v1667 = vadd.f32 %v1228, %v1569
        %v1668 = vadd.f32 %v1229, %v1574
        %v1669 = vadd.f32 %v1230, %v1577
        %v1670 = vadd.f32 %v1231, %v1582
        %v1671 = vadd.f32 %v1232, %v1585
        %v1672 = vadd.f32 %v1233, %v1590
        %v1673 = vadd.f32 %v1234, %v1593
        %v1674 = vadd.f32 %v1235, %v1598
        %v1675 = vadd.f32 %v1236, %v1601
        %v1676 = vadd.f32 %v1237, %v1606
        %v1677 = vadd.f32 %v1238, %v1609
        %v1678 = vadd.f32 %v1239, %v1614
        %v1679 = vadd.f32 %v1240, %v1617
        %v1680 = vadd.f32 %v1241, %v1622
        %v1681 = vadd.f32 %v1242, %v1625
        %v1682 = vadd.f32 %v1243, %v1630
        %v1683 = vadd.f32 %v1244, %v1633
        %v1684 = vadd.f32 %v1245, %v1638
        %v1685 = vadd.f32 %v1246, %v1641
        %v1686 = vadd.f32 %v1247, %v1646
        %v1687 = vadd.f32 %v1248, %v1649
        %v1688 = vld [vmem:[%s195 + $0x98] sm:$0x3]
        %s1689 = scalar_lea.vmem %s199, 8
        %v1690 = vld [vmem:[%s1689] sm:$0x3]
        %v1692 = vunpack.c.l.b16 %v1688
        %v1693 = vpack.c.b16 %v1692, %v1692
        %vm1694 = vsmask.f32 6400
        %v1696 = vshrl.u32 %v1362, 16
        %v1698 = vrot.slane %v1696, 1
        %v1699 = vshll.u32 %v1362, 16
        %v1701 = vrot.slane %v1699, 2
        %v1702 = vor.u32 %v1698, %v1701
        %v1704 = vshrl.u32 %v1363, 16
        %v1706 = vrot.slane %v1704, 1
        %v1707 = vshll.u32 %v1363, 16
        %v1709 = vrot.slane %v1707, 2
        %v1710 = vor.u32 %v1706, %v1709
        %v1711 = vsel %vm1694, %v1702, %v1710
        %v1713 = vshrl.u32 %v1364, 16
        %v1715 = vrot.slane %v1713, 1
        %v1716 = vshll.u32 %v1364, 16
        %v1718 = vrot.slane %v1716, 2
        %v1719 = vor.u32 %v1715, %v1718
        %v1720 = vsel %vm1694, %v1710, %v1719
        %v1722 = vshrl.u32 %v1365, 16
        %v1724 = vrot.slane %v1722, 1
        %v1725 = vshll.u32 %v1365, 16
        %v1727 = vrot.slane %v1725, 2
        %v1728 = vor.u32 %v1724, %v1727
        %v1729 = vsel %vm1694, %v1719, %v1728
        %v1731 = vshrl.u32 %v1366, 16
        %v1733 = vrot.slane %v1731, 1
        %v1734 = vshll.u32 %v1366, 16
        %v1736 = vrot.slane %v1734, 2
        %v1737 = vor.u32 %v1733, %v1736
        %v1738 = vsel %vm1694, %v1728, %v1737
        %v1740 = vshrl.u32 %v1367, 16
        %v1742 = vrot.slane %v1740, 1
        %v1743 = vshll.u32 %v1367, 16
        %v1745 = vrot.slane %v1743, 2
        %v1746 = vor.u32 %v1742, %v1745
        %v1747 = vsel %vm1694, %v1737, %v1746
        %v1749 = vshrl.u32 %v1368, 16
        %v1751 = vrot.slane %v1749, 1
        %v1752 = vshll.u32 %v1368, 16
        %v1754 = vrot.slane %v1752, 2
        %v1755 = vor.u32 %v1751, %v1754
        %v1756 = vsel %vm1694, %v1746, %v1755
        %v1758 = vshrl.u32 %v1369, 16
        %v1760 = vrot.slane %v1758, 1
        %v1761 = vshll.u32 %v1369, 16
        %v1763 = vrot.slane %v1761, 2
        %v1764 = vor.u32 %v1760, %v1763
        %v1765 = vsel %vm1694, %v1755, %v1764
        %v1767 = vshrl.u32 %v1370, 16
        %v1769 = vrot.slane %v1767, 1
        %v1770 = vshll.u32 %v1370, 16
        %v1772 = vrot.slane %v1770, 2
        %v1773 = vor.u32 %v1769, %v1772
        %v1774 = vsel %vm1694, %v1764, %v1773
        %v1776 = vshrl.u32 %v1371, 16
        %v1778 = vrot.slane %v1776, 1
        %v1779 = vshll.u32 %v1371, 16
        %v1781 = vrot.slane %v1779, 2
        %v1782 = vor.u32 %v1778, %v1781
        %v1783 = vsel %vm1694, %v1773, %v1782
        %v1785 = vshrl.u32 %v1372, 16
        %v1787 = vrot.slane %v1785, 1
        %v1788 = vshll.u32 %v1372, 16
        %v1790 = vrot.slane %v1788, 2
        %v1791 = vor.u32 %v1787, %v1790
        %v1792 = vsel %vm1694, %v1782, %v1791
        %v1794 = vshrl.u32 %v1373, 16
        %v1796 = vrot.slane %v1794, 1
        %v1797 = vshll.u32 %v1373, 16
        %v1799 = vrot.slane %v1797, 2
        %v1800 = vor.u32 %v1796, %v1799
        %v1801 = vsel %vm1694, %v1791, %v1800
        %v1803 = vshrl.u32 %v1374, 16
        %v1805 = vrot.slane %v1803, 1
        %v1806 = vshll.u32 %v1374, 16
        %v1808 = vrot.slane %v1806, 2
        %v1809 = vor.u32 %v1805, %v1808
        %v1810 = vsel %vm1694, %v1800, %v1809
        %v1812 = vshrl.u32 %v1375, 16
        %v1814 = vrot.slane %v1812, 1
        %v1815 = vshll.u32 %v1375, 16
        %v1817 = vrot.slane %v1815, 2
        %v1818 = vor.u32 %v1814, %v1817
        %v1819 = vsel %vm1694, %v1809, %v1818
        %v1821 = vshrl.u32 %v1376, 16
        %v1823 = vrot.slane %v1821, 1
        %v1824 = vshll.u32 %v1376, 16
        %v1826 = vrot.slane %v1824, 2
        %v1827 = vor.u32 %v1823, %v1826
        %v1828 = vsel %vm1694, %v1818, %v1827
        %v1830 = vshrl.u32 %v1377, 16
        %v1832 = vrot.slane %v1830, 1
        %v1833 = vshll.u32 %v1377, 16
        %v1835 = vrot.slane %v1833, 2
        %v1836 = vor.u32 %v1832, %v1835
        %v1837 = vsel %vm1694, %v1827, %v1836
        %v1839 = vshrl.u32 %v1378, 16
        %v1841 = vrot.slane %v1839, 1
        %v1842 = vshll.u32 %v1378, 16
        %v1844 = vrot.slane %v1842, 2
        %v1845 = vor.u32 %v1841, %v1844
        %v1846 = vsel %vm1694, %v1836, %v1845
        %v1848 = vshrl.u32 %v1379, 16
        %v1850 = vrot.slane %v1848, 1
        %v1851 = vshll.u32 %v1379, 16
        %v1853 = vrot.slane %v1851, 2
        %v1854 = vor.u32 %v1850, %v1853
        %v1855 = vsel %vm1694, %v1845, %v1854
        %v1857 = vshrl.u32 %v1693, 16
        %v1859 = vrot.slane %v1857, 1
        %v1860 = vshll.u32 %v1693, 16
        %v1862 = vrot.slane %v1860, 2
        %v1863 = vor.u32 %v1859, %v1862
        %v1864 = vsel %vm1694, %v1854, %v1863
        %v1866 = vsel %vm483, %v1711, 0
        %v1869 = vsel %vm483, %v1720, 0
        %v1872 = vsel %vm483, %v1729, 0
        %v1875 = vsel %vm483, %v1738, 0
        %v1878 = vsel %vm483, %v1747, 0
        %v1881 = vsel %vm483, %v1756, 0
        %v1884 = vsel %vm483, %v1765, 0
        %v1887 = vsel %vm483, %v1774, 0
        %v1890 = vsel %vm483, %v1783, 0
        %v1893 = vsel %vm483, %v1792, 0
        %v1896 = vsel %vm483, %v1801, 0
        %v1899 = vsel %vm483, %v1810, 0
        %v1902 = vsel %vm483, %v1819, 0
        %v1905 = vsel %vm483, %v1828, 0
        %v1908 = vsel %vm483, %v1837, 0
        %v1911 = vsel %vm483, %v1846, 0
        %v1914 = vsel %vm483, %v1855, 0
        %v1917 = vsel %vm483, %v1864, 0
        %v1920 = vsel %vm538, %v1690, 0
        %1922 = vmatprep.subr.bf16.mxu0 0
        %1923 = vmatpush1.bf16.msra.mxu0 0
        %1924 = vmatprep.subr.bf16.mxu0 0
        %1925 = vmatpush1.bf16.msra.mxu0 0
        %1926 = vmatprep.subr.bf16.mxu0 0
        %1927 = vmatpush1.bf16.msra.mxu0 0
        %1928 = vmatprep.subr.bf16.mxu0 0
        %1929 = vmatpush1.bf16.msra.mxu0 0
        %1930 = vmatprep.subr.bf16.mxu0 0
        %1931 = vmatpush1.bf16.msra.mxu0 0
        %1932 = vmatprep.subr.bf16.mxu0 0
        %1933 = vmatpush1.bf16.msra.mxu0 0
        %1934 = vmatprep.subr.bf16.mxu0 0
        %1935 = vmatpush1.bf16.msra.mxu0 0
        %1936 = vmatprep.subr.bf16.mxu0 0
        %1937 = vmatpush1.bf16.msra.mxu0 %v1920
        %1938 = vmatprep.subr.bf16.mxu0 0
        %1939 = vmatpush2.bf16.msra.mxu0 0
        %1940 = vmatprep.subr.bf16.mxu0 0
        %1941 = vmatpush2.bf16.msra.mxu0 0
        %1942 = vmatprep.subr.bf16.mxu0 0
        %1943 = vmatpush2.bf16.msra.mxu0 0
        %1944 = vmatprep.subr.bf16.mxu0 0
        %1945 = vmatpush2.bf16.msra.mxu0 0
        %1946 = vmatprep.subr.bf16.mxu0 0
        %1947 = vmatpush2.bf16.msra.mxu0 0
        %1948 = vmatprep.subr.bf16.mxu0 0
        %1949 = vmatpush2.bf16.msra.mxu0 0
        %1950 = vmatprep.subr.bf16.mxu0 0
        %1951 = vmatpush2.bf16.msra.mxu0 0
        %1952 = vmatprep.subr.bf16.mxu0 0
        %1953 = vmatpush2.bf16.msra.mxu0 0
        %1954 = vmatprep.mubr.bf16.mxu0 0
        %1955 = vmatmul.mubr.bf16.gmra.mxu0 %v1866
        %v1956 = vpop.f32.mrf.mxu0
        %v1957 = vadd.f32 0.0, %v1956
        %v1958 = vpop.f32.mrf.mxu0
        %v1959 = vpop.f32.mrf.mxu0
        %v1960 = vadd.f32 0.0, %v1959
        %v1961 = vpop.f32.mrf.mxu0
        %1962 = vmatprep.mubr.bf16.mxu0 0
        %1963 = vmatmul.mubr.bf16.gmra.mxu0 %v1869
        %v1964 = vpop.f32.mrf.mxu0
        %v1965 = vadd.f32 0.0, %v1964
        %v1966 = vpop.f32.mrf.mxu0
        %v1967 = vpop.f32.mrf.mxu0
        %v1968 = vadd.f32 0.0, %v1967
        %v1969 = vpop.f32.mrf.mxu0
        %1970 = vmatprep.mubr.bf16.mxu0 0
        %1971 = vmatmul.mubr.bf16.gmra.mxu0 %v1872
        %v1972 = vpop.f32.mrf.mxu0
        %v1973 = vadd.f32 0.0, %v1972
        %v1974 = vpop.f32.mrf.mxu0
        %v1975 = vpop.f32.mrf.mxu0
        %v1976 = vadd.f32 0.0, %v1975
        %v1977 = vpop.f32.mrf.mxu0
        %1978 = vmatprep.mubr.bf16.mxu0 0
        %1979 = vmatmul.mubr.bf16.gmra.mxu0 %v1875
        %v1980 = vpop.f32.mrf.mxu0
        %v1981 = vadd.f32 0.0, %v1980
        %v1982 = vpop.f32.mrf.mxu0
        %v1983 = vpop.f32.mrf.mxu0
        %v1984 = vadd.f32 0.0, %v1983
        %v1985 = vpop.f32.mrf.mxu0
        %1986 = vmatprep.mubr.bf16.mxu0 0
        %1987 = vmatmul.mubr.bf16.gmra.mxu0 %v1878
        %v1988 = vpop.f32.mrf.mxu0
        %v1989 = vadd.f32 0.0, %v1988
        %v1990 = vpop.f32.mrf.mxu0
        %v1991 = vpop.f32.mrf.mxu0
        %v1992 = vadd.f32 0.0, %v1991
        %v1993 = vpop.f32.mrf.mxu0
        %1994 = vmatprep.mubr.bf16.mxu0 0
        %1995 = vmatmul.mubr.bf16.gmra.mxu0 %v1881
        %v1996 = vpop.f32.mrf.mxu0
        %v1997 = vadd.f32 0.0, %v1996
        %v1998 = vpop.f32.mrf.mxu0
        %v1999 = vpop.f32.mrf.mxu0
        %v2000 = vadd.f32 0.0, %v1999
        %v2001 = vpop.f32.mrf.mxu0
        %2002 = vmatprep.mubr.bf16.mxu0 0
        %2003 = vmatmul.mubr.bf16.gmra.mxu0 %v1884
        %v2004 = vpop.f32.mrf.mxu0
        %v2005 = vadd.f32 0.0, %v2004
        %v2006 = vpop.f32.mrf.mxu0
        %v2007 = vpop.f32.mrf.mxu0
        %v2008 = vadd.f32 0.0, %v2007
        %v2009 = vpop.f32.mrf.mxu0
        %2010 = vmatprep.mubr.bf16.mxu0 0
        %2011 = vmatmul.mubr.bf16.gmra.mxu0 %v1887
        %v2012 = vpop.f32.mrf.mxu0
        %v2013 = vadd.f32 0.0, %v2012
        %v2014 = vpop.f32.mrf.mxu0
        %v2015 = vpop.f32.mrf.mxu0
        %v2016 = vadd.f32 0.0, %v2015
        %v2017 = vpop.f32.mrf.mxu0
        %2018 = vmatprep.mubr.bf16.mxu0 0
        %2019 = vmatmul.mubr.bf16.gmra.mxu0 %v1890
        %v2020 = vpop.f32.mrf.mxu0
        %v2021 = vadd.f32 0.0, %v2020
        %v2022 = vpop.f32.mrf.mxu0
        %v2023 = vpop.f32.mrf.mxu0
        %v2024 = vadd.f32 0.0, %v2023
        %v2025 = vpop.f32.mrf.mxu0
        %2026 = vmatprep.mubr.bf16.mxu0 0
        %2027 = vmatmul.mubr.bf16.gmra.mxu0 %v1893
        %v2028 = vpop.f32.mrf.mxu0
        %v2029 = vadd.f32 0.0, %v2028
        %v2030 = vpop.f32.mrf.mxu0
        %v2031 = vpop.f32.mrf.mxu0
        %v2032 = vadd.f32 0.0, %v2031
        %v2033 = vpop.f32.mrf.mxu0
        %2034 = vmatprep.mubr.bf16.mxu0 0
        %2035 = vmatmul.mubr.bf16.gmra.mxu0 %v1896
        %v2036 = vpop.f32.mrf.mxu0
        %v2037 = vadd.f32 0.0, %v2036
        %v2038 = vpop.f32.mrf.mxu0
        %v2039 = vpop.f32.mrf.mxu0
        %v2040 = vadd.f32 0.0, %v2039
        %v2041 = vpop.f32.mrf.mxu0
        %2042 = vmatprep.mubr.bf16.mxu0 0
        %2043 = vmatmul.mubr.bf16.gmra.mxu0 %v1899
        %v2044 = vpop.f32.mrf.mxu0
        %v2045 = vadd.f32 0.0, %v2044
        %v2046 = vpop.f32.mrf.mxu0
        %v2047 = vpop.f32.mrf.mxu0
        %v2048 = vadd.f32 0.0, %v2047
        %v2049 = vpop.f32.mrf.mxu0
        %2050 = vmatprep.mubr.bf16.mxu0 0
        %2051 = vmatmul.mubr.bf16.gmra.mxu0 %v1902
        %v2052 = vpop.f32.mrf.mxu0
        %v2053 = vadd.f32 0.0, %v2052
        %v2054 = vpop.f32.mrf.mxu0
        %v2055 = vpop.f32.mrf.mxu0
        %v2056 = vadd.f32 0.0, %v2055
        %v2057 = vpop.f32.mrf.mxu0
        %2058 = vmatprep.mubr.bf16.mxu0 0
        %2059 = vmatmul.mubr.bf16.gmra.mxu0 %v1905
        %v2060 = vpop.f32.mrf.mxu0
        %v2061 = vadd.f32 0.0, %v2060
        %v2062 = vpop.f32.mrf.mxu0
        %v2063 = vpop.f32.mrf.mxu0
        %v2064 = vadd.f32 0.0, %v2063
        %v2065 = vpop.f32.mrf.mxu0
        %2066 = vmatprep.mubr.bf16.mxu0 0
        %2067 = vmatmul.mubr.bf16.gmra.mxu0 %v1908
        %v2068 = vpop.f32.mrf.mxu0
        %v2069 = vadd.f32 0.0, %v2068
        %v2070 = vpop.f32.mrf.mxu0
        %v2071 = vpop.f32.mrf.mxu0
        %v2072 = vadd.f32 0.0, %v2071
        %v2073 = vpop.f32.mrf.mxu0
        %2074 = vmatprep.mubr.bf16.mxu0 0
        %2075 = vmatmul.mubr.bf16.gmra.mxu0 %v1911
        %v2076 = vpop.f32.mrf.mxu0
        %v2077 = vadd.f32 0.0, %v2076
        %v2078 = vpop.f32.mrf.mxu0
        %v2079 = vpop.f32.mrf.mxu0
        %v2080 = vadd.f32 0.0, %v2079
        %v2081 = vpop.f32.mrf.mxu0
        %2082 = vmatprep.mubr.bf16.mxu0 0
        %2083 = vmatmul.mubr.bf16.gmra.mxu0 %v1914
        %v2084 = vpop.f32.mrf.mxu0
        %v2085 = vadd.f32 0.0, %v2084
        %v2086 = vpop.f32.mrf.mxu0
        %v2087 = vpop.f32.mrf.mxu0
        %v2088 = vadd.f32 0.0, %v2087
        %v2089 = vpop.f32.mrf.mxu0
        %2090 = vmatprep.mubr.bf16.mxu0 0
        %2091 = vmatmul.mubr.bf16.gmra.mxu0 %v1917
        %v2092 = vpop.f32.mrf.mxu0
        %v2093 = vadd.f32 0.0, %v2092
        %v2094 = vpop.f32.mrf.mxu0
        %v2095 = vpop.f32.mrf.mxu0
        %v2096 = vadd.f32 0.0, %v2095
        %v2097 = vpop.f32.mrf.mxu0
        %2098 = vdwg.mxu0
        %v2099 = vadd.f32 %v1652, %v1957
        %v2100 = vadd.f32 %v1653, %v1960
        %v2101 = vadd.f32 %v1654, %v1965
        %v2102 = vadd.f32 %v1655, %v1968
        %v2103 = vadd.f32 %v1656, %v1973
        %v2104 = vadd.f32 %v1657, %v1976
        %v2105 = vadd.f32 %v1658, %v1981
        %v2106 = vadd.f32 %v1659, %v1984
        %v2107 = vadd.f32 %v1660, %v1989
        %v2108 = vadd.f32 %v1661, %v1992
        %v2109 = vadd.f32 %v1662, %v1997
        %v2110 = vadd.f32 %v1663, %v2000
        %v2111 = vadd.f32 %v1664, %v2005
        %v2112 = vadd.f32 %v1665, %v2008
        %v2113 = vadd.f32 %v1666, %v2013
        %v2114 = vadd.f32 %v1667, %v2016
        %v2115 = vadd.f32 %v1668, %v2021
        %v2116 = vadd.f32 %v1669, %v2024
        %v2117 = vadd.f32 %v1670, %v2029
        %v2118 = vadd.f32 %v1671, %v2032
        %v2119 = vadd.f32 %v1672, %v2037
        %v2120 = vadd.f32 %v1673, %v2040
        %v2121 = vadd.f32 %v1674, %v2045
        %v2122 = vadd.f32 %v1675, %v2048
        %v2123 = vadd.f32 %v1676, %v2053
        %v2124 = vadd.f32 %v1677, %v2056
        %v2125 = vadd.f32 %v1678, %v2061
        %v2126 = vadd.f32 %v1679, %v2064
        %v2127 = vadd.f32 %v1680, %v2069
        %v2128 = vadd.f32 %v1681, %v2072
        %v2129 = vadd.f32 %v1682, %v2077
        %v2130 = vadd.f32 %v1683, %v2080
        %v2131 = vadd.f32 %v1684, %v2085
        %v2132 = vadd.f32 %v1685, %v2088
        %v2133 = vadd.f32 %v1686, %v2093
        %v2134 = vadd.f32 %v1687, %v2096
        %v2135 = vld [vmem:[%s195 + $0x8] sm:$0xc]
        %s2136 = scalar_lea.vmem %s199, 10
        %v2137 = vld [vmem:[%s2136] sm:$0x3]
        %v2139 = vunpack.c.l.b16 %v2135
        %v2140 = vpack.c.b16 %v1326, %v2139
        %vm2141 = vcmask 1045504
        %v2142 = vrot.slane %v2140, 2
        %v2143 = vrot.slane %v1363, 2
        %v2144 = vsel %vm2141, %v2142, %v2143
        %v2145 = vrot.slane %v1364, 2
        %v2146 = vsel %vm2141, %v2143, %v2145
        %v2147 = vrot.slane %v1365, 2
        %v2148 = vsel %vm2141, %v2145, %v2147
        %v2149 = vrot.slane %v1366, 2
        %v2150 = vsel %vm2141, %v2147, %v2149
        %v2151 = vrot.slane %v1367, 2
        %v2152 = vsel %vm2141, %v2149, %v2151
        %v2153 = vrot.slane %v1368, 2
        %v2154 = vsel %vm2141, %v2151, %v2153
        %v2155 = vrot.slane %v1369, 2
        %v2156 = vsel %vm2141, %v2153, %v2155
        %v2157 = vrot.slane %v1370, 2
        %v2158 = vsel %vm2141, %v2155, %v2157
        %v2159 = vrot.slane %v1371, 2
        %v2160 = vsel %vm2141, %v2157, %v2159
        %v2161 = vrot.slane %v1372, 2
        %v2162 = vsel %vm2141, %v2159, %v2161
        %v2163 = vrot.slane %v1373, 2
        %v2164 = vsel %vm2141, %v2161, %v2163
        %v2165 = vrot.slane %v1374, 2
        %v2166 = vsel %vm2141, %v2163, %v2165
        %v2167 = vrot.slane %v1375, 2
        %v2168 = vsel %vm2141, %v2165, %v2167
        %v2169 = vrot.slane %v1376, 2
        %v2170 = vsel %vm2141, %v2167, %v2169
        %v2171 = vrot.slane %v1377, 2
        %v2172 = vsel %vm2141, %v2169, %v2171
        %v2173 = vrot.slane %v1378, 2
        %v2174 = vsel %vm2141, %v2171, %v2173
        %v2175 = vrot.slane %v1379, 2
        %v2176 = vsel %vm2141, %v2173, %v2175
        %v2177 = vrot.slane %v1693, 2
        %v2178 = vsel %vm2141, %v2175, %v2177
        %v2180 = vsel %vm483, %v2144, 0
        %v2183 = vsel %vm483, %v2146, 0
        %v2186 = vsel %vm483, %v2148, 0
        %v2189 = vsel %vm483, %v2150, 0
        %v2192 = vsel %vm483, %v2152, 0
        %v2195 = vsel %vm483, %v2154, 0
        %v2198 = vsel %vm483, %v2156, 0
        %v2201 = vsel %vm483, %v2158, 0
        %v2204 = vsel %vm483, %v2160, 0
        %v2207 = vsel %vm483, %v2162, 0
        %v2210 = vsel %vm483, %v2164, 0
        %v2213 = vsel %vm483, %v2166, 0
        %v2216 = vsel %vm483, %v2168, 0
        %v2219 = vsel %vm483, %v2170, 0
        %v2222 = vsel %vm483, %v2172, 0
        %v2225 = vsel %vm483, %v2174, 0
        %v2228 = vsel %vm483, %v2176, 0
        %v2231 = vsel %vm483, %v2178, 0
        %v2234 = vsel %vm538, %v2137, 0
        %2236 = vmatprep.subr.bf16.mxu0 0
        %2237 = vmatpush1.bf16.msra.mxu0 0
        %2238 = vmatprep.subr.bf16.mxu0 0
        %2239 = vmatpush1.bf16.msra.mxu0 0
        %2240 = vmatprep.subr.bf16.mxu0 0
        %2241 = vmatpush1.bf16.msra.mxu0 0
        %2242 = vmatprep.subr.bf16.mxu0 0
        %2243 = vmatpush1.bf16.msra.mxu0 0
        %2244 = vmatprep.subr.bf16.mxu0 0
        %2245 = vmatpush1.bf16.msra.mxu0 0
        %2246 = vmatprep.subr.bf16.mxu0 0
        %2247 = vmatpush1.bf16.msra.mxu0 0
        %2248 = vmatprep.subr.bf16.mxu0 0
        %2249 = vmatpush1.bf16.msra.mxu0 0
        %2250 = vmatprep.subr.bf16.mxu0 0
        %2251 = vmatpush1.bf16.msra.mxu0 %v2234
        %2252 = vmatprep.subr.bf16.mxu0 0
        %2253 = vmatpush2.bf16.msra.mxu0 0
        %2254 = vmatprep.subr.bf16.mxu0 0
        %2255 = vmatpush2.bf16.msra.mxu0 0
        %2256 = vmatprep.subr.bf16.mxu0 0
        %2257 = vmatpush2.bf16.msra.mxu0 0
        %2258 = vmatprep.subr.bf16.mxu0 0
        %2259 = vmatpush2.bf16.msra.mxu0 0
        %2260 = vmatprep.subr.bf16.mxu0 0
        %2261 = vmatpush2.bf16.msra.mxu0 0
        %2262 = vmatprep.subr.bf16.mxu0 0
        %2263 = vmatpush2.bf16.msra.mxu0 0
        %2264 = vmatprep.subr.bf16.mxu0 0
        %2265 = vmatpush2.bf16.msra.mxu0 0
        %2266 = vmatprep.subr.bf16.mxu0 0
        %2267 = vmatpush2.bf16.msra.mxu0 0
        %2268 = vmatprep.mubr.bf16.mxu0 0
        %2269 = vmatmul.mubr.bf16.gmra.mxu0 %v2180
        %v2270 = vpop.f32.mrf.mxu0
        %v2271 = vadd.f32 0.0, %v2270
        %v2272 = vpop.f32.mrf.mxu0
        %v2273 = vpop.f32.mrf.mxu0
        %v2274 = vadd.f32 0.0, %v2273
        %v2275 = vpop.f32.mrf.mxu0
        %2276 = vmatprep.mubr.bf16.mxu0 0
        %2277 = vmatmul.mubr.bf16.gmra.mxu0 %v2183
        %v2278 = vpop.f32.mrf.mxu0
        %v2279 = vadd.f32 0.0, %v2278
        %v2280 = vpop.f32.mrf.mxu0
        %v2281 = vpop.f32.mrf.mxu0
        %v2282 = vadd.f32 0.0, %v2281
        %v2283 = vpop.f32.mrf.mxu0
        %2284 = vmatprep.mubr.bf16.mxu0 0
        %2285 = vmatmul.mubr.bf16.gmra.mxu0 %v2186
        %v2286 = vpop.f32.mrf.mxu0
        %v2287 = vadd.f32 0.0, %v2286
        %v2288 = vpop.f32.mrf.mxu0
        %v2289 = vpop.f32.mrf.mxu0
        %v2290 = vadd.f32 0.0, %v2289
        %v2291 = vpop.f32.mrf.mxu0
        %2292 = vmatprep.mubr.bf16.mxu0 0
        %2293 = vmatmul.mubr.bf16.gmra.mxu0 %v2189
        %v2294 = vpop.f32.mrf.mxu0
        %v2295 = vadd.f32 0.0, %v2294
        %v2296 = vpop.f32.mrf.mxu0
        %v2297 = vpop.f32.mrf.mxu0
        %v2298 = vadd.f32 0.0, %v2297
        %v2299 = vpop.f32.mrf.mxu0
        %2300 = vmatprep.mubr.bf16.mxu0 0
        %2301 = vmatmul.mubr.bf16.gmra.mxu0 %v2192
        %v2302 = vpop.f32.mrf.mxu0
        %v2303 = vadd.f32 0.0, %v2302
        %v2304 = vpop.f32.mrf.mxu0
        %v2305 = vpop.f32.mrf.mxu0
        %v2306 = vadd.f32 0.0, %v2305
        %v2307 = vpop.f32.mrf.mxu0
        %2308 = vmatprep.mubr.bf16.mxu0 0
        %2309 = vmatmul.mubr.bf16.gmra.mxu0 %v2195
        %v2310 = vpop.f32.mrf.mxu0
        %v2311 = vadd.f32 0.0, %v2310
        %v2312 = vpop.f32.mrf.mxu0
        %v2313 = vpop.f32.mrf.mxu0
        %v2314 = vadd.f32 0.0, %v2313
        %v2315 = vpop.f32.mrf.mxu0
        %2316 = vmatprep.mubr.bf16.mxu0 0
        %2317 = vmatmul.mubr.bf16.gmra.mxu0 %v2198
        %v2318 = vpop.f32.mrf.mxu0
        %v2319 = vadd.f32 0.0, %v2318
        %v2320 = vpop.f32.mrf.mxu0
        %v2321 = vpop.f32.mrf.mxu0
        %v2322 = vadd.f32 0.0, %v2321
        %v2323 = vpop.f32.mrf.mxu0
        %2324 = vmatprep.mubr.bf16.mxu0 0
        %2325 = vmatmul.mubr.bf16.gmra.mxu0 %v2201
        %v2326 = vpop.f32.mrf.mxu0
        %v2327 = vadd.f32 0.0, %v2326
        %v2328 = vpop.f32.mrf.mxu0
        %v2329 = vpop.f32.mrf.mxu0
        %v2330 = vadd.f32 0.0, %v2329
        %v2331 = vpop.f32.mrf.mxu0
        %2332 = vmatprep.mubr.bf16.mxu0 0
        %2333 = vmatmul.mubr.bf16.gmra.mxu0 %v2204
        %v2334 = vpop.f32.mrf.mxu0
        %v2335 = vadd.f32 0.0, %v2334
        %v2336 = vpop.f32.mrf.mxu0
        %v2337 = vpop.f32.mrf.mxu0
        %v2338 = vadd.f32 0.0, %v2337
        %v2339 = vpop.f32.mrf.mxu0
        %2340 = vmatprep.mubr.bf16.mxu0 0
        %2341 = vmatmul.mubr.bf16.gmra.mxu0 %v2207
        %v2342 = vpop.f32.mrf.mxu0
        %v2343 = vadd.f32 0.0, %v2342
        %v2344 = vpop.f32.mrf.mxu0
        %v2345 = vpop.f32.mrf.mxu0
        %v2346 = vadd.f32 0.0, %v2345
        %v2347 = vpop.f32.mrf.mxu0
        %2348 = vmatprep.mubr.bf16.mxu0 0
        %2349 = vmatmul.mubr.bf16.gmra.mxu0 %v2210
        %v2350 = vpop.f32.mrf.mxu0
        %v2351 = vadd.f32 0.0, %v2350
        %v2352 = vpop.f32.mrf.mxu0
        %v2353 = vpop.f32.mrf.mxu0
        %v2354 = vadd.f32 0.0, %v2353
        %v2355 = vpop.f32.mrf.mxu0
        %2356 = vmatprep.mubr.bf16.mxu0 0
        %2357 = vmatmul.mubr.bf16.gmra.mxu0 %v2213
        %v2358 = vpop.f32.mrf.mxu0
        %v2359 = vadd.f32 0.0, %v2358
        %v2360 = vpop.f32.mrf.mxu0
        %v2361 = vpop.f32.mrf.mxu0
        %v2362 = vadd.f32 0.0, %v2361
        %v2363 = vpop.f32.mrf.mxu0
        %2364 = vmatprep.mubr.bf16.mxu0 0
        %2365 = vmatmul.mubr.bf16.gmra.mxu0 %v2216
        %v2366 = vpop.f32.mrf.mxu0
        %v2367 = vadd.f32 0.0, %v2366
        %v2368 = vpop.f32.mrf.mxu0
        %v2369 = vpop.f32.mrf.mxu0
        %v2370 = vadd.f32 0.0, %v2369
        %v2371 = vpop.f32.mrf.mxu0
        %2372 = vmatprep.mubr.bf16.mxu0 0
        %2373 = vmatmul.mubr.bf16.gmra.mxu0 %v2219
        %v2374 = vpop.f32.mrf.mxu0
        %v2375 = vadd.f32 0.0, %v2374
        %v2376 = vpop.f32.mrf.mxu0
        %v2377 = vpop.f32.mrf.mxu0
        %v2378 = vadd.f32 0.0, %v2377
        %v2379 = vpop.f32.mrf.mxu0
        %2380 = vmatprep.mubr.bf16.mxu0 0
        %2381 = vmatmul.mubr.bf16.gmra.mxu0 %v2222
        %v2382 = vpop.f32.mrf.mxu0
        %v2383 = vadd.f32 0.0, %v2382
        %v2384 = vpop.f32.mrf.mxu0
        %v2385 = vpop.f32.mrf.mxu0
        %v2386 = vadd.f32 0.0, %v2385
        %v2387 = vpop.f32.mrf.mxu0
        %2388 = vmatprep.mubr.bf16.mxu0 0
        %2389 = vmatmul.mubr.bf16.gmra.mxu0 %v2225
        %v2390 = vpop.f32.mrf.mxu0
        %v2391 = vadd.f32 0.0, %v2390
        %v2392 = vpop.f32.mrf.mxu0
        %v2393 = vpop.f32.mrf.mxu0
        %v2394 = vadd.f32 0.0, %v2393
        %v2395 = vpop.f32.mrf.mxu0
        %2396 = vmatprep.mubr.bf16.mxu0 0
        %2397 = vmatmul.mubr.bf16.gmra.mxu0 %v2228
        %v2398 = vpop.f32.mrf.mxu0
        %v2399 = vadd.f32 0.0, %v2398
        %v2400 = vpop.f32.mrf.mxu0
        %v2401 = vpop.f32.mrf.mxu0
        %v2402 = vadd.f32 0.0, %v2401
        %v2403 = vpop.f32.mrf.mxu0
        %2404 = vmatprep.mubr.bf16.mxu0 0
        %2405 = vmatmul.mubr.bf16.gmra.mxu0 %v2231
        %v2406 = vpop.f32.mrf.mxu0
        %v2407 = vadd.f32 0.0, %v2406
        %v2408 = vpop.f32.mrf.mxu0
        %v2409 = vpop.f32.mrf.mxu0
        %v2410 = vadd.f32 0.0, %v2409
        %v2411 = vpop.f32.mrf.mxu0
        %2412 = vdwg.mxu0
        %v2413 = vadd.f32 %v2099, %v2271
        %v2414 = vadd.f32 %v2100, %v2274
        %v2415 = vadd.f32 %v2101, %v2279
        %v2416 = vadd.f32 %v2102, %v2282
        %v2417 = vadd.f32 %v2103, %v2287
        %v2418 = vadd.f32 %v2104, %v2290
        %v2419 = vadd.f32 %v2105, %v2295
        %v2420 = vadd.f32 %v2106, %v2298
        %v2421 = vadd.f32 %v2107, %v2303
        %v2422 = vadd.f32 %v2108, %v2306
        %v2423 = vadd.f32 %v2109, %v2311
        %v2424 = vadd.f32 %v2110, %v2314
        %v2425 = vadd.f32 %v2111, %v2319
        %v2426 = vadd.f32 %v2112, %v2322
        %v2427 = vadd.f32 %v2113, %v2327
        %v2428 = vadd.f32 %v2114, %v2330
        %v2429 = vadd.f32 %v2115, %v2335
        %v2430 = vadd.f32 %v2116, %v2338
        %v2431 = vadd.f32 %v2117, %v2343
        %v2432 = vadd.f32 %v2118, %v2346
        %v2433 = vadd.f32 %v2119, %v2351
        %v2434 = vadd.f32 %v2120, %v2354
        %v2435 = vadd.f32 %v2121, %v2359
        %v2436 = vadd.f32 %v2122, %v2362
        %v2437 = vadd.f32 %v2123, %v2367
        %v2438 = vadd.f32 %v2124, %v2370
        %v2439 = vadd.f32 %v2125, %v2375
        %v2440 = vadd.f32 %v2126, %v2378
        %v2441 = vadd.f32 %v2127, %v2383
        %v2442 = vadd.f32 %v2128, %v2386
        %v2443 = vadd.f32 %v2129, %v2391
        %v2444 = vadd.f32 %v2130, %v2394
        %v2445 = vadd.f32 %v2131, %v2399
        %v2446 = vadd.f32 %v2132, %v2402
        %v2447 = vadd.f32 %v2133, %v2407
        %v2448 = vadd.f32 %v2134, %v2410
        %v2449 = vld [vmem:[%s195 + $0x10] sm:$0xc]
        %v2450 = vld [vmem:[%s195 + $0x14] sm:$0xf]
        %v2451 = vld [vmem:[%s195 + $0x18] sm:$0xf]
        %v2452 = vld [vmem:[%s195 + $0x1c] sm:$0xf]
        %v2453 = vld [vmem:[%s195 + $0x20] sm:$0xf]
        %v2454 = vld [vmem:[%s195 + $0x24] sm:$0xf]
        %v2455 = vld [vmem:[%s195 + $0x28] sm:$0xf]
        %v2456 = vld [vmem:[%s195 + $0x2c] sm:$0xf]
        %v2457 = vld [vmem:[%s195 + $0x30] sm:$0xf]
        %v2458 = vld [vmem:[%s195 + $0x34] sm:$0xf]
        %v2459 = vld [vmem:[%s195 + $0x38] sm:$0xf]
        %v2460 = vld [vmem:[%s195 + $0x3c] sm:$0xf]
        %v2461 = vld [vmem:[%s195 + $0x40] sm:$0xf]
        %v2462 = vld [vmem:[%s195 + $0x44] sm:$0xf]
        %v2463 = vld [vmem:[%s195 + $0x48] sm:$0xf]
        %v2464 = vld [vmem:[%s195 + $0x4c] sm:$0xf]
        %v2465 = vld [vmem:[%s195 + $0x50] sm:$0xf]
        %v2466 = vld [vmem:[%s195 + $0x54] sm:$0xf]
        %v2467 = vld [vmem:[%s195 + $0x58] sm:$0xf]
        %v2468 = vld [vmem:[%s195 + $0x5c] sm:$0xf]
        %v2469 = vld [vmem:[%s195 + $0x60] sm:$0xf]
        %v2470 = vld [vmem:[%s195 + $0x64] sm:$0xf]
        %v2471 = vld [vmem:[%s195 + $0x68] sm:$0xf]
        %v2472 = vld [vmem:[%s195 + $0x6c] sm:$0xf]
        %v2473 = vld [vmem:[%s195 + $0x70] sm:$0xf]
        %v2474 = vld [vmem:[%s195 + $0x74] sm:$0xf]
        %v2475 = vld [vmem:[%s195 + $0x78] sm:$0xf]
        %v2476 = vld [vmem:[%s195 + $0x7c] sm:$0xf]
        %v2477 = vld [vmem:[%s195 + $0x80] sm:$0xf]
        %v2478 = vld [vmem:[%s195 + $0x84] sm:$0xf]
        %v2479 = vld [vmem:[%s195 + $0x88] sm:$0xf]
        %v2480 = vld [vmem:[%s195 + $0x8c] sm:$0xf]
        %v2481 = vld [vmem:[%s195 + $0x90] sm:$0xf]
        %v2482 = vld [vmem:[%s195 + $0x94] sm:$0xf]
        %v2483 = vld [vmem:[%s195 + $0x98] sm:$0xf]
        %v2484 = vld [vmem:[%s195 + $0x9c] sm:$0xf]
        %v2485 = vld [vmem:[%s195 + $0xa0] sm:$0x3]
        %s2486 = scalar_lea.vmem %s199, 12
        %v2487 = vld [vmem:[%s2486] sm:$0x3]
        %v2525 = vunpack.c.l.b16 %v2449
        %v2526 = vunpack.c.l.b16 %v2450
        %v2527 = vunpack.c.l.b16 %v2451
        %v2528 = vunpack.c.l.b16 %v2452
        %v2529 = vunpack.c.l.b16 %v2453
        %v2530 = vunpack.c.l.b16 %v2454
        %v2531 = vunpack.c.l.b16 %v2455
        %v2532 = vunpack.c.l.b16 %v2456
        %v2533 = vunpack.c.l.b16 %v2457
        %v2534 = vunpack.c.l.b16 %v2458
        %v2535 = vunpack.c.l.b16 %v2459
        %v2536 = vunpack.c.l.b16 %v2460
        %v2537 = vunpack.c.l.b16 %v2461
        %v2538 = vunpack.c.l.b16 %v2462
        %v2539 = vunpack.c.l.b16 %v2463
        %v2540 = vunpack.c.l.b16 %v2464
        %v2541 = vunpack.c.l.b16 %v2465
        %v2542 = vunpack.c.l.b16 %v2466
        %v2543 = vunpack.c.l.b16 %v2467
        %v2544 = vunpack.c.l.b16 %v2468
        %v2545 = vunpack.c.l.b16 %v2469
        %v2546 = vunpack.c.l.b16 %v2470
        %v2547 = vunpack.c.l.b16 %v2471
        %v2548 = vunpack.c.l.b16 %v2472
        %v2549 = vunpack.c.l.b16 %v2473
        %v2550 = vunpack.c.l.b16 %v2474
        %v2551 = vunpack.c.l.b16 %v2475
        %v2552 = vunpack.c.l.b16 %v2476
        %v2553 = vunpack.c.l.b16 %v2477
        %v2554 = vunpack.c.l.b16 %v2478
        %v2555 = vunpack.c.l.b16 %v2479
        %v2556 = vunpack.c.l.b16 %v2480
        %v2557 = vunpack.c.l.b16 %v2481
        %v2558 = vunpack.c.l.b16 %v2482
        %v2559 = vunpack.c.l.b16 %v2483
        %v2560 = vunpack.c.l.b16 %v2484
        %v2561 = vunpack.c.l.b16 %v2485
        %v2562 = vpack.c.b16 %v2526, %v2525
        %v2563 = vpack.c.b16 %v2528, %v2527
        %v2564 = vpack.c.b16 %v2530, %v2529
        %v2565 = vpack.c.b16 %v2532, %v2531
        %v2566 = vpack.c.b16 %v2534, %v2533
        %v2567 = vpack.c.b16 %v2536, %v2535
        %v2568 = vpack.c.b16 %v2538, %v2537
        %v2569 = vpack.c.b16 %v2540, %v2539
        %v2570 = vpack.c.b16 %v2542, %v2541
        %v2571 = vpack.c.b16 %v2544, %v2543
        %v2572 = vpack.c.b16 %v2546, %v2545
        %v2573 = vpack.c.b16 %v2548, %v2547
        %v2574 = vpack.c.b16 %v2550, %v2549
        %v2575 = vpack.c.b16 %v2552, %v2551
        %v2576 = vpack.c.b16 %v2554, %v2553
        %v2577 = vpack.c.b16 %v2556, %v2555
        %v2578 = vpack.c.b16 %v2558, %v2557
        %v2579 = vpack.c.b16 %v2560, %v2559
        %v2580 = vpack.c.b16 %v2561, %v2561
        %v2581 = vrot.slane %v2562, 2
        %v2582 = vrot.slane %v2563, 2
        %v2583 = vsel %vm2141, %v2581, %v2582
        %v2584 = vrot.slane %v2564, 2
        %v2585 = vsel %vm2141, %v2582, %v2584
        %v2586 = vrot.slane %v2565, 2
        %v2587 = vsel %vm2141, %v2584, %v2586
        %v2588 = vrot.slane %v2566, 2
        %v2589 = vsel %vm2141, %v2586, %v2588
        %v2590 = vrot.slane %v2567, 2
        %v2591 = vsel %vm2141, %v2588, %v2590
        %v2592 = vrot.slane %v2568, 2
        %v2593 = vsel %vm2141, %v2590, %v2592
        %v2594 = vrot.slane %v2569, 2
        %v2595 = vsel %vm2141, %v2592, %v2594
        %v2596 = vrot.slane %v2570, 2
        %v2597 = vsel %vm2141, %v2594, %v2596
        %v2598 = vrot.slane %v2571, 2
        %v2599 = vsel %vm2141, %v2596, %v2598
        %v2600 = vrot.slane %v2572, 2
        %v2601 = vsel %vm2141, %v2598, %v2600
        %v2602 = vrot.slane %v2573, 2
        %v2603 = vsel %vm2141, %v2600, %v2602
        %v2604 = vrot.slane %v2574, 2
        %v2605 = vsel %vm2141, %v2602, %v2604
        %v2606 = vrot.slane %v2575, 2
        %v2607 = vsel %vm2141, %v2604, %v2606
        %v2608 = vrot.slane %v2576, 2
        %v2609 = vsel %vm2141, %v2606, %v2608
        %v2610 = vrot.slane %v2577, 2
        %v2611 = vsel %vm2141, %v2608, %v2610
        %v2612 = vrot.slane %v2578, 2
        %v2613 = vsel %vm2141, %v2610, %v2612
        %v2614 = vrot.slane %v2579, 2
        %v2615 = vsel %vm2141, %v2612, %v2614
        %v2616 = vrot.slane %v2580, 2
        %v2617 = vsel %vm2141, %v2614, %v2616
        %v2619 = vsel %vm483, %v2583, 0
        %v2622 = vsel %vm483, %v2585, 0
        %v2625 = vsel %vm483, %v2587, 0
        %v2628 = vsel %vm483, %v2589, 0
        %v2631 = vsel %vm483, %v2591, 0
        %v2634 = vsel %vm483, %v2593, 0
        %v2637 = vsel %vm483, %v2595, 0
        %v2640 = vsel %vm483, %v2597, 0
        %v2643 = vsel %vm483, %v2599, 0
        %v2646 = vsel %vm483, %v2601, 0
        %v2649 = vsel %vm483, %v2603, 0
        %v2652 = vsel %vm483, %v2605, 0
        %v2655 = vsel %vm483, %v2607, 0
        %v2658 = vsel %vm483, %v2609, 0
        %v2661 = vsel %vm483, %v2611, 0
        %v2664 = vsel %vm483, %v2613, 0
        %v2667 = vsel %vm483, %v2615, 0
        %v2670 = vsel %vm483, %v2617, 0
        %v2673 = vsel %vm538, %v2487, 0
        %2675 = vmatprep.subr.bf16.mxu0 0
        %2676 = vmatpush1.bf16.msra.mxu0 0
        %2677 = vmatprep.subr.bf16.mxu0 0
        %2678 = vmatpush1.bf16.msra.mxu0 0
        %2679 = vmatprep.subr.bf16.mxu0 0
        %2680 = vmatpush1.bf16.msra.mxu0 0
        %2681 = vmatprep.subr.bf16.mxu0 0
        %2682 = vmatpush1.bf16.msra.mxu0 0
        %2683 = vmatprep.subr.bf16.mxu0 0
        %2684 = vmatpush1.bf16.msra.mxu0 0
        %2685 = vmatprep.subr.bf16.mxu0 0
        %2686 = vmatpush1.bf16.msra.mxu0 0
        %2687 = vmatprep.subr.bf16.mxu0 0
        %2688 = vmatpush1.bf16.msra.mxu0 0
        %2689 = vmatprep.subr.bf16.mxu0 0
        %2690 = vmatpush1.bf16.msra.mxu0 %v2673
        %2691 = vmatprep.subr.bf16.mxu0 0
        %2692 = vmatpush2.bf16.msra.mxu0 0
        %2693 = vmatprep.subr.bf16.mxu0 0
        %2694 = vmatpush2.bf16.msra.mxu0 0
        %2695 = vmatprep.subr.bf16.mxu0 0
        %2696 = vmatpush2.bf16.msra.mxu0 0
        %2697 = vmatprep.subr.bf16.mxu0 0
        %2698 = vmatpush2.bf16.msra.mxu0 0
        %2699 = vmatprep.subr.bf16.mxu0 0
        %2700 = vmatpush2.bf16.msra.mxu0 0
        %2701 = vmatprep.subr.bf16.mxu0 0
        %2702 = vmatpush2.bf16.msra.mxu0 0
        %2703 = vmatprep.subr.bf16.mxu0 0
        %2704 = vmatpush2.bf16.msra.mxu0 0
        %2705 = vmatprep.subr.bf16.mxu0 0
        %2706 = vmatpush2.bf16.msra.mxu0 0
        %2707 = vmatprep.mubr.bf16.mxu0 0
        %2708 = vmatmul.mubr.bf16.gmra.mxu0 %v2619
        %v2709 = vpop.f32.mrf.mxu0
        %v2710 = vadd.f32 0.0, %v2709
        %v2711 = vpop.f32.mrf.mxu0
        %v2712 = vpop.f32.mrf.mxu0
        %v2713 = vadd.f32 0.0, %v2712
        %v2714 = vpop.f32.mrf.mxu0
        %2715 = vmatprep.mubr.bf16.mxu0 0
        %2716 = vmatmul.mubr.bf16.gmra.mxu0 %v2622
        %v2717 = vpop.f32.mrf.mxu0
        %v2718 = vadd.f32 0.0, %v2717
        %v2719 = vpop.f32.mrf.mxu0
        %v2720 = vpop.f32.mrf.mxu0
        %v2721 = vadd.f32 0.0, %v2720
        %v2722 = vpop.f32.mrf.mxu0
        %2723 = vmatprep.mubr.bf16.mxu0 0
        %2724 = vmatmul.mubr.bf16.gmra.mxu0 %v2625
        %v2725 = vpop.f32.mrf.mxu0
        %v2726 = vadd.f32 0.0, %v2725
        %v2727 = vpop.f32.mrf.mxu0
        %v2728 = vpop.f32.mrf.mxu0
        %v2729 = vadd.f32 0.0, %v2728
        %v2730 = vpop.f32.mrf.mxu0
        %2731 = vmatprep.mubr.bf16.mxu0 0
        %2732 = vmatmul.mubr.bf16.gmra.mxu0 %v2628
        %v2733 = vpop.f32.mrf.mxu0
        %v2734 = vadd.f32 0.0, %v2733
        %v2735 = vpop.f32.mrf.mxu0
        %v2736 = vpop.f32.mrf.mxu0
        %v2737 = vadd.f32 0.0, %v2736
        %v2738 = vpop.f32.mrf.mxu0
        %2739 = vmatprep.mubr.bf16.mxu0 0
        %2740 = vmatmul.mubr.bf16.gmra.mxu0 %v2631
        %v2741 = vpop.f32.mrf.mxu0
        %v2742 = vadd.f32 0.0, %v2741
        %v2743 = vpop.f32.mrf.mxu0
        %v2744 = vpop.f32.mrf.mxu0
        %v2745 = vadd.f32 0.0, %v2744
        %v2746 = vpop.f32.mrf.mxu0
        %2747 = vmatprep.mubr.bf16.mxu0 0
        %2748 = vmatmul.mubr.bf16.gmra.mxu0 %v2634
        %v2749 = vpop.f32.mrf.mxu0
        %v2750 = vadd.f32 0.0, %v2749
        %v2751 = vpop.f32.mrf.mxu0
        %v2752 = vpop.f32.mrf.mxu0
        %v2753 = vadd.f32 0.0, %v2752
        %v2754 = vpop.f32.mrf.mxu0
        %2755 = vmatprep.mubr.bf16.mxu0 0
        %2756 = vmatmul.mubr.bf16.gmra.mxu0 %v2637
        %v2757 = vpop.f32.mrf.mxu0
        %v2758 = vadd.f32 0.0, %v2757
        %v2759 = vpop.f32.mrf.mxu0
        %v2760 = vpop.f32.mrf.mxu0
        %v2761 = vadd.f32 0.0, %v2760
        %v2762 = vpop.f32.mrf.mxu0
        %2763 = vmatprep.mubr.bf16.mxu0 0
        %2764 = vmatmul.mubr.bf16.gmra.mxu0 %v2640
        %v2765 = vpop.f32.mrf.mxu0
        %v2766 = vadd.f32 0.0, %v2765
        %v2767 = vpop.f32.mrf.mxu0
        %v2768 = vpop.f32.mrf.mxu0
        %v2769 = vadd.f32 0.0, %v2768
        %v2770 = vpop.f32.mrf.mxu0
        %2771 = vmatprep.mubr.bf16.mxu0 0
        %2772 = vmatmul.mubr.bf16.gmra.mxu0 %v2643
        %v2773 = vpop.f32.mrf.mxu0
        %v2774 = vadd.f32 0.0, %v2773
        %v2775 = vpop.f32.mrf.mxu0
        %v2776 = vpop.f32.mrf.mxu0
        %v2777 = vadd.f32 0.0, %v2776
        %v2778 = vpop.f32.mrf.mxu0
        %2779 = vmatprep.mubr.bf16.mxu0 0
        %2780 = vmatmul.mubr.bf16.gmra.mxu0 %v2646
        %v2781 = vpop.f32.mrf.mxu0
        %v2782 = vadd.f32 0.0, %v2781
        %v2783 = vpop.f32.mrf.mxu0
        %v2784 = vpop.f32.mrf.mxu0
        %v2785 = vadd.f32 0.0, %v2784
        %v2786 = vpop.f32.mrf.mxu0
        %2787 = vmatprep.mubr.bf16.mxu0 0
        %2788 = vmatmul.mubr.bf16.gmra.mxu0 %v2649
        %v2789 = vpop.f32.mrf.mxu0
        %v2790 = vadd.f32 0.0, %v2789
        %v2791 = vpop.f32.mrf.mxu0
        %v2792 = vpop.f32.mrf.mxu0
        %v2793 = vadd.f32 0.0, %v2792
        %v2794 = vpop.f32.mrf.mxu0
        %2795 = vmatprep.mubr.bf16.mxu0 0
        %2796 = vmatmul.mubr.bf16.gmra.mxu0 %v2652
        %v2797 = vpop.f32.mrf.mxu0
        %v2798 = vadd.f32 0.0, %v2797
        %v2799 = vpop.f32.mrf.mxu0
        %v2800 = vpop.f32.mrf.mxu0
        %v2801 = vadd.f32 0.0, %v2800
        %v2802 = vpop.f32.mrf.mxu0
        %2803 = vmatprep.mubr.bf16.mxu0 0
        %2804 = vmatmul.mubr.bf16.gmra.mxu0 %v2655
        %v2805 = vpop.f32.mrf.mxu0
        %v2806 = vadd.f32 0.0, %v2805
        %v2807 = vpop.f32.mrf.mxu0
        %v2808 = vpop.f32.mrf.mxu0
        %v2809 = vadd.f32 0.0, %v2808
        %v2810 = vpop.f32.mrf.mxu0
        %2811 = vmatprep.mubr.bf16.mxu0 0
        %2812 = vmatmul.mubr.bf16.gmra.mxu0 %v2658
        %v2813 = vpop.f32.mrf.mxu0
        %v2814 = vadd.f32 0.0, %v2813
        %v2815 = vpop.f32.mrf.mxu0
        %v2816 = vpop.f32.mrf.mxu0
        %v2817 = vadd.f32 0.0, %v2816
        %v2818 = vpop.f32.mrf.mxu0
        %2819 = vmatprep.mubr.bf16.mxu0 0
        %2820 = vmatmul.mubr.bf16.gmra.mxu0 %v2661
        %v2821 = vpop.f32.mrf.mxu0
        %v2822 = vadd.f32 0.0, %v2821
        %v2823 = vpop.f32.mrf.mxu0
        %v2824 = vpop.f32.mrf.mxu0
        %v2825 = vadd.f32 0.0, %v2824
        %v2826 = vpop.f32.mrf.mxu0
        %2827 = vmatprep.mubr.bf16.mxu0 0
        %2828 = vmatmul.mubr.bf16.gmra.mxu0 %v2664
        %v2829 = vpop.f32.mrf.mxu0
        %v2830 = vadd.f32 0.0, %v2829
        %v2831 = vpop.f32.mrf.mxu0
        %v2832 = vpop.f32.mrf.mxu0
        %v2833 = vadd.f32 0.0, %v2832
        %v2834 = vpop.f32.mrf.mxu0
        %2835 = vmatprep.mubr.bf16.mxu0 0
        %2836 = vmatmul.mubr.bf16.gmra.mxu0 %v2667
        %v2837 = vpop.f32.mrf.mxu0
        %v2838 = vadd.f32 0.0, %v2837
        %v2839 = vpop.f32.mrf.mxu0
        %v2840 = vpop.f32.mrf.mxu0
        %v2841 = vadd.f32 0.0, %v2840
        %v2842 = vpop.f32.mrf.mxu0
        %2843 = vmatprep.mubr.bf16.mxu0 0
        %2844 = vmatmul.mubr.bf16.gmra.mxu0 %v2670
        %v2845 = vpop.f32.mrf.mxu0
        %v2846 = vadd.f32 0.0, %v2845
        %v2847 = vpop.f32.mrf.mxu0
        %v2848 = vpop.f32.mrf.mxu0
        %v2849 = vadd.f32 0.0, %v2848
        %v2850 = vpop.f32.mrf.mxu0
        %2851 = vdwg.mxu0
        %v2852 = vadd.f32 %v2413, %v2710
        %v2853 = vadd.f32 %v2414, %v2713
        %v2854 = vadd.f32 %v2415, %v2718
        %v2855 = vadd.f32 %v2416, %v2721
        %v2856 = vadd.f32 %v2417, %v2726
        %v2857 = vadd.f32 %v2418, %v2729
        %v2858 = vadd.f32 %v2419, %v2734
        %v2859 = vadd.f32 %v2420, %v2737
        %v2860 = vadd.f32 %v2421, %v2742
        %v2861 = vadd.f32 %v2422, %v2745
        %v2862 = vadd.f32 %v2423, %v2750
        %v2863 = vadd.f32 %v2424, %v2753
        %v2864 = vadd.f32 %v2425, %v2758
        %v2865 = vadd.f32 %v2426, %v2761
        %v2866 = vadd.f32 %v2427, %v2766
        %v2867 = vadd.f32 %v2428, %v2769
        %v2868 = vadd.f32 %v2429, %v2774
        %v2869 = vadd.f32 %v2430, %v2777
        %v2870 = vadd.f32 %v2431, %v2782
        %v2871 = vadd.f32 %v2432, %v2785
        %v2872 = vadd.f32 %v2433, %v2790
        %v2873 = vadd.f32 %v2434, %v2793
        %v2874 = vadd.f32 %v2435, %v2798
        %v2875 = vadd.f32 %v2436, %v2801
        %v2876 = vadd.f32 %v2437, %v2806
        %v2877 = vadd.f32 %v2438, %v2809
        %v2878 = vadd.f32 %v2439, %v2814
        %v2879 = vadd.f32 %v2440, %v2817
        %v2880 = vadd.f32 %v2441, %v2822
        %v2881 = vadd.f32 %v2442, %v2825
        %v2882 = vadd.f32 %v2443, %v2830
        %v2883 = vadd.f32 %v2444, %v2833
        %v2884 = vadd.f32 %v2445, %v2838
        %v2885 = vadd.f32 %v2446, %v2841
        %v2886 = vadd.f32 %v2447, %v2846
        %v2887 = vadd.f32 %v2448, %v2849
        %v2888 = vld [vmem:[%s195 + $0xa0] sm:$0x7]
        %s2889 = scalar_lea.vmem %s199, 14
        %v2890 = vld [vmem:[%s2889] sm:$0x3]
        %v2892 = vunpack.c.l.b16 %v2888
        %v2893 = vpack.c.b16 %v2892, %v2892
        %vm2894 = vsmask.f32 5376
        %v2896 = vshrl.u32 %v2562, 16
        %v2898 = vrot.slane %v2896, 2
        %v2899 = vshll.u32 %v2562, 16
        %v2901 = vrot.slane %v2899, 3
        %v2902 = vor.u32 %v2898, %v2901
        %v2904 = vshrl.u32 %v2563, 16
        %v2906 = vrot.slane %v2904, 2
        %v2907 = vshll.u32 %v2563, 16
        %v2909 = vrot.slane %v2907, 3
        %v2910 = vor.u32 %v2906, %v2909
        %v2911 = vsel %vm2894, %v2902, %v2910
        %v2913 = vshrl.u32 %v2564, 16
        %v2915 = vrot.slane %v2913, 2
        %v2916 = vshll.u32 %v2564, 16
        %v2918 = vrot.slane %v2916, 3
        %v2919 = vor.u32 %v2915, %v2918
        %v2920 = vsel %vm2894, %v2910, %v2919
        %v2922 = vshrl.u32 %v2565, 16
        %v2924 = vrot.slane %v2922, 2
        %v2925 = vshll.u32 %v2565, 16
        %v2927 = vrot.slane %v2925, 3
        %v2928 = vor.u32 %v2924, %v2927
        %v2929 = vsel %vm2894, %v2919, %v2928
        %v2931 = vshrl.u32 %v2566, 16
        %v2933 = vrot.slane %v2931, 2
        %v2934 = vshll.u32 %v2566, 16
        %v2936 = vrot.slane %v2934, 3
        %v2937 = vor.u32 %v2933, %v2936
        %v2938 = vsel %vm2894, %v2928, %v2937
        %v2940 = vshrl.u32 %v2567, 16
        %v2942 = vrot.slane %v2940, 2
        %v2943 = vshll.u32 %v2567, 16
        %v2945 = vrot.slane %v2943, 3
        %v2946 = vor.u32 %v2942, %v2945
        %v2947 = vsel %vm2894, %v2937, %v2946
        %v2949 = vshrl.u32 %v2568, 16
        %v2951 = vrot.slane %v2949, 2
        %v2952 = vshll.u32 %v2568, 16
        %v2954 = vrot.slane %v2952, 3
        %v2955 = vor.u32 %v2951, %v2954
        %v2956 = vsel %vm2894, %v2946, %v2955
        %v2958 = vshrl.u32 %v2569, 16
        %v2960 = vrot.slane %v2958, 2
        %v2961 = vshll.u32 %v2569, 16
        %v2963 = vrot.slane %v2961, 3
        %v2964 = vor.u32 %v2960, %v2963
        %v2965 = vsel %vm2894, %v2955, %v2964
        %v2967 = vshrl.u32 %v2570, 16
        %v2969 = vrot.slane %v2967, 2
        %v2970 = vshll.u32 %v2570, 16
        %v2972 = vrot.slane %v2970, 3
        %v2973 = vor.u32 %v2969, %v2972
        %v2974 = vsel %vm2894, %v2964, %v2973
        %v2976 = vshrl.u32 %v2571, 16
        %v2978 = vrot.slane %v2976, 2
        %v2979 = vshll.u32 %v2571, 16
        %v2981 = vrot.slane %v2979, 3
        %v2982 = vor.u32 %v2978, %v2981
        %v2983 = vsel %vm2894, %v2973, %v2982
        %v2985 = vshrl.u32 %v2572, 16
        %v2987 = vrot.slane %v2985, 2
        %v2988 = vshll.u32 %v2572, 16
        %v2990 = vrot.slane %v2988, 3
        %v2991 = vor.u32 %v2987, %v2990
        %v2992 = vsel %vm2894, %v2982, %v2991
        %v2994 = vshrl.u32 %v2573, 16
        %v2996 = vrot.slane %v2994, 2
        %v2997 = vshll.u32 %v2573, 16
        %v2999 = vrot.slane %v2997, 3
        %v3000 = vor.u32 %v2996, %v2999
        %v3001 = vsel %vm2894, %v2991, %v3000
        %v3003 = vshrl.u32 %v2574, 16
        %v3005 = vrot.slane %v3003, 2
        %v3006 = vshll.u32 %v2574, 16
        %v3008 = vrot.slane %v3006, 3
        %v3009 = vor.u32 %v3005, %v3008
        %v3010 = vsel %vm2894, %v3000, %v3009
        %v3012 = vshrl.u32 %v2575, 16
        %v3014 = vrot.slane %v3012, 2
        %v3015 = vshll.u32 %v2575, 16
        %v3017 = vrot.slane %v3015, 3
        %v3018 = vor.u32 %v3014, %v3017
        %v3019 = vsel %vm2894, %v3009, %v3018
        %v3021 = vshrl.u32 %v2576, 16
        %v3023 = vrot.slane %v3021, 2
        %v3024 = vshll.u32 %v2576, 16
        %v3026 = vrot.slane %v3024, 3
        %v3027 = vor.u32 %v3023, %v3026
        %v3028 = vsel %vm2894, %v3018, %v3027
        %v3030 = vshrl.u32 %v2577, 16
        %v3032 = vrot.slane %v3030, 2
        %v3033 = vshll.u32 %v2577, 16
        %v3035 = vrot.slane %v3033, 3
        %v3036 = vor.u32 %v3032, %v3035
        %v3037 = vsel %vm2894, %v3027, %v3036
        %v3039 = vshrl.u32 %v2578, 16
        %v3041 = vrot.slane %v3039, 2
        %v3042 = vshll.u32 %v2578, 16
        %v3044 = vrot.slane %v3042, 3
        %v3045 = vor.u32 %v3041, %v3044
        %v3046 = vsel %vm2894, %v3036, %v3045
        %v3048 = vshrl.u32 %v2579, 16
        %v3050 = vrot.slane %v3048, 2
        %v3051 = vshll.u32 %v2579, 16
        %v3053 = vrot.slane %v3051, 3
        %v3054 = vor.u32 %v3050, %v3053
        %v3055 = vsel %vm2894, %v3045, %v3054
        %v3057 = vshrl.u32 %v2893, 16
        %v3059 = vrot.slane %v3057, 2
        %v3060 = vshll.u32 %v2893, 16
        %v3062 = vrot.slane %v3060, 3
        %v3063 = vor.u32 %v3059, %v3062
        %v3064 = vsel %vm2894, %v3054, %v3063
        %v3066 = vsel %vm483, %v2911, 0
        %v3069 = vsel %vm483, %v2920, 0
        %v3072 = vsel %vm483, %v2929, 0
        %v3075 = vsel %vm483, %v2938, 0
        %v3078 = vsel %vm483, %v2947, 0
        %v3081 = vsel %vm483, %v2956, 0
        %v3084 = vsel %vm483, %v2965, 0
        %v3087 = vsel %vm483, %v2974, 0
        %v3090 = vsel %vm483, %v2983, 0
        %v3093 = vsel %vm483, %v2992, 0
        %v3096 = vsel %vm483, %v3001, 0
        %v3099 = vsel %vm483, %v3010, 0
        %v3102 = vsel %vm483, %v3019, 0
        %v3105 = vsel %vm483, %v3028, 0
        %v3108 = vsel %vm483, %v3037, 0
        %v3111 = vsel %vm483, %v3046, 0
        %v3114 = vsel %vm483, %v3055, 0
        %v3117 = vsel %vm483, %v3064, 0
        %v3120 = vsel %vm538, %v2890, 0
        %3122 = vmatprep.subr.bf16.mxu0 0
        %3123 = vmatpush1.bf16.msra.mxu0 0
        %3124 = vmatprep.subr.bf16.mxu0 0
        %3125 = vmatpush1.bf16.msra.mxu0 0
        %3126 = vmatprep.subr.bf16.mxu0 0
        %3127 = vmatpush1.bf16.msra.mxu0 0
        %3128 = vmatprep.subr.bf16.mxu0 0
        %3129 = vmatpush1.bf16.msra.mxu0 0
        %3130 = vmatprep.subr.bf16.mxu0 0
        %3131 = vmatpush1.bf16.msra.mxu0 0
        %3132 = vmatprep.subr.bf16.mxu0 0
        %3133 = vmatpush1.bf16.msra.mxu0 0
        %3134 = vmatprep.subr.bf16.mxu0 0
        %3135 = vmatpush1.bf16.msra.mxu0 0
        %3136 = vmatprep.subr.bf16.mxu0 0
        %3137 = vmatpush1.bf16.msra.mxu0 %v3120
        %3138 = vmatprep.subr.bf16.mxu0 0
        %3139 = vmatpush2.bf16.msra.mxu0 0
        %3140 = vmatprep.subr.bf16.mxu0 0
        %3141 = vmatpush2.bf16.msra.mxu0 0
        %3142 = vmatprep.subr.bf16.mxu0 0
        %3143 = vmatpush2.bf16.msra.mxu0 0
        %3144 = vmatprep.subr.bf16.mxu0 0
        %3145 = vmatpush2.bf16.msra.mxu0 0
        %3146 = vmatprep.subr.bf16.mxu0 0
        %3147 = vmatpush2.bf16.msra.mxu0 0
        %3148 = vmatprep.subr.bf16.mxu0 0
        %3149 = vmatpush2.bf16.msra.mxu0 0
        %3150 = vmatprep.subr.bf16.mxu0 0
        %3151 = vmatpush2.bf16.msra.mxu0 0
        %3152 = vmatprep.subr.bf16.mxu0 0
        %3153 = vmatpush2.bf16.msra.mxu0 0
        %3154 = vmatprep.mubr.bf16.mxu0 0
        %3155 = vmatmul.mubr.bf16.gmra.mxu0 %v3066
        %v3156 = vpop.f32.mrf.mxu0
        %v3157 = vadd.f32 0.0, %v3156
        %v3158 = vpop.f32.mrf.mxu0
        %v3159 = vpop.f32.mrf.mxu0
        %v3160 = vadd.f32 0.0, %v3159
        %v3161 = vpop.f32.mrf.mxu0
        %3162 = vmatprep.mubr.bf16.mxu0 0
        %3163 = vmatmul.mubr.bf16.gmra.mxu0 %v3069
        %v3164 = vpop.f32.mrf.mxu0
        %v3165 = vadd.f32 0.0, %v3164
        %v3166 = vpop.f32.mrf.mxu0
        %v3167 = vpop.f32.mrf.mxu0
        %v3168 = vadd.f32 0.0, %v3167
        %v3169 = vpop.f32.mrf.mxu0
        %3170 = vmatprep.mubr.bf16.mxu0 0
        %3171 = vmatmul.mubr.bf16.gmra.mxu0 %v3072
        %v3172 = vpop.f32.mrf.mxu0
        %v3173 = vadd.f32 0.0, %v3172
        %v3174 = vpop.f32.mrf.mxu0
        %v3175 = vpop.f32.mrf.mxu0
        %v3176 = vadd.f32 0.0, %v3175
        %v3177 = vpop.f32.mrf.mxu0
        %3178 = vmatprep.mubr.bf16.mxu0 0
        %3179 = vmatmul.mubr.bf16.gmra.mxu0 %v3075
        %v3180 = vpop.f32.mrf.mxu0
        %v3181 = vadd.f32 0.0, %v3180
        %v3182 = vpop.f32.mrf.mxu0
        %v3183 = vpop.f32.mrf.mxu0
        %v3184 = vadd.f32 0.0, %v3183
        %v3185 = vpop.f32.mrf.mxu0
        %3186 = vmatprep.mubr.bf16.mxu0 0
        %3187 = vmatmul.mubr.bf16.gmra.mxu0 %v3078
        %v3188 = vpop.f32.mrf.mxu0
        %v3189 = vadd.f32 0.0, %v3188
        %v3190 = vpop.f32.mrf.mxu0
        %v3191 = vpop.f32.mrf.mxu0
        %v3192 = vadd.f32 0.0, %v3191
        %v3193 = vpop.f32.mrf.mxu0
        %3194 = vmatprep.mubr.bf16.mxu0 0
        %3195 = vmatmul.mubr.bf16.gmra.mxu0 %v3081
        %v3196 = vpop.f32.mrf.mxu0
        %v3197 = vadd.f32 0.0, %v3196
        %v3198 = vpop.f32.mrf.mxu0
        %v3199 = vpop.f32.mrf.mxu0
        %v3200 = vadd.f32 0.0, %v3199
        %v3201 = vpop.f32.mrf.mxu0
        %3202 = vmatprep.mubr.bf16.mxu0 0
        %3203 = vmatmul.mubr.bf16.gmra.mxu0 %v3084
        %v3204 = vpop.f32.mrf.mxu0
        %v3205 = vadd.f32 0.0, %v3204
        %v3206 = vpop.f32.mrf.mxu0
        %v3207 = vpop.f32.mrf.mxu0
        %v3208 = vadd.f32 0.0, %v3207
        %v3209 = vpop.f32.mrf.mxu0
        %3210 = vmatprep.mubr.bf16.mxu0 0
        %3211 = vmatmul.mubr.bf16.gmra.mxu0 %v3087
        %v3212 = vpop.f32.mrf.mxu0
        %v3213 = vadd.f32 0.0, %v3212
        %v3214 = vpop.f32.mrf.mxu0
        %v3215 = vpop.f32.mrf.mxu0
        %v3216 = vadd.f32 0.0, %v3215
        %v3217 = vpop.f32.mrf.mxu0
        %3218 = vmatprep.mubr.bf16.mxu0 0
        %3219 = vmatmul.mubr.bf16.gmra.mxu0 %v3090
        %v3220 = vpop.f32.mrf.mxu0
        %v3221 = vadd.f32 0.0, %v3220
        %v3222 = vpop.f32.mrf.mxu0
        %v3223 = vpop.f32.mrf.mxu0
        %v3224 = vadd.f32 0.0, %v3223
        %v3225 = vpop.f32.mrf.mxu0
        %3226 = vmatprep.mubr.bf16.mxu0 0
        %3227 = vmatmul.mubr.bf16.gmra.mxu0 %v3093
        %v3228 = vpop.f32.mrf.mxu0
        %v3229 = vadd.f32 0.0, %v3228
        %v3230 = vpop.f32.mrf.mxu0
        %v3231 = vpop.f32.mrf.mxu0
        %v3232 = vadd.f32 0.0, %v3231
        %v3233 = vpop.f32.mrf.mxu0
        %3234 = vmatprep.mubr.bf16.mxu0 0
        %3235 = vmatmul.mubr.bf16.gmra.mxu0 %v3096
        %v3236 = vpop.f32.mrf.mxu0
        %v3237 = vadd.f32 0.0, %v3236
        %v3238 = vpop.f32.mrf.mxu0
        %v3239 = vpop.f32.mrf.mxu0
        %v3240 = vadd.f32 0.0, %v3239
        %v3241 = vpop.f32.mrf.mxu0
        %3242 = vmatprep.mubr.bf16.mxu0 0
        %3243 = vmatmul.mubr.bf16.gmra.mxu0 %v3099
        %v3244 = vpop.f32.mrf.mxu0
        %v3245 = vadd.f32 0.0, %v3244
        %v3246 = vpop.f32.mrf.mxu0
        %v3247 = vpop.f32.mrf.mxu0
        %v3248 = vadd.f32 0.0, %v3247
        %v3249 = vpop.f32.mrf.mxu0
        %3250 = vmatprep.mubr.bf16.mxu0 0
        %3251 = vmatmul.mubr.bf16.gmra.mxu0 %v3102
        %v3252 = vpop.f32.mrf.mxu0
        %v3253 = vadd.f32 0.0, %v3252
        %v3254 = vpop.f32.mrf.mxu0
        %v3255 = vpop.f32.mrf.mxu0
        %v3256 = vadd.f32 0.0, %v3255
        %v3257 = vpop.f32.mrf.mxu0
        %3258 = vmatprep.mubr.bf16.mxu0 0
        %3259 = vmatmul.mubr.bf16.gmra.mxu0 %v3105
        %v3260 = vpop.f32.mrf.mxu0
        %v3261 = vadd.f32 0.0, %v3260
        %v3262 = vpop.f32.mrf.mxu0
        %v3263 = vpop.f32.mrf.mxu0
        %v3264 = vadd.f32 0.0, %v3263
        %v3265 = vpop.f32.mrf.mxu0
        %3266 = vmatprep.mubr.bf16.mxu0 0
        %3267 = vmatmul.mubr.bf16.gmra.mxu0 %v3108
        %v3268 = vpop.f32.mrf.mxu0
        %v3269 = vadd.f32 0.0, %v3268
        %v3270 = vpop.f32.mrf.mxu0
        %v3271 = vpop.f32.mrf.mxu0
        %v3272 = vadd.f32 0.0, %v3271
        %v3273 = vpop.f32.mrf.mxu0
        %3274 = vmatprep.mubr.bf16.mxu0 0
        %3275 = vmatmul.mubr.bf16.gmra.mxu0 %v3111
        %v3276 = vpop.f32.mrf.mxu0
        %v3277 = vadd.f32 0.0, %v3276
        %v3278 = vpop.f32.mrf.mxu0
        %v3279 = vpop.f32.mrf.mxu0
        %v3280 = vadd.f32 0.0, %v3279
        %v3281 = vpop.f32.mrf.mxu0
        %3282 = vmatprep.mubr.bf16.mxu0 0
        %3283 = vmatmul.mubr.bf16.gmra.mxu0 %v3114
        %v3284 = vpop.f32.mrf.mxu0
        %v3285 = vadd.f32 0.0, %v3284
        %v3286 = vpop.f32.mrf.mxu0
        %v3287 = vpop.f32.mrf.mxu0
        %v3288 = vadd.f32 0.0, %v3287
        %v3289 = vpop.f32.mrf.mxu0
        %3290 = vmatprep.mubr.bf16.mxu0 0
        %3291 = vmatmul.mubr.bf16.gmra.mxu0 %v3117
        %v3292 = vpop.f32.mrf.mxu0
        %v3293 = vadd.f32 0.0, %v3292
        %v3294 = vpop.f32.mrf.mxu0
        %v3295 = vpop.f32.mrf.mxu0
        %v3296 = vadd.f32 0.0, %v3295
        %v3297 = vpop.f32.mrf.mxu0
        %3298 = vdwg.mxu0
        %v3299 = vadd.f32 %v2852, %v3157
        %v3300 = vadd.f32 %v2853, %v3160
        %v3301 = vadd.f32 %v2854, %v3165
        %v3302 = vadd.f32 %v2855, %v3168
        %v3303 = vadd.f32 %v2856, %v3173
        %v3304 = vadd.f32 %v2857, %v3176
        %v3305 = vadd.f32 %v2858, %v3181
        %v3306 = vadd.f32 %v2859, %v3184
        %v3307 = vadd.f32 %v2860, %v3189
        %v3308 = vadd.f32 %v2861, %v3192
        %v3309 = vadd.f32 %v2862, %v3197
        %v3310 = vadd.f32 %v2863, %v3200
        %v3311 = vadd.f32 %v2864, %v3205
        %v3312 = vadd.f32 %v2865, %v3208
        %v3313 = vadd.f32 %v2866, %v3213
        %v3314 = vadd.f32 %v2867, %v3216
        %v3315 = vadd.f32 %v2868, %v3221
        %v3316 = vadd.f32 %v2869, %v3224
        %v3317 = vadd.f32 %v2870, %v3229
        %v3318 = vadd.f32 %v2871, %v3232
        %v3319 = vadd.f32 %v2872, %v3237
        %v3320 = vadd.f32 %v2873, %v3240
        %v3321 = vadd.f32 %v2874, %v3245
        %v3322 = vadd.f32 %v2875, %v3248
        %v3323 = vadd.f32 %v2876, %v3253
        %v3324 = vadd.f32 %v2877, %v3256
        %v3325 = vadd.f32 %v2878, %v3261
        %v3326 = vadd.f32 %v2879, %v3264
        %v3327 = vadd.f32 %v2880, %v3269
        %v3328 = vadd.f32 %v2881, %v3272
        %v3329 = vadd.f32 %v2882, %v3277
        %v3330 = vadd.f32 %v2883, %v3280
        %v3331 = vadd.f32 %v2884, %v3285
        %v3332 = vadd.f32 %v2885, %v3288
        %v3333 = vadd.f32 %v2886, %v3293
        %v3334 = vadd.f32 %v2887, %v3296
        %v3335 = vld [vmem:[%s195 + $0x10] sm:$0x8]
        %s3336 = scalar_lea.vmem %s199, 16
        %v3337 = vld [vmem:[%s3336] sm:$0x3]
        %v3339 = vunpack.c.l.b16 %v3335
        %v3340 = vpack.c.b16 %v2526, %v3339
        %vm3341 = vcmask 1044480
        %v3342 = vrot.slane %v3340, 3
        %v3343 = vrot.slane %v2563, 3
        %v3344 = vsel %vm3341, %v3342, %v3343
        %v3345 = vrot.slane %v2564, 3
        %v3346 = vsel %vm3341, %v3343, %v3345
        %v3347 = vrot.slane %v2565, 3
        %v3348 = vsel %vm3341, %v3345, %v3347
        %v3349 = vrot.slane %v2566, 3
        %v3350 = vsel %vm3341, %v3347, %v3349
        %v3351 = vrot.slane %v2567, 3
        %v3352 = vsel %vm3341, %v3349, %v3351
        %v3353 = vrot.slane %v2568, 3
        %v3354 = vsel %vm3341, %v3351, %v3353
        %v3355 = vrot.slane %v2569, 3
        %v3356 = vsel %vm3341, %v3353, %v3355
        %v3357 = vrot.slane %v2570, 3
        %v3358 = vsel %vm3341, %v3355, %v3357
        %v3359 = vrot.slane %v2571, 3
        %v3360 = vsel %vm3341, %v3357, %v3359
        %v3361 = vrot.slane %v2572, 3
        %v3362 = vsel %vm3341, %v3359, %v3361
        %v3363 = vrot.slane %v2573, 3
        %v3364 = vsel %vm3341, %v3361, %v3363
        %v3365 = vrot.slane %v2574, 3
        %v3366 = vsel %vm3341, %v3363, %v3365
        %v3367 = vrot.slane %v2575, 3
        %v3368 = vsel %vm3341, %v3365, %v3367
        %v3369 = vrot.slane %v2576, 3
        %v3370 = vsel %vm3341, %v3367, %v3369
        %v3371 = vrot.slane %v2577, 3
        %v3372 = vsel %vm3341, %v3369, %v3371
        %v3373 = vrot.slane %v2578, 3
        %v3374 = vsel %vm3341, %v3371, %v3373
        %v3375 = vrot.slane %v2579, 3
        %v3376 = vsel %vm3341, %v3373, %v3375
        %v3377 = vrot.slane %v2893, 3
        %v3378 = vsel %vm3341, %v3375, %v3377
        %v3380 = vsel %vm483, %v3344, 0
        %v3383 = vsel %vm483, %v3346, 0
        %v3386 = vsel %vm483, %v3348, 0
        %v3389 = vsel %vm483, %v3350, 0
        %v3392 = vsel %vm483, %v3352, 0
        %v3395 = vsel %vm483, %v3354, 0
        %v3398 = vsel %vm483, %v3356, 0
        %v3401 = vsel %vm483, %v3358, 0
        %v3404 = vsel %vm483, %v3360, 0
        %v3407 = vsel %vm483, %v3362, 0
        %v3410 = vsel %vm483, %v3364, 0
        %v3413 = vsel %vm483, %v3366, 0
        %v3416 = vsel %vm483, %v3368, 0
        %v3419 = vsel %vm483, %v3370, 0
        %v3422 = vsel %vm483, %v3372, 0
        %v3425 = vsel %vm483, %v3374, 0
        %v3428 = vsel %vm483, %v3376, 0
        %v3431 = vsel %vm483, %v3378, 0
        %v3434 = vsel %vm538, %v3337, 0
        %3436 = vmatprep.subr.bf16.mxu0 0
        %3437 = vmatpush1.bf16.msra.mxu0 0
        %3438 = vmatprep.subr.bf16.mxu0 0
        %3439 = vmatpush1.bf16.msra.mxu0 0
        %3440 = vmatprep.subr.bf16.mxu0 0
        %3441 = vmatpush1.bf16.msra.mxu0 0
        %3442 = vmatprep.subr.bf16.mxu0 0
        %3443 = vmatpush1.bf16.msra.mxu0 0
        %3444 = vmatprep.subr.bf16.mxu0 0
        %3445 = vmatpush1.bf16.msra.mxu0 0
        %3446 = vmatprep.subr.bf16.mxu0 0
        %3447 = vmatpush1.bf16.msra.mxu0 0
        %3448 = vmatprep.subr.bf16.mxu0 0
        %3449 = vmatpush1.bf16.msra.mxu0 0
        %3450 = vmatprep.subr.bf16.mxu0 0
        %3451 = vmatpush1.bf16.msra.mxu0 %v3434
        %3452 = vmatprep.subr.bf16.mxu0 0
        %3453 = vmatpush2.bf16.msra.mxu0 0
        %3454 = vmatprep.subr.bf16.mxu0 0
        %3455 = vmatpush2.bf16.msra.mxu0 0
        %3456 = vmatprep.subr.bf16.mxu0 0
        %3457 = vmatpush2.bf16.msra.mxu0 0
        %3458 = vmatprep.subr.bf16.mxu0 0
        %3459 = vmatpush2.bf16.msra.mxu0 0
        %3460 = vmatprep.subr.bf16.mxu0 0
        %3461 = vmatpush2.bf16.msra.mxu0 0
        %3462 = vmatprep.subr.bf16.mxu0 0
        %3463 = vmatpush2.bf16.msra.mxu0 0
        %3464 = vmatprep.subr.bf16.mxu0 0
        %3465 = vmatpush2.bf16.msra.mxu0 0
        %3466 = vmatprep.subr.bf16.mxu0 0
        %3467 = vmatpush2.bf16.msra.mxu0 0
        %3468 = vmatprep.mubr.bf16.mxu0 0
        %3469 = vmatmul.mubr.bf16.gmra.mxu0 %v3380
        %v3470 = vpop.f32.mrf.mxu0
        %v3471 = vadd.f32 0.0, %v3470
        %v3472 = vpop.f32.mrf.mxu0
        %v3473 = vpop.f32.mrf.mxu0
        %v3474 = vadd.f32 0.0, %v3473
        %v3475 = vpop.f32.mrf.mxu0
        %3476 = vmatprep.mubr.bf16.mxu0 0
        %3477 = vmatmul.mubr.bf16.gmra.mxu0 %v3383
        %v3478 = vpop.f32.mrf.mxu0
        %v3479 = vadd.f32 0.0, %v3478
        %v3480 = vpop.f32.mrf.mxu0
        %v3481 = vpop.f32.mrf.mxu0
        %v3482 = vadd.f32 0.0, %v3481
        %v3483 = vpop.f32.mrf.mxu0
        %3484 = vmatprep.mubr.bf16.mxu0 0
        %3485 = vmatmul.mubr.bf16.gmra.mxu0 %v3386
        %v3486 = vpop.f32.mrf.mxu0
        %v3487 = vadd.f32 0.0, %v3486
        %v3488 = vpop.f32.mrf.mxu0
        %v3489 = vpop.f32.mrf.mxu0
        %v3490 = vadd.f32 0.0, %v3489
        %v3491 = vpop.f32.mrf.mxu0
        %3492 = vmatprep.mubr.bf16.mxu0 0
        %3493 = vmatmul.mubr.bf16.gmra.mxu0 %v3389
        %v3494 = vpop.f32.mrf.mxu0
        %v3495 = vadd.f32 0.0, %v3494
        %v3496 = vpop.f32.mrf.mxu0
        %v3497 = vpop.f32.mrf.mxu0
        %v3498 = vadd.f32 0.0, %v3497
        %v3499 = vpop.f32.mrf.mxu0
        %3500 = vmatprep.mubr.bf16.mxu0 0
        %3501 = vmatmul.mubr.bf16.gmra.mxu0 %v3392
        %v3502 = vpop.f32.mrf.mxu0
        %v3503 = vadd.f32 0.0, %v3502
        %v3504 = vpop.f32.mrf.mxu0
        %v3505 = vpop.f32.mrf.mxu0
        %v3506 = vadd.f32 0.0, %v3505
        %v3507 = vpop.f32.mrf.mxu0
        %3508 = vmatprep.mubr.bf16.mxu0 0
        %3509 = vmatmul.mubr.bf16.gmra.mxu0 %v3395
        %v3510 = vpop.f32.mrf.mxu0
        %v3511 = vadd.f32 0.0, %v3510
        %v3512 = vpop.f32.mrf.mxu0
        %v3513 = vpop.f32.mrf.mxu0
        %v3514 = vadd.f32 0.0, %v3513
        %v3515 = vpop.f32.mrf.mxu0
        %3516 = vmatprep.mubr.bf16.mxu0 0
        %3517 = vmatmul.mubr.bf16.gmra.mxu0 %v3398
        %v3518 = vpop.f32.mrf.mxu0
        %v3519 = vadd.f32 0.0, %v3518
        %v3520 = vpop.f32.mrf.mxu0
        %v3521 = vpop.f32.mrf.mxu0
        %v3522 = vadd.f32 0.0, %v3521
        %v3523 = vpop.f32.mrf.mxu0
        %3524 = vmatprep.mubr.bf16.mxu0 0
        %3525 = vmatmul.mubr.bf16.gmra.mxu0 %v3401
        %v3526 = vpop.f32.mrf.mxu0
        %v3527 = vadd.f32 0.0, %v3526
        %v3528 = vpop.f32.mrf.mxu0
        %v3529 = vpop.f32.mrf.mxu0
        %v3530 = vadd.f32 0.0, %v3529
        %v3531 = vpop.f32.mrf.mxu0
        %3532 = vmatprep.mubr.bf16.mxu0 0
        %3533 = vmatmul.mubr.bf16.gmra.mxu0 %v3404
        %v3534 = vpop.f32.mrf.mxu0
        %v3535 = vadd.f32 0.0, %v3534
        %v3536 = vpop.f32.mrf.mxu0
        %v3537 = vpop.f32.mrf.mxu0
        %v3538 = vadd.f32 0.0, %v3537
        %v3539 = vpop.f32.mrf.mxu0
        %3540 = vmatprep.mubr.bf16.mxu0 0
        %3541 = vmatmul.mubr.bf16.gmra.mxu0 %v3407
        %v3542 = vpop.f32.mrf.mxu0
        %v3543 = vadd.f32 0.0, %v3542
        %v3544 = vpop.f32.mrf.mxu0
        %v3545 = vpop.f32.mrf.mxu0
        %v3546 = vadd.f32 0.0, %v3545
        %v3547 = vpop.f32.mrf.mxu0
        %3548 = vmatprep.mubr.bf16.mxu0 0
        %3549 = vmatmul.mubr.bf16.gmra.mxu0 %v3410
        %v3550 = vpop.f32.mrf.mxu0
        %v3551 = vadd.f32 0.0, %v3550
        %v3552 = vpop.f32.mrf.mxu0
        %v3553 = vpop.f32.mrf.mxu0
        %v3554 = vadd.f32 0.0, %v3553
        %v3555 = vpop.f32.mrf.mxu0
        %3556 = vmatprep.mubr.bf16.mxu0 0
        %3557 = vmatmul.mubr.bf16.gmra.mxu0 %v3413
        %v3558 = vpop.f32.mrf.mxu0
        %v3559 = vadd.f32 0.0, %v3558
        %v3560 = vpop.f32.mrf.mxu0
        %v3561 = vpop.f32.mrf.mxu0
        %v3562 = vadd.f32 0.0, %v3561
        %v3563 = vpop.f32.mrf.mxu0
        %3564 = vmatprep.mubr.bf16.mxu0 0
        %3565 = vmatmul.mubr.bf16.gmra.mxu0 %v3416
        %v3566 = vpop.f32.mrf.mxu0
        %v3567 = vadd.f32 0.0, %v3566
        %v3568 = vpop.f32.mrf.mxu0
        %v3569 = vpop.f32.mrf.mxu0
        %v3570 = vadd.f32 0.0, %v3569
        %v3571 = vpop.f32.mrf.mxu0
        %3572 = vmatprep.mubr.bf16.mxu0 0
        %3573 = vmatmul.mubr.bf16.gmra.mxu0 %v3419
        %v3574 = vpop.f32.mrf.mxu0
        %v3575 = vadd.f32 0.0, %v3574
        %v3576 = vpop.f32.mrf.mxu0
        %v3577 = vpop.f32.mrf.mxu0
        %v3578 = vadd.f32 0.0, %v3577
        %v3579 = vpop.f32.mrf.mxu0
        %3580 = vmatprep.mubr.bf16.mxu0 0
        %3581 = vmatmul.mubr.bf16.gmra.mxu0 %v3422
        %v3582 = vpop.f32.mrf.mxu0
        %v3583 = vadd.f32 0.0, %v3582
        %v3584 = vpop.f32.mrf.mxu0
        %v3585 = vpop.f32.mrf.mxu0
        %v3586 = vadd.f32 0.0, %v3585
        %v3587 = vpop.f32.mrf.mxu0
        %3588 = vmatprep.mubr.bf16.mxu0 0
        %3589 = vmatmul.mubr.bf16.gmra.mxu0 %v3425
        %v3590 = vpop.f32.mrf.mxu0
        %v3591 = vadd.f32 0.0, %v3590
        %v3592 = vpop.f32.mrf.mxu0
        %v3593 = vpop.f32.mrf.mxu0
        %v3594 = vadd.f32 0.0, %v3593
        %v3595 = vpop.f32.mrf.mxu0
        %3596 = vmatprep.mubr.bf16.mxu0 0
        %3597 = vmatmul.mubr.bf16.gmra.mxu0 %v3428
        %v3598 = vpop.f32.mrf.mxu0
        %v3599 = vadd.f32 0.0, %v3598
        %v3600 = vpop.f32.mrf.mxu0
        %v3601 = vpop.f32.mrf.mxu0
        %v3602 = vadd.f32 0.0, %v3601
        %v3603 = vpop.f32.mrf.mxu0
        %3604 = vmatprep.mubr.bf16.mxu0 0
        %3605 = vmatmul.mubr.bf16.gmra.mxu0 %v3431
        %v3606 = vpop.f32.mrf.mxu0
        %v3607 = vadd.f32 0.0, %v3606
        %v3608 = vpop.f32.mrf.mxu0
        %v3609 = vpop.f32.mrf.mxu0
        %v3610 = vadd.f32 0.0, %v3609
        %v3611 = vpop.f32.mrf.mxu0
        %3612 = vdwg.mxu0
        %v3613 = vadd.f32 %v3299, %v3471
        %v3614 = vadd.f32 %v3300, %v3474
        %v3615 = vadd.f32 %v3301, %v3479
        %v3616 = vadd.f32 %v3302, %v3482
        %v3617 = vadd.f32 %v3303, %v3487
        %v3618 = vadd.f32 %v3304, %v3490
        %v3619 = vadd.f32 %v3305, %v3495
        %v3620 = vadd.f32 %v3306, %v3498
        %v3621 = vadd.f32 %v3307, %v3503
        %v3622 = vadd.f32 %v3308, %v3506
        %v3623 = vadd.f32 %v3309, %v3511
        %v3624 = vadd.f32 %v3310, %v3514
        %v3625 = vadd.f32 %v3311, %v3519
        %v3626 = vadd.f32 %v3312, %v3522
        %v3627 = vadd.f32 %v3313, %v3527
        %v3628 = vadd.f32 %v3314, %v3530
        %v3629 = vadd.f32 %v3315, %v3535
        %v3630 = vadd.f32 %v3316, %v3538
        %v3631 = vadd.f32 %v3317, %v3543
        %v3632 = vadd.f32 %v3318, %v3546
        %v3633 = vadd.f32 %v3319, %v3551
        %v3634 = vadd.f32 %v3320, %v3554
        %v3635 = vadd.f32 %v3321, %v3559
        %v3636 = vadd.f32 %v3322, %v3562
        %v3637 = vadd.f32 %v3323, %v3567
        %v3638 = vadd.f32 %v3324, %v3570
        %v3639 = vadd.f32 %v3325, %v3575
        %v3640 = vadd.f32 %v3326, %v3578
        %v3641 = vadd.f32 %v3327, %v3583
        %v3642 = vadd.f32 %v3328, %v3586
        %v3643 = vadd.f32 %v3329, %v3591
        %v3644 = vadd.f32 %v3330, %v3594
        %v3645 = vadd.f32 %v3331, %v3599
        %v3646 = vadd.f32 %v3332, %v3602
        %v3647 = vadd.f32 %v3333, %v3607
        %v3648 = vadd.f32 %v3334, %v3610
        %s3649 = smul.u32 %s22, 128
        %s3650 = sshra.s32 %s3649, 7
        %s3651 = sand.u32 %s3649, 127
        %s3652 = scalar_lea.vmem %s2, %s3650
        %v3653 = vld [vmem:[%s3652] sm:$0x1]
        %v3655 = vlaneseq
        %v3656 = vshrl.u32 %v3655, 7
        %v3657 = vsub.s32 0, %v3656
        %v3658 = vrot.slane %v3653, %v3657
        %v3660 = vadd.f32 %v3613, %v3658
        %v3661 = vadd.f32 %v3614, %v3658
        %v3662 = vadd.f32 %v3615, %v3658
        %v3663 = vadd.f32 %v3616, %v3658
        %v3664 = vadd.f32 %v3617, %v3658
        %v3665 = vadd.f32 %v3618, %v3658
        %v3666 = vadd.f32 %v3619, %v3658
        %v3667 = vadd.f32 %v3620, %v3658
        %v3668 = vadd.f32 %v3621, %v3658
        %v3669 = vadd.f32 %v3622, %v3658
        %v3670 = vadd.f32 %v3623, %v3658
        %v3671 = vadd.f32 %v3624, %v3658
        %v3672 = vadd.f32 %v3625, %v3658
        %v3673 = vadd.f32 %v3626, %v3658
        %v3674 = vadd.f32 %v3627, %v3658
        %v3675 = vadd.f32 %v3628, %v3658
        %v3676 = vadd.f32 %v3629, %v3658
        %v3677 = vadd.f32 %v3630, %v3658
        %v3678 = vadd.f32 %v3631, %v3658
        %v3679 = vadd.f32 %v3632, %v3658
        %v3680 = vadd.f32 %v3633, %v3658
        %v3681 = vadd.f32 %v3634, %v3658
        %v3682 = vadd.f32 %v3635, %v3658
        %v3683 = vadd.f32 %v3636, %v3658
        %v3684 = vadd.f32 %v3637, %v3658
        %v3685 = vadd.f32 %v3638, %v3658
        %v3686 = vadd.f32 %v3639, %v3658
        %v3687 = vadd.f32 %v3640, %v3658
        %v3688 = vadd.f32 %v3641, %v3658
        %v3689 = vadd.f32 %v3642, %v3658
        %v3690 = vadd.f32 %v3643, %v3658
        %v3691 = vadd.f32 %v3644, %v3658
        %v3692 = vadd.f32 %v3645, %v3658
        %v3693 = vadd.f32 %v3646, %v3658
        %v3694 = vadd.f32 %v3647, %v3658
        %v3695 = vadd.f32 %v3648, %v3658
        %vm3696 = vcmp.gt.f32.partialorder %v3660, 0.0
        %vm3697 = vcmp.gt.f32.partialorder %v3661, 0.0
        %vm3698 = vcmp.gt.f32.partialorder %v3662, 0.0
        %vm3699 = vcmp.gt.f32.partialorder %v3663, 0.0
        %vm3700 = vcmp.gt.f32.partialorder %v3664, 0.0
        %vm3701 = vcmp.gt.f32.partialorder %v3665, 0.0
        %vm3702 = vcmp.gt.f32.partialorder %v3666, 0.0
        %vm3703 = vcmp.gt.f32.partialorder %v3667, 0.0
        %vm3704 = vcmp.gt.f32.partialorder %v3668, 0.0
        %vm3705 = vcmp.gt.f32.partialorder %v3669, 0.0
        %vm3706 = vcmp.gt.f32.partialorder %v3670, 0.0
        %vm3707 = vcmp.gt.f32.partialorder %v3671, 0.0
        %vm3708 = vcmp.gt.f32.partialorder %v3672, 0.0
        %vm3709 = vcmp.gt.f32.partialorder %v3673, 0.0
        %vm3710 = vcmp.gt.f32.partialorder %v3674, 0.0
        %vm3711 = vcmp.gt.f32.partialorder %v3675, 0.0
        %vm3712 = vcmp.gt.f32.partialorder %v3676, 0.0
        %vm3713 = vcmp.gt.f32.partialorder %v3677, 0.0
        %vm3714 = vcmp.gt.f32.partialorder %v3678, 0.0
        %vm3715 = vcmp.gt.f32.partialorder %v3679, 0.0
        %vm3716 = vcmp.gt.f32.partialorder %v3680, 0.0
        %vm3717 = vcmp.gt.f32.partialorder %v3681, 0.0
        %vm3718 = vcmp.gt.f32.partialorder %v3682, 0.0
        %vm3719 = vcmp.gt.f32.partialorder %v3683, 0.0
        %vm3720 = vcmp.gt.f32.partialorder %v3684, 0.0
        %vm3721 = vcmp.gt.f32.partialorder %v3685, 0.0
        %vm3722 = vcmp.gt.f32.partialorder %v3686, 0.0
        %vm3723 = vcmp.gt.f32.partialorder %v3687, 0.0
        %vm3724 = vcmp.gt.f32.partialorder %v3688, 0.0
        %vm3725 = vcmp.gt.f32.partialorder %v3689, 0.0
        %vm3726 = vcmp.gt.f32.partialorder %v3690, 0.0
        %vm3727 = vcmp.gt.f32.partialorder %v3691, 0.0
        %vm3728 = vcmp.gt.f32.partialorder %v3692, 0.0
        %vm3729 = vcmp.gt.f32.partialorder %v3693, 0.0
        %vm3730 = vcmp.gt.f32.partialorder %v3694, 0.0
        %vm3731 = vcmp.gt.f32.partialorder %v3695, 0.0
        %v3732 = vmul.f32 %v3660, 0.1
        %v3733 = vmul.f32 %v3661, 0.1
        %v3734 = vmul.f32 %v3662, 0.1
        %v3735 = vmul.f32 %v3663, 0.1
        %v3736 = vmul.f32 %v3664, 0.1
        %v3737 = vmul.f32 %v3665, 0.1
        %v3738 = vmul.f32 %v3666, 0.1
        %v3739 = vmul.f32 %v3667, 0.1
        %v3740 = vmul.f32 %v3668, 0.1
        %v3741 = vmul.f32 %v3669, 0.1
        %v3742 = vmul.f32 %v3670, 0.1
        %v3743 = vmul.f32 %v3671, 0.1
        %v3744 = vmul.f32 %v3672, 0.1
        %v3745 = vmul.f32 %v3673, 0.1
        %v3746 = vmul.f32 %v3674, 0.1
        %v3747 = vmul.f32 %v3675, 0.1
        %v3748 = vmul.f32 %v3676, 0.1
        %v3749 = vmul.f32 %v3677, 0.1
        %v3750 = vmul.f32 %v3678, 0.1
        %v3751 = vmul.f32 %v3679, 0.1
        %v3752 = vmul.f32 %v3680, 0.1
        %v3753 = vmul.f32 %v3681, 0.1
        %v3754 = vmul.f32 %v3682, 0.1
        %v3755 = vmul.f32 %v3683, 0.1
        %v3756 = vmul.f32 %v3684, 0.1
        %v3757 = vmul.f32 %v3685, 0.1
        %v3758 = vmul.f32 %v3686, 0.1
        %v3759 = vmul.f32 %v3687, 0.1
        %v3760 = vmul.f32 %v3688, 0.1
        %v3761 = vmul.f32 %v3689, 0.1
        %v3762 = vmul.f32 %v3690, 0.1
        %v3763 = vmul.f32 %v3691, 0.1
        %v3764 = vmul.f32 %v3692, 0.1
        %v3765 = vmul.f32 %v3693, 0.1
        %v3766 = vmul.f32 %v3694, 0.1
        %v3767 = vmul.f32 %v3695, 0.1
        %v3768 = vsel %vm3696, %v3660, %v3732
        %v3769 = vsel %vm3697, %v3661, %v3733
        %v3770 = vsel %vm3698, %v3662, %v3734
        %v3771 = vsel %vm3699, %v3663, %v3735
        %v3772 = vsel %vm3700, %v3664, %v3736
        %v3773 = vsel %vm3701, %v3665, %v3737
        %v3774 = vsel %vm3702, %v3666, %v3738
        %v3775 = vsel %vm3703, %v3667, %v3739
        %v3776 = vsel %vm3704, %v3668, %v3740
        %v3777 = vsel %vm3705, %v3669, %v3741
        %v3778 = vsel %vm3706, %v3670, %v3742
        %v3779 = vsel %vm3707, %v3671, %v3743
        %v3780 = vsel %vm3708, %v3672, %v3744
        %v3781 = vsel %vm3709, %v3673, %v3745
        %v3782 = vsel %vm3710, %v3674, %v3746
        %v3783 = vsel %vm3711, %v3675, %v3747
        %v3784 = vsel %vm3712, %v3676, %v3748
        %v3785 = vsel %vm3713, %v3677, %v3749
        %v3786 = vsel %vm3714, %v3678, %v3750
        %v3787 = vsel %vm3715, %v3679, %v3751
        %v3788 = vsel %vm3716, %v3680, %v3752
        %v3789 = vsel %vm3717, %v3681, %v3753
        %v3790 = vsel %vm3718, %v3682, %v3754
        %v3791 = vsel %vm3719, %v3683, %v3755
        %v3792 = vsel %vm3720, %v3684, %v3756
        %v3793 = vsel %vm3721, %v3685, %v3757
        %v3794 = vsel %vm3722, %v3686, %v3758
        %v3795 = vsel %vm3723, %v3687, %v3759
        %v3796 = vsel %vm3724, %v3688, %v3760
        %v3797 = vsel %vm3725, %v3689, %v3761
        %v3798 = vsel %vm3726, %v3690, %v3762
        %v3799 = vsel %vm3727, %v3691, %v3763
        %v3800 = vsel %vm3728, %v3692, %v3764
        %v3801 = vsel %vm3729, %v3693, %v3765
        %v3802 = vsel %vm3730, %v3694, %v3766
        %v3803 = vsel %vm3731, %v3695, %v3767
        %v3804 = vpack.c.bf16 %v3769, %v3768
        %v3805 = vpack.c.bf16 %v3771, %v3770
        %v3806 = vpack.c.bf16 %v3773, %v3772
        %v3807 = vpack.c.bf16 %v3775, %v3774
        %v3808 = vpack.c.bf16 %v3777, %v3776
        %v3809 = vpack.c.bf16 %v3779, %v3778
        %v3810 = vpack.c.bf16 %v3781, %v3780
        %v3811 = vpack.c.bf16 %v3783, %v3782
        %v3812 = vpack.c.bf16 %v3785, %v3784
        %v3813 = vpack.c.bf16 %v3787, %v3786
        %v3814 = vpack.c.bf16 %v3789, %v3788
        %v3815 = vpack.c.bf16 %v3791, %v3790
        %v3816 = vpack.c.bf16 %v3793, %v3792
        %v3817 = vpack.c.bf16 %v3795, %v3794
        %v3818 = vpack.c.bf16 %v3797, %v3796
        %v3819 = vpack.c.bf16 %v3799, %v3798
        %v3820 = vpack.c.bf16 %v3801, %v3800
        %v3821 = vpack.c.bf16 %v3803, %v3802
        %v3840 = vunpack.c.l.b16 %v3804
        %v3841 = vunpack.c.h.b16 %v3804
        %v3842 = vunpack.c.l.b16 %v3805
        %v3843 = vunpack.c.h.b16 %v3805
        %v3844 = vunpack.c.l.b16 %v3806
        %v3845 = vunpack.c.h.b16 %v3806
        %v3846 = vunpack.c.l.b16 %v3807
        %v3847 = vunpack.c.h.b16 %v3807
        %v3848 = vunpack.c.l.b16 %v3808
        %v3849 = vunpack.c.h.b16 %v3808
        %v3850 = vunpack.c.l.b16 %v3809
        %v3851 = vunpack.c.h.b16 %v3809
        %v3852 = vunpack.c.l.b16 %v3810
        %v3853 = vunpack.c.h.b16 %v3810
        %v3854 = vunpack.c.l.b16 %v3811
        %v3855 = vunpack.c.h.b16 %v3811
        %v3856 = vunpack.c.l.b16 %v3812
        %v3857 = vunpack.c.h.b16 %v3812
        %v3858 = vunpack.c.l.b16 %v3813
        %v3859 = vunpack.c.h.b16 %v3813
        %v3860 = vunpack.c.l.b16 %v3814
        %v3861 = vunpack.c.h.b16 %v3814
        %v3862 = vunpack.c.l.b16 %v3815
        %v3863 = vunpack.c.h.b16 %v3815
        %v3864 = vunpack.c.l.b16 %v3816
        %v3865 = vunpack.c.h.b16 %v3816
        %v3866 = vunpack.c.l.b16 %v3817
        %v3867 = vunpack.c.h.b16 %v3817
        %v3868 = vunpack.c.l.b16 %v3818
        %v3869 = vunpack.c.h.b16 %v3818
        %v3870 = vunpack.c.l.b16 %v3819
        %v3871 = vunpack.c.h.b16 %v3819
        %v3872 = vunpack.c.l.b16 %v3820
        %v3873 = vunpack.c.h.b16 %v3820
        %v3874 = vunpack.c.l.b16 %v3821
        %v3875 = vunpack.c.h.b16 %v3821
        %v3876 = vpack.c.b16 %v3840, %v3840
        %v3877 = vpack.c.b16 %v3841, %v3841
        %v3878 = vpack.c.b16 %v3842, %v3842
        %v3879 = vpack.c.b16 %v3843, %v3843
        %v3880 = vpack.c.b16 %v3844, %v3844
        %v3881 = vpack.c.b16 %v3845, %v3845
        %v3882 = vpack.c.b16 %v3846, %v3846
        %v3883 = vpack.c.b16 %v3847, %v3847
        %v3884 = vpack.c.b16 %v3848, %v3848
        %v3885 = vpack.c.b16 %v3849, %v3849
        %v3886 = vpack.c.b16 %v3850, %v3850
        %v3887 = vpack.c.b16 %v3851, %v3851
        %v3888 = vpack.c.b16 %v3852, %v3852
        %v3889 = vpack.c.b16 %v3853, %v3853
        %v3890 = vpack.c.b16 %v3854, %v3854
        %v3891 = vpack.c.b16 %v3855, %v3855
        %v3892 = vpack.c.b16 %v3856, %v3856
        %v3893 = vpack.c.b16 %v3857, %v3857
        %v3894 = vpack.c.b16 %v3858, %v3858
        %v3895 = vpack.c.b16 %v3859, %v3859
        %v3896 = vpack.c.b16 %v3860, %v3860
        %v3897 = vpack.c.b16 %v3861, %v3861
        %v3898 = vpack.c.b16 %v3862, %v3862
        %v3899 = vpack.c.b16 %v3863, %v3863
        %v3900 = vpack.c.b16 %v3864, %v3864
        %v3901 = vpack.c.b16 %v3865, %v3865
        %v3902 = vpack.c.b16 %v3866, %v3866
        %v3903 = vpack.c.b16 %v3867, %v3867
        %v3904 = vpack.c.b16 %v3868, %v3868
        %v3905 = vpack.c.b16 %v3869, %v3869
        %v3906 = vpack.c.b16 %v3870, %v3870
        %v3907 = vpack.c.b16 %v3871, %v3871
        %v3908 = vpack.c.b16 %v3872, %v3872
        %v3909 = vpack.c.b16 %v3873, %v3873
        %v3910 = vpack.c.b16 %v3874, %v3874
        %v3911 = vpack.c.b16 %v3875, %v3875
        %3948 = vst [vmem:[%s190] sm:$0xf] %v3876
        %3949 = vst [vmem:[%s190 + $0x4] sm:$0xf] %v3877
        %3950 = vst [vmem:[%s190 + $0x8] sm:$0xf] %v3878
        %3951 = vst [vmem:[%s190 + $0xc] sm:$0xf] %v3879
        %3952 = vst [vmem:[%s190 + $0x10] sm:$0xf] %v3880
        %3953 = vst [vmem:[%s190 + $0x14] sm:$0xf] %v3881
        %3954 = vst [vmem:[%s190 + $0x18] sm:$0xf] %v3882
        %3955 = vst [vmem:[%s190 + $0x1c] sm:$0xf] %v3883
        %3956 = vst [vmem:[%s190 + $0x20] sm:$0xf] %v3884
        %3957 = vst [vmem:[%s190 + $0x24] sm:$0xf] %v3885
        %3958 = vst [vmem:[%s190 + $0x28] sm:$0xf] %v3886
        %3959 = vst [vmem:[%s190 + $0x2c] sm:$0xf] %v3887
        %3960 = vst [vmem:[%s190 + $0x30] sm:$0xf] %v3888
        %3961 = vst [vmem:[%s190 + $0x34] sm:$0xf] %v3889
        %3962 = vst [vmem:[%s190 + $0x38] sm:$0xf] %v3890
        %3963 = vst [vmem:[%s190 + $0x3c] sm:$0xf] %v3891
        %3964 = vst [vmem:[%s190 + $0x40] sm:$0xf] %v3892
        %3965 = vst [vmem:[%s190 + $0x44] sm:$0xf] %v3893
        %3966 = vst [vmem:[%s190 + $0x48] sm:$0xf] %v3894
        %3967 = vst [vmem:[%s190 + $0x4c] sm:$0xf] %v3895
        %3968 = vst [vmem:[%s190 + $0x50] sm:$0xf] %v3896
        %3969 = vst [vmem:[%s190 + $0x54] sm:$0xf] %v3897
        %3970 = vst [vmem:[%s190 + $0x58] sm:$0xf] %v3898
        %3971 = vst [vmem:[%s190 + $0x5c] sm:$0xf] %v3899
        %3972 = vst [vmem:[%s190 + $0x60] sm:$0xf] %v3900
        %3973 = vst [vmem:[%s190 + $0x64] sm:$0xf] %v3901
        %3974 = vst [vmem:[%s190 + $0x68] sm:$0xf] %v3902
        %3975 = vst [vmem:[%s190 + $0x6c] sm:$0xf] %v3903
        %3976 = vst [vmem:[%s190 + $0x70] sm:$0xf] %v3904
        %3977 = vst [vmem:[%s190 + $0x74] sm:$0xf] %v3905
        %3978 = vst [vmem:[%s190 + $0x78] sm:$0xf] %v3906
        %3979 = vst [vmem:[%s190 + $0x7c] sm:$0xf] %v3907
        %3980 = vst [vmem:[%s190 + $0x80] sm:$0xf] %v3908
        %3981 = vst [vmem:[%s190 + $0x84] sm:$0xf] %v3909
        %3982 = vst [vmem:[%s190 + $0x88] sm:$0xf] %v3910
        %3983 = vst [vmem:[%s190 + $0x8c] sm:$0xf] %v3911
        %s3984 = sand.u32 %s112, 1
        %s3985 = scalar_lea.sflag [#allocation3], %s3984
        %s3986 = sand.u32 %s112, 1
        %s3987 = smul.addr %s3986, 144
        %s3988 = scalar_lea.vmem [#allocation2], %s3987
        // Predicated region
        $region33: #{tpu_custom_call.1} parent=31 // pred_check
          %p3989 = pneg %p122
        $region34: #{tpu_custom_call.1} parent=31 // pred_check_branch
          %3991 = sbr.rel (%p3989) target = $region36
        $region35: #{tpu_custom_call.1} parent=31 // pred_region
          %s3993 = ssub.s32 2304, 2304
          %3994 = vsyncadd %s3985, %s3993
          %s3995 = smul.addr %s21, 36
          %s3996 = sadd.s32 %s22, %s3995
          %s3997 = smul.addr %s3996, 64
          %s3998 = scalar_lea.hbm %s3, %s3997
          %s3999 = sshll.u32 %s3988, 4
          %s4000 = int_to_ptr.vmem [resolvable:$true] %s3999
          %4005 = dma.vmem_to_hbm [thread:$0]  %s4000, 2304, %s3998, %s3985, 64, 64, 4
        $region36: #{tpu_custom_call.1} parent=31 // pred_fallthru
          _
      $region32: #{tpu_custom_call.1} parent=5 // pred_fallthru
        _
      %p4006 = scmp.le.s32.totalorder 2, %s12
      // Predicated region
      $region37: #{tpu_custom_call.1} parent=5 // pred_check
        %p4007 = pneg %p4006
      $region38: #{tpu_custom_call.1} parent=5 // pred_check_branch
        %4009 = sbr.rel (%p4007) target = $region40
      $region39: #{tpu_custom_call.1} parent=5 // pred_region
        %s4010 = ssub.s32 %s12, 2
        // Predicated region
        $region41: #{tpu_custom_call.1} parent=39 // pred_check
          %p4011 = pneg %p128
        $region42: #{tpu_custom_call.1} parent=39 // pred_check_branch
          %4013 = sbr.rel (%p4011) target = $region44
        $region43: #{tpu_custom_call.1} parent=39 // pred_region
          %s4014 = sand.u32 %s113, 1
          %s4015 = scalar_lea.sflag [#allocation3], %s4014
          %s4016 = sand.u32 %s113, 1
          %s4017 = smul.addr %s4016, 144
          %s4018 = scalar_lea.vmem [#allocation2], %s4017
          %4019 = dma.done %s4015, 2304
        $region44: #{tpu_custom_call.1} parent=39 // pred_fallthru
          _
      $region40: #{tpu_custom_call.1} parent=5 // pred_fallthru
        _
    $region6: #{tpu_custom_call.1} parent=1 // loop_footer
      %s16 = sadd.s32 1, %s12
    $region7: #{tpu_custom_call.1} parent=1 // loop_footer_branch
      %11 = sbr.rel target = $region3
    $region8: #{tpu_custom_call.1} parent=1 // loop_exit
      _
    %4020 = vsyncpa [#allocation3], 1
    %s4021 = scalar_lea.sflag [#allocation3], 1
    %4022 = vsyncpa %s4021, 1

</llo_original>
